<compile_context>
chip_gen: v6e
topology: v6e:2x2x1
jax: 0.10.0
libtpu: 0.0.40
codegen_flags: <defaults>
</compile_context>

<pallas_src>
import functools

import jax
import jax.numpy as jnp
from jax.experimental import pallas as pl
from jax.experimental.pallas import tpu as pltpu


_VMEM_LIMIT = 48 * 1024 * 1024    # explicit scoped-VMEM cap (> 32 MiB default, < v7x 64 MiB)
_TILE_BUDGET = 16 * 1024 * 1024   # working-set budget used when picking a row tile

_COMPILER_PARAMS = pltpu.CompilerParams(
    dimension_semantics=("parallel",),   # row tiles are independent -> v7x megacore sharding
    vmem_limit_bytes=_VMEM_LIMIT,
)


def _pick_row_tile(m, bytes_per_row, resident_bytes=0, budget=_TILE_BUDGET):
    """Largest row tile (<=256) dividing m whose double-buffered row blocks plus the
    resident operand fit the VMEM budget; falls back to a single full-height block."""
    for tm in (256, 128, 64, 32, 16):
        if m % tm == 0 and 2 * tm * bytes_per_row + resident_bytes <= budget:
            return tm
    return m  # full-dim block is always a legal BlockSpec


# ---------------------------------------------------------------------------
# Row-tiled matmul:  act(A @ B), bf16 operands, f32 accumulation.
# Used for X@W1, relu(L@XW1), h@W2 and L@hW2.
# ---------------------------------------------------------------------------
def _rowmm_kernel(a_ref, b_ref, o_ref, *, apply_relu):
    acc = jnp.dot(a_ref[...], b_ref[...], preferred_element_type=jnp.float32)
    if apply_relu:
        acc = jnp.maximum(acc, 0.0)
    o_ref[...] = acc.astype(o_ref.dtype)


def _row_matmul(a, b, out_dtype, apply_relu=False):
    m, k = a.shape
    kb, n = b.shape
    assert k == kb
    bytes_per_row = k * a.dtype.itemsize + n * jnp.dtype(out_dtype).itemsize
    resident_bytes = kb * n * b.dtype.itemsize
    tm = _pick_row_tile(m, bytes_per_row, resident_bytes)
    return pl.pallas_call(
        functools.partial(_rowmm_kernel, apply_relu=apply_relu),
        out_shape=jax.ShapeDtypeStruct((m, n), out_dtype),
        grid=(m // tm,),
        in_specs=[
            pl.BlockSpec((tm, k), lambda i: (i, 0)),  # row tile of A
            pl.BlockSpec((k, n), lambda i: (0, 0)),   # B resident across the grid
        ],
        out_specs=pl.BlockSpec((tm, n), lambda i: (i, 0)),
        compiler_params=_COMPILER_PARAMS,
    )(a, b)


# ---------------------------------------------------------------------------
# Row-tiled reconstruction:  softmax(-pairwise_sq_dist(emb), axis=1) + 1e-10.
# ---------------------------------------------------------------------------
def _recons_kernel(emb_tile_ref, emb_full_ref, out_ref):
    emb_t = emb_tile_ref[...]   # (tm, H) f32
    emb_f = emb_full_ref[...]   # (N,  H) f32, resident across grid steps

    # Gram block on the MXU: bf16 operands, contract the LAST dim of both operands
    # (no transposed copy of emb), accumulate in f32.
    gram = jax.lax.dot_general(
        emb_t.astype(jnp.bfloat16), emb_f.astype(jnp.bfloat16),
        dimension_numbers=(((1,), (1,)), ((), ())),
        preferred_element_type=jnp.float32)                              # (tm, N)

    # Squared norms. Row norms: plain lane reduce. Column norms: tiny ones-matmul
    # (8 sublanes for tile alignment) instead of a vector transpose/relayout.
    sq_row = jnp.sum(emb_t * emb_t, axis=1, keepdims=True)               # (tm, 1)
    ones8 = jnp.ones((8, emb_f.shape[1]), jnp.float32)
    sq_col = jax.lax.dot_general(
        ones8, emb_f * emb_f,
        dimension_numbers=(((1,), (1,)), ((), ())),
        preferred_element_type=jnp.float32)[0:1, :]                      # (1, N)

    # ||e_i - e_j||^2, clamped at 0 exactly like the reference utils.distance.
    dist = jnp.maximum(sq_row + sq_col - 2.0 * gram, 0.0)
    logits = -dist

    # Numerically stable row softmax + 1e-10 floor; EUP approximate reciprocal.
    mx = jnp.max(logits, axis=1, keepdims=True)
    e = jnp.exp(logits - mx)
    denom = jnp.sum(e, axis=1, keepdims=True)
    out_ref[...] = e * pl.reciprocal(denom, approx=True) + 1e-10


def _reconstruction(emb):
    n, h = emb.shape
    bytes_per_row = n * 4 + h * 4          # f32 output row + emb row-tile row
    resident_bytes = n * h * 4
    tm = _pick_row_tile(n, bytes_per_row, resident_bytes)
    return pl.pallas_call(
        _recons_kernel,
        out_shape=jax.ShapeDtypeStruct((n, n), jnp.float32),
        grid=(n // tm,),
        in_specs=[
            pl.BlockSpec((tm, h), lambda i: (i, 0)),   # emb row tile
            pl.BlockSpec((n, h), lambda i: (0, 0)),    # full emb, resident
        ],
        out_specs=pl.BlockSpec((tm, n), lambda i: (i, 0)),  # last dim full -> lane-dense
        compiler_params=_COMPILER_PARAMS,
    )(emb, emb)


# ---------------------------------------------------------------------------
# Full forward.
# ---------------------------------------------------------------------------
@jax.jit
def gae_forward(laplacian, x, w1, w2):
    """AdaGAE forward pass. Returns (recons_w, embedding)."""
    # bf16 MXU operands (cast once at the boundary), f32 accumulation in-kernel.
    lap16 = laplacian.astype(jnp.bfloat16)
    x16 = x.astype(jnp.bfloat16)
    w1_16 = w1.astype(jnp.bfloat16)
    w2_16 = w2.astype(jnp.bfloat16)

    xw1 = _row_matmul(x16, w1_16, jnp.bfloat16)                   # X @ W1
    h = _row_matmul(lap16, xw1, jnp.bfloat16, apply_relu=True)    # relu(L @ (X @ W1))
    hw2 = _row_matmul(h, w2_16, jnp.bfloat16)                     # h @ W2
    emb = _row_matmul(lap16, hw2, jnp.float32)                    # L @ (h @ W2), f32
    recons = _reconstruction(emb)                                 # softmax(-dist) + 1e-10
    return recons, emb


# ---------------------------------------------------------------------------
# Reference + demo.
# ---------------------------------------------------------------------------
def get_weight_initial(key, shape):
    """JAX analogue of the torch get_weight_initial (uniform +-sqrt(6/(fan_in+fan_out)))."""
    bound = (6.0 / (shape[0] + shape[1])) ** 0.5
    return jax.random.uniform(key, shape, jnp.float32, -bound, bound)


def reference_forward(laplacian, x, w1, w2):
    hi = jax.lax.Precision.HIGHEST
    h = jax.nn.relu(jnp.dot(laplacian, jnp.dot(x, w1, precision=hi), precision=hi))
    emb = jnp.dot(laplacian, jnp.dot(h, w2, precision=hi), precision=hi)
    sq = jnp.sum(emb * emb, axis=1)
    dist = jnp.maximum(
        sq[:, None] + sq[None, :] - 2.0 * jnp.dot(emb, emb.T, precision=hi), 0.0)
    return jax.nn.softmax(-dist, axis=1) + 1e-10


if __name__ == "__main__":
    # Small AdaGAE problem: N=512 samples, layers = [256, 128, 64].
    N, D, H1, H2 = 512, 256, 128, 64

    key = jax.random.PRNGKey(0)
    k_x, k_g, k_w1, k_w2 = jax.random.split(key, 4)

    X = jax.random.normal(k_x, (N, D), dtype=jnp.float32)

    # Sparse symmetric weighted graph with self-loops -> normalized adjacency
    # D^-1/2 A D^-1/2 (the "Laplacian" operator used by the reference code).
    U = jax.random.uniform(k_g, (N, N), dtype=jnp.float32)
    A = jnp.where(U > 0.98, U, 0.0)
    A = 0.5 * (A + A.T) + jnp.eye(N, dtype=jnp.float32)
    d_inv_sqrt = 1.0 / jnp.sqrt(jnp.sum(A, axis=1))
    Laplacian = (A * d_inv_sqrt[None, :]) * d_inv_sqrt[:, None]

    W1 = get_weight_initial(k_w1, (D, H1))
    W2 = get_weight_initial(k_w2, (H1, H2))

    recons, emb = gae_forward(Laplacian, X, W1, W2)
    recons = jax.block_until_ready(recons)

    ref = reference_forward(Laplacian, X, W1, W2)
    assert recons.shape == (N, N)
    assert emb.shape == (N, H2)
    max_err = float(jnp.max(jnp.abs(recons - ref)))
    assert jnp.allclose(recons, ref, atol=3e-4, rtol=5e-2), (
        f"mismatch vs reference (max abs err {max_err:.3e})")
    # Rows of recons_w are probability distributions (up to the +1e-10 floor).
    assert jnp.allclose(jnp.sum(recons, axis=1), 1.0 + N * 1e-10, atol=1e-3)

    print("KERNEL_OK")
</pallas_src>

<mosaic_0001>
module attributes {stable_mosaic.version = 11 : i64} {
  func.func @_rowmm_kernel(%arg0: i32, %arg1: memref<256x256xbf16, #tpu.memory_space<vmem>>, %arg2: memref<256x128xbf16, #tpu.memory_space<vmem>>, %arg3: memref<256x128xbf16, #tpu.memory_space<vmem>>) attributes {dimension_semantics = [#tpu.dimension_semantics<parallel>], iteration_bounds = array<i64: 2>, scalar_prefetch = 0 : i64, scratch_operands = 0 : i64, tpu.core_type = #tpu.core_type<tc>, window_params = [{transform_indices = @transform_0, window_bounds = array<i64: 256, 256>}, {pipeline_mode = #tpu.pipeline_mode<synchronous>, transform_indices = @transform_1, window_bounds = array<i64: 256, 128>}, {transform_indices = @transform_2, window_bounds = array<i64: 256, 128>}]} {
    %c0 = arith.constant 0 : index
    %c0_0 = arith.constant 0 : index
    %0 = vector.load %arg1[%c0, %c0_0] : memref<256x256xbf16, #tpu.memory_space<vmem>>, vector<256x256xbf16>
    %c0_1 = arith.constant 0 : index
    %c0_2 = arith.constant 0 : index
    %1 = vector.load %arg2[%c0_1, %c0_2] : memref<256x128xbf16, #tpu.memory_space<vmem>>, vector<256x128xbf16>
    %cst = arith.constant dense<0.000000e+00> : vector<256x128xf32>
    %2 = tpu.matmul %0, %1, %cst {dimension_numbers = #tpu.dot_dimension_numbers<[1], [0], [0], [1], [0, 0, 1, 1], [], []>} : vector<256x256xbf16>, vector<256x128xbf16>, vector<256x128xf32> -> vector<256x128xf32>
    %3 = arith.truncf %2 : vector<256x128xf32> to vector<256x128xbf16>
    %c0_3 = arith.constant 0 : index
    %c0_4 = arith.constant 0 : index
    %4 = vector.load %arg3[%c0_3, %c0_4] : memref<256x128xbf16, #tpu.memory_space<vmem>>, vector<256x128xbf16>
    tpu.vector_store %arg3[%c0_3, %c0_4], %3 {strides = array<i32>} : memref<256x128xbf16, #tpu.memory_space<vmem>>, vector<256x128xbf16>,
    return
  }
  func.func @transform_0(%arg0: i32) -> (i32, i32) {
    %c0_i32 = arith.constant 0 : i32
    %c0_i32_0 = arith.constant 0 : i32
    return %arg0, %c0_i32 : i32, i32
  }
  func.func @transform_1(%arg0: i32) -> (i32, i32) {
    %c0_i32 = arith.constant 0 : i32
    %c0_i32_0 = arith.constant 0 : i32
    %c0_i32_1 = arith.constant 0 : i32
    return %c0_i32, %c0_i32_0 : i32, i32
  }
  func.func @transform_2(%arg0: i32) -> (i32, i32) {
    %c0_i32 = arith.constant 0 : i32
    %c0_i32_0 = arith.constant 0 : i32
    return %arg0, %c0_i32 : i32, i32
  }
}

module attributes {stable_mosaic.version = 11 : i64} {
  func.func @_rowmm_kernel(%arg0: i32, %arg1: memref<256x512xbf16, #tpu.memory_space<vmem>>, %arg2: memref<512x128xbf16, #tpu.memory_space<vmem>>, %arg3: memref<256x128xbf16, #tpu.memory_space<vmem>>) attributes {dimension_semantics = [#tpu.dimension_semantics<parallel>], iteration_bounds = array<i64: 2>, scalar_prefetch = 0 : i64, scratch_operands = 0 : i64, tpu.core_type = #tpu.core_type<tc>, window_params = [{transform_indices = @transform_0, window_bounds = array<i64: 256, 512>}, {pipeline_mode = #tpu.pipeline_mode<synchronous>, transform_indices = @transform_1, window_bounds = array<i64: 512, 128>}, {transform_indices = @transform_2, window_bounds = array<i64: 256, 128>}]} {
    %c0 = arith.constant 0 : index
    %c0_0 = arith.constant 0 : index
    %0 = vector.load %arg1[%c0, %c0_0] : memref<256x512xbf16, #tpu.memory_space<vmem>>, vector<256x512xbf16>
    %c0_1 = arith.constant 0 : index
    %c0_2 = arith.constant 0 : index
    %1 = vector.load %arg2[%c0_1, %c0_2] : memref<512x128xbf16, #tpu.memory_space<vmem>>, vector<512x128xbf16>
    %cst = arith.constant dense<0.000000e+00> : vector<256x128xf32>
    %2 = tpu.matmul %0, %1, %cst {dimension_numbers = #tpu.dot_dimension_numbers<[1], [0], [0], [1], [0, 0, 1, 1], [], []>} : vector<256x512xbf16>, vector<512x128xbf16>, vector<256x128xf32> -> vector<256x128xf32>
    %cst_3 = arith.constant 0.000000e+00 : f32
    %3 = vector.broadcast %cst_3 : f32 to vector<256x128xf32>
    %4 = arith.maximumf %2, %3 : vector<256x128xf32>
    %5 = arith.truncf %4 : vector<256x128xf32> to vector<256x128xbf16>
    %c0_4 = arith.constant 0 : index
    %c0_5 = arith.constant 0 : index
    %6 = vector.load %arg3[%c0_4, %c0_5] : memref<256x128xbf16, #tpu.memory_space<vmem>>, vector<256x128xbf16>
    tpu.vector_store %arg3[%c0_4, %c0_5], %5 {strides = array<i32>} : memref<256x128xbf16, #tpu.memory_space<vmem>>, vector<256x128xbf16>,
    return
  }
  func.func @transform_0(%arg0: i32) -> (i32, i32) {
    %c0_i32 = arith.constant 0 : i32
    %c0_i32_0 = arith.constant 0 : i32
    return %arg0, %c0_i32 : i32, i32
  }
  func.func @transform_1(%arg0: i32) -> (i32, i32) {
    %c0_i32 = arith.constant 0 : i32
    %c0_i32_0 = arith.constant 0 : i32
    %c0_i32_1 = arith.constant 0 : i32
    return %c0_i32, %c0_i32_0 : i32, i32
  }
  func.func @transform_2(%arg0: i32) -> (i32, i32) {
    %c0_i32 = arith.constant 0 : i32
    %c0_i32_0 = arith.constant 0 : i32
    return %arg0, %c0_i32 : i32, i32
  }
}

module attributes {stable_mosaic.version = 11 : i64} {
  func.func @_rowmm_kernel(%arg0: i32, %arg1: memref<256x128xbf16, #tpu.memory_space<vmem>>, %arg2: memref<128x64xbf16, #tpu.memory_space<vmem>>, %arg3: memref<256x64xbf16, #tpu.memory_space<vmem>>) attributes {dimension_semantics = [#tpu.dimension_semantics<parallel>], iteration_bounds = array<i64: 2>, scalar_prefetch = 0 : i64, scratch_operands = 0 : i64, tpu.core_type = #tpu.core_type<tc>, window_params = [{transform_indices = @transform_0, window_bounds = array<i64: 256, 128>}, {pipeline_mode = #tpu.pipeline_mode<synchronous>, transform_indices = @transform_1, window_bounds = array<i64: 128, 64>}, {transform_indices = @transform_2, window_bounds = array<i64: 256, 64>}]} {
    %c0 = arith.constant 0 : index
    %c0_0 = arith.constant 0 : index
    %0 = vector.load %arg1[%c0, %c0_0] : memref<256x128xbf16, #tpu.memory_space<vmem>>, vector<256x128xbf16>
    %c0_1 = arith.constant 0 : index
    %c0_2 = arith.constant 0 : index
    %1 = vector.load %arg2[%c0_1, %c0_2] : memref<128x64xbf16, #tpu.memory_space<vmem>>, vector<128x64xbf16>
    %cst = arith.constant dense<0.000000e+00> : vector<256x64xf32>
    %2 = tpu.matmul %0, %1, %cst {dimension_numbers = #tpu.dot_dimension_numbers<[1], [0], [0], [1], [0, 0, 1, 1], [], []>} : vector<256x128xbf16>, vector<128x64xbf16>, vector<256x64xf32> -> vector<256x64xf32>
    %3 = arith.truncf %2 : vector<256x64xf32> to vector<256x64xbf16>
    %c0_3 = arith.constant 0 : index
    %c0_4 = arith.constant 0 : index
    %4 = vector.load %arg3[%c0_3, %c0_4] : memref<256x64xbf16, #tpu.memory_space<vmem>>, vector<256x64xbf16>
    tpu.vector_store %arg3[%c0_3, %c0_4], %3 {strides = array<i32>} : memref<256x64xbf16, #tpu.memory_space<vmem>>, vector<256x64xbf16>,
    return
  }
  func.func @transform_0(%arg0: i32) -> (i32, i32) {
    %c0_i32 = arith.constant 0 : i32
    %c0_i32_0 = arith.constant 0 : i32
    return %arg0, %c0_i32 : i32, i32
  }
  func.func @transform_1(%arg0: i32) -> (i32, i32) {
    %c0_i32 = arith.constant 0 : i32
    %c0_i32_0 = arith.constant 0 : i32
    %c0_i32_1 = arith.constant 0 : i32
    return %c0_i32, %c0_i32_0 : i32, i32
  }
  func.func @transform_2(%arg0: i32) -> (i32, i32) {
    %c0_i32 = arith.constant 0 : i32
    %c0_i32_0 = arith.constant 0 : i32
    return %arg0, %c0_i32 : i32, i32
  }
}

module attributes {stable_mosaic.version = 11 : i64} {
  func.func @_rowmm_kernel(%arg0: i32, %arg1: memref<256x512xbf16, #tpu.memory_space<vmem>>, %arg2: memref<512x64xbf16, #tpu.memory_space<vmem>>, %arg3: memref<256x64xf32, #tpu.memory_space<vmem>>) attributes {dimension_semantics = [#tpu.dimension_semantics<parallel>], iteration_bounds = array<i64: 2>, scalar_prefetch = 0 : i64, scratch_operands = 0 : i64, tpu.core_type = #tpu.core_type<tc>, window_params = [{transform_indices = @transform_0, window_bounds = array<i64: 256, 512>}, {pipeline_mode = #tpu.pipeline_mode<synchronous>, transform_indices = @transform_1, window_bounds = array<i64: 512, 64>}, {transform_indices = @transform_2, window_bounds = array<i64: 256, 64>}]} {
    %c0 = arith.constant 0 : index
    %c0_0 = arith.constant 0 : index
    %0 = vector.load %arg1[%c0, %c0_0] : memref<256x512xbf16, #tpu.memory_space<vmem>>, vector<256x512xbf16>
    %c0_1 = arith.constant 0 : index
    %c0_2 = arith.constant 0 : index
    %1 = vector.load %arg2[%c0_1, %c0_2] : memref<512x64xbf16, #tpu.memory_space<vmem>>, vector<512x64xbf16>
    %cst = arith.constant dense<0.000000e+00> : vector<256x64xf32>
    %2 = tpu.matmul %0, %1, %cst {dimension_numbers = #tpu.dot_dimension_numbers<[1], [0], [0], [1], [0, 0, 1, 1], [], []>} : vector<256x512xbf16>, vector<512x64xbf16>, vector<256x64xf32> -> vector<256x64xf32>
    %c0_3 = arith.constant 0 : index
    %c0_4 = arith.constant 0 : index
    %3 = vector.load %arg3[%c0_3, %c0_4] : memref<256x64xf32, #tpu.memory_space<vmem>>, vector<256x64xf32>
    tpu.vector_store %arg3[%c0_3, %c0_4], %2 {strides = array<i32>} : memref<256x64xf32, #tpu.memory_space<vmem>>, vector<256x64xf32>,
    return
  }
  func.func @transform_0(%arg0: i32) -> (i32, i32) {
    %c0_i32 = arith.constant 0 : i32
    %c0_i32_0 = arith.constant 0 : i32
    return %arg0, %c0_i32 : i32, i32
  }
  func.func @transform_1(%arg0: i32) -> (i32, i32) {
    %c0_i32 = arith.constant 0 : i32
    %c0_i32_0 = arith.constant 0 : i32
    %c0_i32_1 = arith.constant 0 : i32
    return %c0_i32, %c0_i32_0 : i32, i32
  }
  func.func @transform_2(%arg0: i32) -> (i32, i32) {
    %c0_i32 = arith.constant 0 : i32
    %c0_i32_0 = arith.constant 0 : i32
    return %arg0, %c0_i32 : i32, i32
  }
}

module attributes {stable_mosaic.version = 11 : i64} {
  func.func @_recons_kernel(%arg0: i32, %arg1: memref<256x64xf32, #tpu.memory_space<vmem>>, %arg2: memref<512x64xf32, #tpu.memory_space<vmem>>, %arg3: memref<256x512xf32, #tpu.memory_space<vmem>>) attributes {dimension_semantics = [#tpu.dimension_semantics<parallel>], iteration_bounds = array<i64: 2>, scalar_prefetch = 0 : i64, scratch_operands = 0 : i64, tpu.core_type = #tpu.core_type<tc>, window_params = [{transform_indices = @transform_0, window_bounds = array<i64: 256, 64>}, {pipeline_mode = #tpu.pipeline_mode<synchronous>, transform_indices = @transform_1, window_bounds = array<i64: 512, 64>}, {transform_indices = @transform_2, window_bounds = array<i64: 256, 512>}]} {
    %c0 = arith.constant 0 : index
    %c0_0 = arith.constant 0 : index
    %0 = vector.load %arg1[%c0, %c0_0] : memref<256x64xf32, #tpu.memory_space<vmem>>, vector<256x64xf32>
    %c0_1 = arith.constant 0 : index
    %c0_2 = arith.constant 0 : index
    %1 = vector.load %arg2[%c0_1, %c0_2] : memref<512x64xf32, #tpu.memory_space<vmem>>, vector<512x64xf32>
    %2 = arith.truncf %0 : vector<256x64xf32> to vector<256x64xbf16>
    %3 = arith.truncf %1 : vector<512x64xf32> to vector<512x64xbf16>
    %cst = arith.constant dense<0.000000e+00> : vector<256x512xf32>
    %4 = tpu.matmul %2, %3, %cst {dimension_numbers = #tpu.dot_dimension_numbers<[1], [1], [0], [0], [0, 0, 1, 0], [], []>} : vector<256x64xbf16>, vector<512x64xbf16>, vector<256x512xf32> -> vector<256x512xf32>
    %5 = arith.mulf %0, %0 : vector<256x64xf32>
    %cst_3 = arith.constant dense<0.000000e+00> : vector<256xf32>
    %6 = vector.multi_reduction <add>, %5, %cst_3 [1] : vector<256x64xf32> to vector<256xf32>
    %7 = vector.shape_cast %6 : vector<256xf32> to vector<256x1xf32>
    %cst_4 = arith.constant 1.000000e+00 : f32
    %8 = vector.broadcast %cst_4 : f32 to vector<8x64xf32>
    %9 = arith.mulf %1, %1 : vector<512x64xf32>
    %cst_5 = arith.constant dense<0.000000e+00> : vector<8x512xf32>
    %10 = tpu.matmul %8, %9, %cst_5 {dimension_numbers = #tpu.dot_dimension_numbers<[1], [1], [0], [0], [0, 0, 1, 0], [], []>} : vector<8x64xf32>, vector<512x64xf32>, vector<8x512xf32> -> vector<8x512xf32>
    %11 = vector.extract_strided_slice %10 {offsets = [0, 0], sizes = [1, 512], strides = [1, 1]} : vector<8x512xf32> to vector<1x512xf32>
    %12 = vector.broadcast %7 : vector<256x1xf32> to vector<256x512xf32>
    %13 = vector.broadcast %11 : vector<1x512xf32> to vector<256x512xf32>
    %14 = arith.addf %12, %13 : vector<256x512xf32>
    %cst_6 = arith.constant 2.000000e+00 : f32
    %15 = vector.broadcast %cst_6 : f32 to vector<256x512xf32>
    %16 = arith.mulf %15, %4 : vector<256x512xf32>
    %17 = arith.subf %14, %16 : vector<256x512xf32>
    %cst_7 = arith.constant 0.000000e+00 : f32
    %18 = vector.broadcast %cst_7 : f32 to vector<256x512xf32>
    %19 = arith.maximumf %17, %18 : vector<256x512xf32>
    %cst_8 = arith.constant 0.000000e+00 : f32
    %20 = vector.broadcast %cst_8 : f32 to vector<256x512xf32>
    %21 = arith.subf %20, %19 : vector<256x512xf32>
    %cst_9 = arith.constant dense<0xFF800000> : vector<256xf32>
    %22 = vector.multi_reduction <maximumf>, %21, %cst_9 [1] : vector<256x512xf32> to vector<256xf32>
    %23 = vector.shape_cast %22 : vector<256xf32> to vector<256x1xf32>
    %24 = vector.broadcast %23 : vector<256x1xf32> to vector<256x512xf32>
    %25 = arith.subf %21, %24 : vector<256x512xf32>
    %26 = math.exp %25 : vector<256x512xf32>
    %cst_10 = arith.constant dense<0.000000e+00> : vector<256xf32>
    %27 = vector.multi_reduction <add>, %26, %cst_10 [1] : vector<256x512xf32> to vector<256xf32>
    %28 = vector.shape_cast %27 : vector<256xf32> to vector<256x1xf32>
    %29 = tpu.reciprocal %28 {approx = true} : vector<256x1xf32> -> vector<256x1xf32>
    %30 = vector.broadcast %29 : vector<256x1xf32> to vector<256x512xf32>
    %31 = arith.mulf %26, %30 : vector<256x512xf32>
    %cst_11 = arith.constant 1.000000e-10 : f32
    %32 = vector.broadcast %cst_11 : f32 to vector<256x512xf32>
    %33 = arith.addf %31, %32 : vector<256x512xf32>
    %c0_12 = arith.constant 0 : index
    %c0_13 = arith.constant 0 : index
    %34 = vector.load %arg3[%c0_12, %c0_13] : memref<256x512xf32, #tpu.memory_space<vmem>>, vector<256x512xf32>
    tpu.vector_store %arg3[%c0_12, %c0_13], %33 {strides = array<i32>} : memref<256x512xf32, #tpu.memory_space<vmem>>, vector<256x512xf32>,
    return
  }
  func.func @transform_0(%arg0: i32) -> (i32, i32) {
    %c0_i32 = arith.constant 0 : i32
    %c0_i32_0 = arith.constant 0 : i32
    return %arg0, %c0_i32 : i32, i32
  }
  func.func @transform_1(%arg0: i32) -> (i32, i32) {
    %c0_i32 = arith.constant 0 : i32
    %c0_i32_0 = arith.constant 0 : i32
    %c0_i32_1 = arith.constant 0 : i32
    return %c0_i32, %c0_i32_0 : i32, i32
  }
  func.func @transform_2(%arg0: i32) -> (i32, i32) {
    %c0_i32 = arith.constant 0 : i32
    %c0_i32_0 = arith.constant 0 : i32
    return %arg0, %c0_i32 : i32, i32
  }
}

</mosaic_0001>

<llo_original>
// kernel: gae_forward.7
$region0: #{gae_forward.7}
  #allocation0 [shape = 'u32[]', space=smem, size = 0x4, offset = 0x4, fixed_abs, tag = 'smem constant byte address 0x4 - core index']
  #allocation1 [shape = 'u32[144,128]{1,0:T(1,128)}', space=vmem, size = 0x12000, scoped, tag = 'internal scratch']
  %s0 = inlined_call_operand.vmem [shape: bf16[512,128], index: 0, kind: input, shape index: {}]
  %s1 = inlined_call_operand.vmem [shape: bf16[128,64], index: 1, kind: input, shape index: {}]
  %s2 = inlined_call_operand.vmem [shape: bf16[512,64], index: 2, kind: output, shape index: {}]
  %s3 = sld [smem:[#allocation0]]
  $region41: #{gae_forward.7} parent=0
    _
  %s5 = ssub.s32 1, %s3
  %s6 = scalar_select 0, %s5, %s3
  loop: start=0, step=1, limit=4
  $region2: #{gae_forward.7} parent=0 // loop_pre_header
    _
  $region3: #{gae_forward.7} parent=0 // loop_header
    %s8 = sphi 0, %s12
    %p9 = scmp.ge.s32.totalorder %s8, 4
    %s18 = sphi 0, %s20
    %s21 = sphi 0, %s18
    %s22 = sphi 0, %s21
    %s38 = sphi 0, %s22
    %s42 = sphi 0, %s42
    %s44 = sphi 0, %s42
    %s45 = sphi 0, %s44
    %s59 = sphi 0, %s45
    %s65 = sphi 0, %s67
    %s68 = sphi 0, %s65
    %s69 = sphi 0, %s68
    %s85 = sphi 0, %s69
  $region4: #{gae_forward.7} parent=0 // loop_header_branch
    %11 = sbr.rel (%p9) target = $region8
  $region5: #{gae_forward.7} parent=0 // loop_body
    %s13 = ssub.s32 %s8, 1
    %s14 = ssub.s32 %s8, 2
    %s15 = sadd.s32 %s8, 1
    %s16 = ssub.s32 %s8, %s15
    %p17 = scmp.eq.s32.totalorder %s16, 0
    %s19 = sadd.s32 %s18, 1
    %s20 = scalar_select %p17, %s18, %s19
    %p23 = pneg %p17
    %p24 = scmp.eq.s32.totalorder %s8, 1
    %p25 = por %p23, %p24
    %p26 = scmp.ne.s32.totalorder %s18, %s21
    %p27 = scmp.eq.s32.totalorder %s8, 0
    %p28 = por %p26, %p27
    %p29 = scmp.ne.s32.totalorder %s18, %s21
    %p30 = scmp.eq.s32.totalorder %s13, 1
    %p31 = por %p29, %p30
    %p32 = scmp.ne.s32.totalorder %s21, %s22
    %p33 = scmp.eq.s32.totalorder %s13, 0
    %p34 = por %p32, %p33
    %p35 = scmp.ne.s32.totalorder %s21, %s22
    %p36 = scmp.eq.s32.totalorder %s14, 1
    %p37 = por %p35, %p36
    %p39 = scmp.ne.s32.totalorder %s22, %s38
    %p40 = scmp.eq.s32.totalorder %s14, 0
    %p41 = por %p39, %p40
    %s43 = sadd.s32 %s42, 1
    %p46 = scmp.eq.s32.totalorder %s8, 1
    %p47 = scmp.ne.s32.totalorder %s42, %s44
    %p48 = scmp.eq.s32.totalorder %s8, 0
    %p49 = por %p47, %p48
    %p50 = scmp.ne.s32.totalorder %s42, %s44
    %p51 = scmp.eq.s32.totalorder %s13, 1
    %p52 = por %p50, %p51
    %p53 = scmp.ne.s32.totalorder %s44, %s45
    %p54 = scmp.eq.s32.totalorder %s13, 0
    %p55 = por %p53, %p54
    %p56 = scmp.ne.s32.totalorder %s44, %s45
    %p57 = scmp.eq.s32.totalorder %s14, 1
    %p58 = por %p56, %p57
    %p60 = scmp.ne.s32.totalorder %s45, %s59
    %p61 = scmp.eq.s32.totalorder %s14, 0
    %p62 = por %p60, %p61
    %s63 = ssub.s32 %s8, %s15
    %p64 = scmp.eq.s32.totalorder %s63, 0
    %s66 = sadd.s32 %s65, 1
    %s67 = scalar_select %p64, %s65, %s66
    %p70 = pneg %p64
    %p71 = scmp.eq.s32.totalorder %s8, 1
    %p72 = por %p70, %p71
    %p73 = scmp.ne.s32.totalorder %s65, %s68
    %p74 = scmp.eq.s32.totalorder %s8, 0
    %p75 = por %p73, %p74
    %p76 = scmp.ne.s32.totalorder %s65, %s68
    %p77 = scmp.eq.s32.totalorder %s13, 1
    %p78 = por %p76, %p77
    %p79 = scmp.ne.s32.totalorder %s68, %s69
    %p80 = scmp.eq.s32.totalorder %s13, 0
    %p81 = por %p79, %p80
    %p82 = scmp.ne.s32.totalorder %s68, %s69
    %p83 = scmp.eq.s32.totalorder %s14, 1
    %p84 = por %p82, %p83
    %p86 = scmp.ne.s32.totalorder %s69, %s85
    %p87 = scmp.eq.s32.totalorder %s14, 0
    %p88 = por %p86, %p87
    %p89 = scmp.le.s32.totalorder 1, %s8
    %p90 = scmp.lt.s32.totalorder %s8, 3
    %p91 = pnand %p89, %p90
    %p92 = pneg %p91
    // Predicated region
    $region9: #{gae_forward.7} parent=5 // pred_check
      _
    $region10: #{gae_forward.7} parent=5 // pred_check_branch
      %94 = sbr.rel (%p91) target = $region12
    $region11: #{gae_forward.7} parent=5 // pred_region
      %s95 = ssub.s32 %s8, 1
      // Predicated region
      $region13: #{gae_forward.7} parent=11 // pred_check
        %p96 = pneg %p55
      $region14: #{gae_forward.7} parent=11 // pred_check_branch
        %98 = sbr.rel (%p96) target = $region16
      $region15: #{gae_forward.7} parent=11 // pred_region
        _
      $region16: #{gae_forward.7} parent=11 // pred_fallthru
        _
    $region12: #{gae_forward.7} parent=5 // pred_fallthru
      _
    %p99 = scmp.lt.s32.totalorder %s8, 2
    // Predicated region
    $region17: #{gae_forward.7} parent=5 // pred_check
      %p100 = pneg %p99
    $region18: #{gae_forward.7} parent=5 // pred_check_branch
      %102 = sbr.rel (%p100) target = $region20
    $region19: #{gae_forward.7} parent=5 // pred_region
      // Predicated region
      $region21: #{gae_forward.7} parent=19 // pred_check
        %p103 = pneg %p28
      $region22: #{gae_forward.7} parent=19 // pred_check_branch
        %105 = sbr.rel (%p103) target = $region24
      $region23: #{gae_forward.7} parent=19 // pred_region
        %s106 = smul.u32 32, %s8
        %p107 = scmp.lt.s32.totalorder %s106, 63
        %s108 = scalar_select %p107, %s106, 63
        %s109 = smul.addr %s108, 4
        %s110 = scalar_lea.vmem %s0, %s109
        %s111 = smul.u32 32, %s8
      $region24: #{gae_forward.7} parent=19 // pred_fallthru
        _
    $region20: #{gae_forward.7} parent=5 // pred_fallthru
      _
    %p112 = scmp.le.s32.totalorder 1, %s8
    %p113 = scmp.lt.s32.totalorder %s8, 3
    %p114 = pnand %p112, %p113
    %p115 = pneg %p114
    // Predicated region
    $region25: #{gae_forward.7} parent=5 // pred_check
      _
    $region26: #{gae_forward.7} parent=5 // pred_check_branch
      %117 = sbr.rel (%p114) target = $region28
    $region27: #{gae_forward.7} parent=5 // pred_region
      %s118 = ssub.s32 %s8, 1
      %s119 = smul.u32 32, %s13
      %p120 = scmp.lt.s32.totalorder %s119, 63
      %s121 = scalar_select %p120, %s119, 63
      %s122 = smul.addr %s121, 4
      %s123 = scalar_lea.vmem %s0, %s122
      %p124 = pneg %p34
      %p125 = pneg %p31
      %p126 = pneg %p55
      %p127 = pneg %p52
      %p128 = pneg %p81
      %p129 = pneg %p78
      %s130 = smul.u32 32, %s13
      %p131 = scmp.lt.s32.totalorder %s130, 63
      %s132 = scalar_select %p131, %s130, 63
      %s133 = smul.addr %s132, 4
      %s134 = scalar_lea.vmem %s2, %s133
      %s135 = smul.u32 32, %s13
      %p136 = scmp.lt.s32.totalorder %s135, 63
      %s137 = scalar_select %p136, %s135, 63
      %s138 = smul.addr %s137, 4
      %s139 = scalar_lea.vmem %s0, %s138
      %s140 = smul.u32 32, %s13
      %s141 = smul.u32 32, %s13
      %p142 = scmp.lt.s32.totalorder %s141, 63
      %s143 = scalar_select %p142, %s141, 63
      %s144 = smul.addr %s143, 4
      %s145 = scalar_lea.vmem %s2, %s144
      %s146 = smul.u32 32, %s13
      %v148 = vld [vmem:[%s139] sm:$0xf]
      %v149 = vld [vmem:[%s139 + $0x4] sm:$0xf]
      %v150 = vld [vmem:[%s139 + $0x8] sm:$0xf]
      %v151 = vld [vmem:[%s139 + $0xc] sm:$0xf]
      %v152 = vld [vmem:[%s139 + $0x10] sm:$0xf]
      %v153 = vld [vmem:[%s139 + $0x14] sm:$0xf]
      %v154 = vld [vmem:[%s139 + $0x18] sm:$0xf]
      %v155 = vld [vmem:[%s139 + $0x1c] sm:$0xf]
      %v156 = vld [vmem:[%s139 + $0x20] sm:$0xf]
      %v157 = vld [vmem:[%s139 + $0x24] sm:$0xf]
      %v158 = vld [vmem:[%s139 + $0x28] sm:$0xf]
      %v159 = vld [vmem:[%s139 + $0x2c] sm:$0xf]
      %v160 = vld [vmem:[%s139 + $0x30] sm:$0xf]
      %v161 = vld [vmem:[%s139 + $0x34] sm:$0xf]
      %v162 = vld [vmem:[%s139 + $0x38] sm:$0xf]
      %v163 = vld [vmem:[%s139 + $0x3c] sm:$0xf]
      %v164 = vld [vmem:[%s139 + $0x40] sm:$0xf]
      %v165 = vld [vmem:[%s139 + $0x44] sm:$0xf]
      %v166 = vld [vmem:[%s139 + $0x48] sm:$0xf]
      %v167 = vld [vmem:[%s139 + $0x4c] sm:$0xf]
      %v168 = vld [vmem:[%s139 + $0x50] sm:$0xf]
      %v169 = vld [vmem:[%s139 + $0x54] sm:$0xf]
      %v170 = vld [vmem:[%s139 + $0x58] sm:$0xf]
      %v171 = vld [vmem:[%s139 + $0x5c] sm:$0xf]
      %v172 = vld [vmem:[%s139 + $0x60] sm:$0xf]
      %v173 = vld [vmem:[%s139 + $0x64] sm:$0xf]
      %v174 = vld [vmem:[%s139 + $0x68] sm:$0xf]
      %v175 = vld [vmem:[%s139 + $0x6c] sm:$0xf]
      %v176 = vld [vmem:[%s139 + $0x70] sm:$0xf]
      %v177 = vld [vmem:[%s139 + $0x74] sm:$0xf]
      %v178 = vld [vmem:[%s139 + $0x78] sm:$0xf]
      %v179 = vld [vmem:[%s139 + $0x7c] sm:$0xf]
      %v180 = vld [vmem:[%s1] sm:$0xf]
      %v181 = vld [vmem:[%s1 + $0x4] sm:$0xf]
      %v182 = vld [vmem:[%s1 + $0x8] sm:$0xf]
      %v183 = vld [vmem:[%s1 + $0xc] sm:$0xf]
      %v184 = vld [vmem:[%s1 + $0x10] sm:$0xf]
      %v185 = vld [vmem:[%s1 + $0x14] sm:$0xf]
      %v186 = vld [vmem:[%s1 + $0x18] sm:$0xf]
      %v187 = vld [vmem:[%s1 + $0x1c] sm:$0xf]
      %v188 = vld [vmem:[%s1 + $0x20] sm:$0xf]
      %v189 = vld [vmem:[%s1 + $0x24] sm:$0xf]
      %v190 = vld [vmem:[%s1 + $0x28] sm:$0xf]
      %v191 = vld [vmem:[%s1 + $0x2c] sm:$0xf]
      %v192 = vld [vmem:[%s1 + $0x30] sm:$0xf]
      %v193 = vld [vmem:[%s1 + $0x34] sm:$0xf]
      %v194 = vld [vmem:[%s1 + $0x38] sm:$0xf]
      %v195 = vld [vmem:[%s1 + $0x3c] sm:$0xf]
      %v228 = vunpack.c.l.b16 %v148
      %v229 = vunpack.c.l.b16 %v149
      %v230 = vunpack.c.l.b16 %v150
      %v231 = vunpack.c.l.b16 %v151
      %v232 = vunpack.c.l.b16 %v152
      %v233 = vunpack.c.l.b16 %v153
      %v234 = vunpack.c.l.b16 %v154
      %v235 = vunpack.c.l.b16 %v155
      %v236 = vunpack.c.l.b16 %v156
      %v237 = vunpack.c.l.b16 %v157
      %v238 = vunpack.c.l.b16 %v158
      %v239 = vunpack.c.l.b16 %v159
      %v240 = vunpack.c.l.b16 %v160
      %v241 = vunpack.c.l.b16 %v161
      %v242 = vunpack.c.l.b16 %v162
      %v243 = vunpack.c.l.b16 %v163
      %v244 = vunpack.c.l.b16 %v164
      %v245 = vunpack.c.l.b16 %v165
      %v246 = vunpack.c.l.b16 %v166
      %v247 = vunpack.c.l.b16 %v167
      %v248 = vunpack.c.l.b16 %v168
      %v249 = vunpack.c.l.b16 %v169
      %v250 = vunpack.c.l.b16 %v170
      %v251 = vunpack.c.l.b16 %v171
      %v252 = vunpack.c.l.b16 %v172
      %v253 = vunpack.c.l.b16 %v173
      %v254 = vunpack.c.l.b16 %v174
      %v255 = vunpack.c.l.b16 %v175
      %v256 = vunpack.c.l.b16 %v176
      %v257 = vunpack.c.l.b16 %v177
      %v258 = vunpack.c.l.b16 %v178
      %v259 = vunpack.c.l.b16 %v179
      %v260 = vpack.c.b16 %v229, %v228
      %v261 = vpack.c.b16 %v231, %v230
      %v262 = vpack.c.b16 %v233, %v232
      %v263 = vpack.c.b16 %v235, %v234
      %v264 = vpack.c.b16 %v237, %v236
      %v265 = vpack.c.b16 %v239, %v238
      %v266 = vpack.c.b16 %v241, %v240
      %v267 = vpack.c.b16 %v243, %v242
      %v268 = vpack.c.b16 %v245, %v244
      %v269 = vpack.c.b16 %v247, %v246
      %v270 = vpack.c.b16 %v249, %v248
      %v271 = vpack.c.b16 %v251, %v250
      %v272 = vpack.c.b16 %v253, %v252
      %v273 = vpack.c.b16 %v255, %v254
      %v274 = vpack.c.b16 %v257, %v256
      %v275 = vpack.c.b16 %v259, %v258
      %v308 = vunpack.c.l.b16 %v180
      %v309 = vunpack.c.l.b16 %v181
      %v310 = vunpack.c.l.b16 %v182
      %v311 = vunpack.c.l.b16 %v183
      %v312 = vunpack.c.l.b16 %v184
      %v313 = vunpack.c.l.b16 %v185
      %v314 = vunpack.c.l.b16 %v186
      %v315 = vunpack.c.l.b16 %v187
      %v316 = vunpack.c.l.b16 %v188
      %v317 = vunpack.c.l.b16 %v189
      %v318 = vunpack.c.l.b16 %v190
      %v319 = vunpack.c.l.b16 %v191
      %v320 = vunpack.c.l.b16 %v192
      %v321 = vunpack.c.l.b16 %v193
      %v322 = vunpack.c.l.b16 %v194
      %v323 = vunpack.c.l.b16 %v195
      %v324 = vpack.c.b16 %v309, %v308
      %v325 = vpack.c.b16 %v311, %v310
      %v326 = vpack.c.b16 %v313, %v312
      %v327 = vpack.c.b16 %v315, %v314
      %v328 = vpack.c.b16 %v317, %v316
      %v329 = vpack.c.b16 %v319, %v318
      %v330 = vpack.c.b16 %v321, %v320
      %v331 = vpack.c.b16 %v323, %v322
      %340 = vmatprep.subr.bf16.mxu0 0
      %341 = vmatpush1.bf16.msra.mxu0 %v331
      %342 = vmatprep.subr.bf16.mxu0 0
      %343 = vmatpush1.bf16.msra.mxu0 %v330
      %344 = vmatprep.subr.bf16.mxu0 0
      %345 = vmatpush1.bf16.msra.mxu0 %v329
      %346 = vmatprep.subr.bf16.mxu0 0
      %347 = vmatpush1.bf16.msra.mxu0 %v328
      %348 = vmatprep.subr.bf16.mxu0 0
      %349 = vmatpush1.bf16.msra.mxu0 %v327
      %350 = vmatprep.subr.bf16.mxu0 0
      %351 = vmatpush1.bf16.msra.mxu0 %v326
      %352 = vmatprep.subr.bf16.mxu0 0
      %353 = vmatpush1.bf16.msra.mxu0 %v325
      %354 = vmatprep.subr.bf16.mxu0 0
      %355 = vmatpush1.bf16.msra.mxu0 %v324
      %356 = vmatprep.subr.bf16.mxu0 0
      %357 = vmatpush2.bf16.msra.mxu0 0
      %358 = vmatprep.subr.bf16.mxu0 0
      %359 = vmatpush2.bf16.msra.mxu0 0
      %360 = vmatprep.subr.bf16.mxu0 0
      %361 = vmatpush2.bf16.msra.mxu0 0
      %362 = vmatprep.subr.bf16.mxu0 0
      %363 = vmatpush2.bf16.msra.mxu0 0
      %364 = vmatprep.subr.bf16.mxu0 0
      %365 = vmatpush2.bf16.msra.mxu0 0
      %366 = vmatprep.subr.bf16.mxu0 0
      %367 = vmatpush2.bf16.msra.mxu0 0
      %368 = vmatprep.subr.bf16.mxu0 0
      %369 = vmatpush2.bf16.msra.mxu0 0
      %370 = vmatprep.subr.bf16.mxu0 0
      %371 = vmatpush2.bf16.msra.mxu0 0
      %372 = vmatprep.mubr.bf16.mxu0 0
      %373 = vmatmul.mubr.bf16.gmra.mxu0 %v260
      %v374 = vpop.f32.mrf.mxu0
      %v375 = vadd.f32 0.0, %v374
      %v376 = vpop.f32.mrf.mxu0
      %v377 = vpop.f32.mrf.mxu0
      %v378 = vadd.f32 0.0, %v377
      %v379 = vpop.f32.mrf.mxu0
      %380 = vmatprep.mubr.bf16.mxu0 0
      %381 = vmatmul.mubr.bf16.gmra.mxu0 %v261
      %v382 = vpop.f32.mrf.mxu0
      %v383 = vadd.f32 0.0, %v382
      %v384 = vpop.f32.mrf.mxu0
      %v385 = vpop.f32.mrf.mxu0
      %v386 = vadd.f32 0.0, %v385
      %v387 = vpop.f32.mrf.mxu0
      %388 = vmatprep.mubr.bf16.mxu0 0
      %389 = vmatmul.mubr.bf16.gmra.mxu0 %v262
      %v390 = vpop.f32.mrf.mxu0
      %v391 = vadd.f32 0.0, %v390
      %v392 = vpop.f32.mrf.mxu0
      %v393 = vpop.f32.mrf.mxu0
      %v394 = vadd.f32 0.0, %v393
      %v395 = vpop.f32.mrf.mxu0
      %396 = vmatprep.mubr.bf16.mxu0 0
      %397 = vmatmul.mubr.bf16.gmra.mxu0 %v263
      %v398 = vpop.f32.mrf.mxu0
      %v399 = vadd.f32 0.0, %v398
      %v400 = vpop.f32.mrf.mxu0
      %v401 = vpop.f32.mrf.mxu0
      %v402 = vadd.f32 0.0, %v401
      %v403 = vpop.f32.mrf.mxu0
      %404 = vmatprep.mubr.bf16.mxu0 0
      %405 = vmatmul.mubr.bf16.gmra.mxu0 %v264
      %v406 = vpop.f32.mrf.mxu0
      %v407 = vadd.f32 0.0, %v406
      %v408 = vpop.f32.mrf.mxu0
      %v409 = vpop.f32.mrf.mxu0
      %v410 = vadd.f32 0.0, %v409
      %v411 = vpop.f32.mrf.mxu0
      %412 = vmatprep.mubr.bf16.mxu0 0
      %413 = vmatmul.mubr.bf16.gmra.mxu0 %v265
      %v414 = vpop.f32.mrf.mxu0
      %v415 = vadd.f32 0.0, %v414
      %v416 = vpop.f32.mrf.mxu0
      %v417 = vpop.f32.mrf.mxu0
      %v418 = vadd.f32 0.0, %v417
      %v419 = vpop.f32.mrf.mxu0
      %420 = vmatprep.mubr.bf16.mxu0 0
      %421 = vmatmul.mubr.bf16.gmra.mxu0 %v266
      %v422 = vpop.f32.mrf.mxu0
      %v423 = vadd.f32 0.0, %v422
      %v424 = vpop.f32.mrf.mxu0
      %v425 = vpop.f32.mrf.mxu0
      %v426 = vadd.f32 0.0, %v425
      %v427 = vpop.f32.mrf.mxu0
      %428 = vmatprep.mubr.bf16.mxu0 0
      %429 = vmatmul.mubr.bf16.gmra.mxu0 %v267
      %v430 = vpop.f32.mrf.mxu0
      %v431 = vadd.f32 0.0, %v430
      %v432 = vpop.f32.mrf.mxu0
      %v433 = vpop.f32.mrf.mxu0
      %v434 = vadd.f32 0.0, %v433
      %v435 = vpop.f32.mrf.mxu0
      %436 = vmatprep.mubr.bf16.mxu0 0
      %437 = vmatmul.mubr.bf16.gmra.mxu0 %v268
      %v438 = vpop.f32.mrf.mxu0
      %v439 = vadd.f32 0.0, %v438
      %v440 = vpop.f32.mrf.mxu0
      %v441 = vpop.f32.mrf.mxu0
      %v442 = vadd.f32 0.0, %v441
      %v443 = vpop.f32.mrf.mxu0
      %444 = vmatprep.mubr.bf16.mxu0 0
      %445 = vmatmul.mubr.bf16.gmra.mxu0 %v269
      %v446 = vpop.f32.mrf.mxu0
      %v447 = vadd.f32 0.0, %v446
      %v448 = vpop.f32.mrf.mxu0
      %v449 = vpop.f32.mrf.mxu0
      %v450 = vadd.f32 0.0, %v449
      %v451 = vpop.f32.mrf.mxu0
      %452 = vmatprep.mubr.bf16.mxu0 0
      %453 = vmatmul.mubr.bf16.gmra.mxu0 %v270
      %v454 = vpop.f32.mrf.mxu0
      %v455 = vadd.f32 0.0, %v454
      %v456 = vpop.f32.mrf.mxu0
      %v457 = vpop.f32.mrf.mxu0
      %v458 = vadd.f32 0.0, %v457
      %v459 = vpop.f32.mrf.mxu0
      %460 = vmatprep.mubr.bf16.mxu0 0
      %461 = vmatmul.mubr.bf16.gmra.mxu0 %v271
      %v462 = vpop.f32.mrf.mxu0
      %v463 = vadd.f32 0.0, %v462
      %v464 = vpop.f32.mrf.mxu0
      %v465 = vpop.f32.mrf.mxu0
      %v466 = vadd.f32 0.0, %v465
      %v467 = vpop.f32.mrf.mxu0
      %468 = vmatprep.mubr.bf16.mxu0 0
      %469 = vmatmul.mubr.bf16.gmra.mxu0 %v272
      %v470 = vpop.f32.mrf.mxu0
      %v471 = vadd.f32 0.0, %v470
      %v472 = vpop.f32.mrf.mxu0
      %v473 = vpop.f32.mrf.mxu0
      %v474 = vadd.f32 0.0, %v473
      %v475 = vpop.f32.mrf.mxu0
      %476 = vmatprep.mubr.bf16.mxu0 0
      %477 = vmatmul.mubr.bf16.gmra.mxu0 %v273
      %v478 = vpop.f32.mrf.mxu0
      %v479 = vadd.f32 0.0, %v478
      %v480 = vpop.f32.mrf.mxu0
      %v481 = vpop.f32.mrf.mxu0
      %v482 = vadd.f32 0.0, %v481
      %v483 = vpop.f32.mrf.mxu0
      %484 = vmatprep.mubr.bf16.mxu0 0
      %485 = vmatmul.mubr.bf16.gmra.mxu0 %v274
      %v486 = vpop.f32.mrf.mxu0
      %v487 = vadd.f32 0.0, %v486
      %v488 = vpop.f32.mrf.mxu0
      %v489 = vpop.f32.mrf.mxu0
      %v490 = vadd.f32 0.0, %v489
      %v491 = vpop.f32.mrf.mxu0
      %492 = vmatprep.mubr.bf16.mxu0 0
      %493 = vmatmul.mubr.bf16.gmra.mxu0 %v275
      %v494 = vpop.f32.mrf.mxu0
      %v495 = vadd.f32 0.0, %v494
      %v496 = vpop.f32.mrf.mxu0
      %v497 = vpop.f32.mrf.mxu0
      %v498 = vadd.f32 0.0, %v497
      %v499 = vpop.f32.mrf.mxu0
      %500 = vdwg.mxu0
      %v501 = vpack.c.bf16 %v378, %v375
      %v502 = vpack.c.bf16 %v386, %v383
      %v503 = vpack.c.bf16 %v394, %v391
      %v504 = vpack.c.bf16 %v402, %v399
      %v505 = vpack.c.bf16 %v410, %v407
      %v506 = vpack.c.bf16 %v418, %v415
      %v507 = vpack.c.bf16 %v426, %v423
      %v508 = vpack.c.bf16 %v434, %v431
      %v509 = vpack.c.bf16 %v442, %v439
      %v510 = vpack.c.bf16 %v450, %v447
      %v511 = vpack.c.bf16 %v458, %v455
      %v512 = vpack.c.bf16 %v466, %v463
      %v513 = vpack.c.bf16 %v474, %v471
      %v514 = vpack.c.bf16 %v482, %v479
      %v515 = vpack.c.bf16 %v490, %v487
      %v516 = vpack.c.bf16 %v498, %v495
      %v533 = vunpack.c.l.b16 %v501
      %v534 = vunpack.c.h.b16 %v501
      %v535 = vunpack.c.l.b16 %v502
      %v536 = vunpack.c.h.b16 %v502
      %v537 = vunpack.c.l.b16 %v503
      %v538 = vunpack.c.h.b16 %v503
      %v539 = vunpack.c.l.b16 %v504
      %v540 = vunpack.c.h.b16 %v504
      %v541 = vunpack.c.l.b16 %v505
      %v542 = vunpack.c.h.b16 %v505
      %v543 = vunpack.c.l.b16 %v506
      %v544 = vunpack.c.h.b16 %v506
      %v545 = vunpack.c.l.b16 %v507
      %v546 = vunpack.c.h.b16 %v507
      %v547 = vunpack.c.l.b16 %v508
      %v548 = vunpack.c.h.b16 %v508
      %v549 = vunpack.c.l.b16 %v509
      %v550 = vunpack.c.h.b16 %v509
      %v551 = vunpack.c.l.b16 %v510
      %v552 = vunpack.c.h.b16 %v510
      %v553 = vunpack.c.l.b16 %v511
      %v554 = vunpack.c.h.b16 %v511
      %v555 = vunpack.c.l.b16 %v512
      %v556 = vunpack.c.h.b16 %v512
      %v557 = vunpack.c.l.b16 %v513
      %v558 = vunpack.c.h.b16 %v513
      %v559 = vunpack.c.l.b16 %v514
      %v560 = vunpack.c.h.b16 %v514
      %v561 = vunpack.c.l.b16 %v515
      %v562 = vunpack.c.h.b16 %v515
      %v563 = vunpack.c.l.b16 %v516
      %v564 = vunpack.c.h.b16 %v516
      %v565 = vpack.c.b16 %v533, %v533
      %v566 = vpack.c.b16 %v534, %v534
      %v567 = vpack.c.b16 %v535, %v535
      %v568 = vpack.c.b16 %v536, %v536
      %v569 = vpack.c.b16 %v537, %v537
      %v570 = vpack.c.b16 %v538, %v538
      %v571 = vpack.c.b16 %v539, %v539
      %v572 = vpack.c.b16 %v540, %v540
      %v573 = vpack.c.b16 %v541, %v541
      %v574 = vpack.c.b16 %v542, %v542
      %v575 = vpack.c.b16 %v543, %v543
      %v576 = vpack.c.b16 %v544, %v544
      %v577 = vpack.c.b16 %v545, %v545
      %v578 = vpack.c.b16 %v546, %v546
      %v579 = vpack.c.b16 %v547, %v547
      %v580 = vpack.c.b16 %v548, %v548
      %v581 = vpack.c.b16 %v549, %v549
      %v582 = vpack.c.b16 %v550, %v550
      %v583 = vpack.c.b16 %v551, %v551
      %v584 = vpack.c.b16 %v552, %v552
      %v585 = vpack.c.b16 %v553, %v553
      %v586 = vpack.c.b16 %v554, %v554
      %v587 = vpack.c.b16 %v555, %v555
      %v588 = vpack.c.b16 %v556, %v556
      %v589 = vpack.c.b16 %v557, %v557
      %v590 = vpack.c.b16 %v558, %v558
      %v591 = vpack.c.b16 %v559, %v559
      %v592 = vpack.c.b16 %v560, %v560
      %v593 = vpack.c.b16 %v561, %v561
      %v594 = vpack.c.b16 %v562, %v562
      %v595 = vpack.c.b16 %v563, %v563
      %v596 = vpack.c.b16 %v564, %v564
      %vm629 = vcmask 519168
      %630 = vst.msk [vmem:[%s145] sm:$0xf] %vm629, %v565
      %631 = vst.msk [vmem:[%s145 + $0x4] sm:$0xf] %vm629, %v566
      %632 = vst.msk [vmem:[%s145 + $0x8] sm:$0xf] %vm629, %v567
      %633 = vst.msk [vmem:[%s145 + $0xc] sm:$0xf] %vm629, %v568
      %634 = vst.msk [vmem:[%s145 + $0x10] sm:$0xf] %vm629, %v569
      %635 = vst.msk [vmem:[%s145 + $0x14] sm:$0xf] %vm629, %v570
      %636 = vst.msk [vmem:[%s145 + $0x18] sm:$0xf] %vm629, %v571
      %637 = vst.msk [vmem:[%s145 + $0x1c] sm:$0xf] %vm629, %v572
      %638 = vst.msk [vmem:[%s145 + $0x20] sm:$0xf] %vm629, %v573
      %639 = vst.msk [vmem:[%s145 + $0x24] sm:$0xf] %vm629, %v574
      %640 = vst.msk [vmem:[%s145 + $0x28] sm:$0xf] %vm629, %v575
      %641 = vst.msk [vmem:[%s145 + $0x2c] sm:$0xf] %vm629, %v576
      %642 = vst.msk [vmem:[%s145 + $0x30] sm:$0xf] %vm629, %v577
      %643 = vst.msk [vmem:[%s145 + $0x34] sm:$0xf] %vm629, %v578
      %644 = vst.msk [vmem:[%s145 + $0x38] sm:$0xf] %vm629, %v579
      %645 = vst.msk [vmem:[%s145 + $0x3c] sm:$0xf] %vm629, %v580
      %646 = vst.msk [vmem:[%s145 + $0x40] sm:$0xf] %vm629, %v581
      %647 = vst.msk [vmem:[%s145 + $0x44] sm:$0xf] %vm629, %v582
      %648 = vst.msk [vmem:[%s145 + $0x48] sm:$0xf] %vm629, %v583
      %649 = vst.msk [vmem:[%s145 + $0x4c] sm:$0xf] %vm629, %v584
      %650 = vst.msk [vmem:[%s145 + $0x50] sm:$0xf] %vm629, %v585
      %651 = vst.msk [vmem:[%s145 + $0x54] sm:$0xf] %vm629, %v586
      %652 = vst.msk [vmem:[%s145 + $0x58] sm:$0xf] %vm629, %v587
      %653 = vst.msk [vmem:[%s145 + $0x5c] sm:$0xf] %vm629, %v588
      %654 = vst.msk [vmem:[%s145 + $0x60] sm:$0xf] %vm629, %v589
      %655 = vst.msk [vmem:[%s145 + $0x64] sm:$0xf] %vm629, %v590
      %656 = vst.msk [vmem:[%s145 + $0x68] sm:$0xf] %vm629, %v591
      %657 = vst.msk [vmem:[%s145 + $0x6c] sm:$0xf] %vm629, %v592
      %658 = vst.msk [vmem:[%s145 + $0x70] sm:$0xf] %vm629, %v593
      %659 = vst.msk [vmem:[%s145 + $0x74] sm:$0xf] %vm629, %v594
      %660 = vst.msk [vmem:[%s145 + $0x78] sm:$0xf] %vm629, %v595
      %661 = vst.msk [vmem:[%s145 + $0x7c] sm:$0xf] %vm629, %v596
      %s662 = smul.u32 32, %s13
      %p663 = scmp.lt.s32.totalorder %s662, 63
      %s664 = scalar_select %p663, %s662, 63
      %s665 = smul.addr %s664, 4
      %s666 = scalar_lea.vmem %s2, %s665
      // Predicated region
      $region29: #{gae_forward.7} parent=27 // pred_check
        %p667 = pneg %p78
      $region30: #{gae_forward.7} parent=27 // pred_check_branch
        %669 = sbr.rel (%p667) target = $region32
      $region31: #{gae_forward.7} parent=27 // pred_region
        %s670 = smul.u32 32, %s13
      $region32: #{gae_forward.7} parent=27 // pred_fallthru
        _
    $region28: #{gae_forward.7} parent=5 // pred_fallthru
      _
    %p671 = scmp.le.s32.totalorder 2, %s8
    // Predicated region
    $region33: #{gae_forward.7} parent=5 // pred_check
      %p672 = pneg %p671
    $region34: #{gae_forward.7} parent=5 // pred_check_branch
      %674 = sbr.rel (%p672) target = $region36
    $region35: #{gae_forward.7} parent=5 // pred_region
      %s675 = ssub.s32 %s8, 2
      // Predicated region
      $region37: #{gae_forward.7} parent=35 // pred_check
        %p676 = pneg %p84
      $region38: #{gae_forward.7} parent=35 // pred_check_branch
        %678 = sbr.rel (%p676) target = $region40
      $region39: #{gae_forward.7} parent=35 // pred_region
        %s679 = smul.u32 32, %s14
        %p680 = scmp.lt.s32.totalorder %s679, 63
        %s681 = scalar_select %p680, %s679, 63
        %s682 = smul.addr %s681, 4
        %s683 = scalar_lea.vmem %s2, %s682
      $region40: #{gae_forward.7} parent=35 // pred_fallthru
        _
    $region36: #{gae_forward.7} parent=5 // pred_fallthru
      _
  $region6: #{gae_forward.7} parent=0 // loop_footer
    %s12 = sadd.s32 1, %s8
  $region7: #{gae_forward.7} parent=0 // loop_footer_branch
    %7 = sbr.rel target = $region3
  $region8: #{gae_forward.7} parent=0 // loop_exit
    _

// kernel: gae_forward.5
$region0: #{gae_forward.5}
  #allocation0 [shape = 'u32[]', space=smem, size = 0x4, offset = 0x4, fixed_abs, tag = 'smem constant byte address 0x4 - core index']
  #allocation1 [shape = 'u32[144,128]{1,0:T(1,128)}', space=vmem, size = 0x12000, scoped, tag = 'internal scratch']
  %s0 = inlined_call_operand.vmem [shape: bf16[512,256], index: 0, kind: input, shape index: {}]
  %s1 = inlined_call_operand.vmem [shape: bf16[256,128], index: 1, kind: input, shape index: {}]
  %s2 = inlined_call_operand.vmem [shape: bf16[512,128], index: 2, kind: output, shape index: {}]
  %s3 = sld [smem:[#allocation0]]
  $region41: #{gae_forward.5} parent=0
    _
  %s5 = ssub.s32 1, %s3
  %s6 = scalar_select 0, %s5, %s3
  loop: start=0, step=1, limit=4
  $region2: #{gae_forward.5} parent=0 // loop_pre_header
    _
  $region3: #{gae_forward.5} parent=0 // loop_header
    %s8 = sphi 0, %s12
    %p9 = scmp.ge.s32.totalorder %s8, 4
    %s18 = sphi 0, %s20
    %s21 = sphi 0, %s18
    %s22 = sphi 0, %s21
    %s38 = sphi 0, %s22
    %s42 = sphi 0, %s42
    %s44 = sphi 0, %s42
    %s45 = sphi 0, %s44
    %s59 = sphi 0, %s45
    %s65 = sphi 0, %s67
    %s68 = sphi 0, %s65
    %s69 = sphi 0, %s68
    %s85 = sphi 0, %s69
  $region4: #{gae_forward.5} parent=0 // loop_header_branch
    %11 = sbr.rel (%p9) target = $region8
  $region5: #{gae_forward.5} parent=0 // loop_body
    %s13 = ssub.s32 %s8, 1
    %s14 = ssub.s32 %s8, 2
    %s15 = sadd.s32 %s8, 1
    %s16 = ssub.s32 %s8, %s15
    %p17 = scmp.eq.s32.totalorder %s16, 0
    %s19 = sadd.s32 %s18, 1
    %s20 = scalar_select %p17, %s18, %s19
    %p23 = pneg %p17
    %p24 = scmp.eq.s32.totalorder %s8, 1
    %p25 = por %p23, %p24
    %p26 = scmp.ne.s32.totalorder %s18, %s21
    %p27 = scmp.eq.s32.totalorder %s8, 0
    %p28 = por %p26, %p27
    %p29 = scmp.ne.s32.totalorder %s18, %s21
    %p30 = scmp.eq.s32.totalorder %s13, 1
    %p31 = por %p29, %p30
    %p32 = scmp.ne.s32.totalorder %s21, %s22
    %p33 = scmp.eq.s32.totalorder %s13, 0
    %p34 = por %p32, %p33
    %p35 = scmp.ne.s32.totalorder %s21, %s22
    %p36 = scmp.eq.s32.totalorder %s14, 1
    %p37 = por %p35, %p36
    %p39 = scmp.ne.s32.totalorder %s22, %s38
    %p40 = scmp.eq.s32.totalorder %s14, 0
    %p41 = por %p39, %p40
    %s43 = sadd.s32 %s42, 1
    %p46 = scmp.eq.s32.totalorder %s8, 1
    %p47 = scmp.ne.s32.totalorder %s42, %s44
    %p48 = scmp.eq.s32.totalorder %s8, 0
    %p49 = por %p47, %p48
    %p50 = scmp.ne.s32.totalorder %s42, %s44
    %p51 = scmp.eq.s32.totalorder %s13, 1
    %p52 = por %p50, %p51
    %p53 = scmp.ne.s32.totalorder %s44, %s45
    %p54 = scmp.eq.s32.totalorder %s13, 0
    %p55 = por %p53, %p54
    %p56 = scmp.ne.s32.totalorder %s44, %s45
    %p57 = scmp.eq.s32.totalorder %s14, 1
    %p58 = por %p56, %p57
    %p60 = scmp.ne.s32.totalorder %s45, %s59
    %p61 = scmp.eq.s32.totalorder %s14, 0
    %p62 = por %p60, %p61
    %s63 = ssub.s32 %s8, %s15
    %p64 = scmp.eq.s32.totalorder %s63, 0
    %s66 = sadd.s32 %s65, 1
    %s67 = scalar_select %p64, %s65, %s66
    %p70 = pneg %p64
    %p71 = scmp.eq.s32.totalorder %s8, 1
    %p72 = por %p70, %p71
    %p73 = scmp.ne.s32.totalorder %s65, %s68
    %p74 = scmp.eq.s32.totalorder %s8, 0
    %p75 = por %p73, %p74
    %p76 = scmp.ne.s32.totalorder %s65, %s68
    %p77 = scmp.eq.s32.totalorder %s13, 1
    %p78 = por %p76, %p77
    %p79 = scmp.ne.s32.totalorder %s68, %s69
    %p80 = scmp.eq.s32.totalorder %s13, 0
    %p81 = por %p79, %p80
    %p82 = scmp.ne.s32.totalorder %s68, %s69
    %p83 = scmp.eq.s32.totalorder %s14, 1
    %p84 = por %p82, %p83
    %p86 = scmp.ne.s32.totalorder %s69, %s85
    %p87 = scmp.eq.s32.totalorder %s14, 0
    %p88 = por %p86, %p87
    %p89 = scmp.le.s32.totalorder 1, %s8
    %p90 = scmp.lt.s32.totalorder %s8, 3
    %p91 = pnand %p89, %p90
    %p92 = pneg %p91
    // Predicated region
    $region9: #{gae_forward.5} parent=5 // pred_check
      _
    $region10: #{gae_forward.5} parent=5 // pred_check_branch
      %94 = sbr.rel (%p91) target = $region12
    $region11: #{gae_forward.5} parent=5 // pred_region
      %s95 = ssub.s32 %s8, 1
      // Predicated region
      $region13: #{gae_forward.5} parent=11 // pred_check
        %p96 = pneg %p55
      $region14: #{gae_forward.5} parent=11 // pred_check_branch
        %98 = sbr.rel (%p96) target = $region16
      $region15: #{gae_forward.5} parent=11 // pred_region
        _
      $region16: #{gae_forward.5} parent=11 // pred_fallthru
        _
    $region12: #{gae_forward.5} parent=5 // pred_fallthru
      _
    %p99 = scmp.lt.s32.totalorder %s8, 2
    // Predicated region
    $region17: #{gae_forward.5} parent=5 // pred_check
      %p100 = pneg %p99
    $region18: #{gae_forward.5} parent=5 // pred_check_branch
      %102 = sbr.rel (%p100) target = $region20
    $region19: #{gae_forward.5} parent=5 // pred_region
      // Predicated region
      $region21: #{gae_forward.5} parent=19 // pred_check
        %p103 = pneg %p28
      $region22: #{gae_forward.5} parent=19 // pred_check_branch
        %105 = sbr.rel (%p103) target = $region24
      $region23: #{gae_forward.5} parent=19 // pred_region
        %s106 = smul.u32 32, %s8
        %p107 = scmp.lt.s32.totalorder %s106, 63
        %s108 = scalar_select %p107, %s106, 63
        %s109 = smul.addr %s108, 2
        %s110 = smul.addr %s109, 4
        %s111 = scalar_lea.vmem %s0, %s110
        %s112 = smul.u32 32, %s8
      $region24: #{gae_forward.5} parent=19 // pred_fallthru
        _
    $region20: #{gae_forward.5} parent=5 // pred_fallthru
      _
    %p113 = scmp.le.s32.totalorder 1, %s8
    %p114 = scmp.lt.s32.totalorder %s8, 3
    %p115 = pnand %p113, %p114
    %p116 = pneg %p115
    // Predicated region
    $region25: #{gae_forward.5} parent=5 // pred_check
      _
    $region26: #{gae_forward.5} parent=5 // pred_check_branch
      %118 = sbr.rel (%p115) target = $region28
    $region27: #{gae_forward.5} parent=5 // pred_region
      %s119 = ssub.s32 %s8, 1
      %s120 = smul.u32 32, %s13
      %p121 = scmp.lt.s32.totalorder %s120, 63
      %s122 = scalar_select %p121, %s120, 63
      %s123 = smul.addr %s122, 2
      %s124 = smul.addr %s123, 4
      %s125 = scalar_lea.vmem %s0, %s124
      %p126 = pneg %p34
      %p127 = pneg %p31
      %p128 = pneg %p55
      %p129 = pneg %p52
      %p130 = pneg %p81
      %p131 = pneg %p78
      %s132 = smul.u32 32, %s13
      %p133 = scmp.lt.s32.totalorder %s132, 63
      %s134 = scalar_select %p133, %s132, 63
      %s135 = smul.addr %s134, 4
      %s136 = scalar_lea.vmem %s2, %s135
      %s137 = smul.u32 32, %s13
      %p138 = scmp.lt.s32.totalorder %s137, 63
      %s139 = scalar_select %p138, %s137, 63
      %s140 = smul.addr %s139, 2
      %s141 = smul.addr %s140, 4
      %s142 = scalar_lea.vmem %s0, %s141
      %s143 = smul.u32 32, %s13
      %s144 = smul.u32 32, %s13
      %p145 = scmp.lt.s32.totalorder %s144, 63
      %s146 = scalar_select %p145, %s144, 63
      %s147 = smul.addr %s146, 4
      %s148 = scalar_lea.vmem %s2, %s147
      %s149 = smul.u32 32, %s13
      %v151 = vld [vmem:[%s142] sm:$0xff]
      %v152 = vld [vmem:[%s142 + $0x8] sm:$0xff]
      %v153 = vld [vmem:[%s142 + $0x10] sm:$0xff]
      %v154 = vld [vmem:[%s142 + $0x18] sm:$0xff]
      %v155 = vld [vmem:[%s142 + $0x20] sm:$0xff]
      %v156 = vld [vmem:[%s142 + $0x28] sm:$0xff]
      %v157 = vld [vmem:[%s142 + $0x30] sm:$0xff]
      %v158 = vld [vmem:[%s142 + $0x38] sm:$0xff]
      %v159 = vld [vmem:[%s142 + $0x40] sm:$0xff]
      %v160 = vld [vmem:[%s142 + $0x48] sm:$0xff]
      %v161 = vld [vmem:[%s142 + $0x50] sm:$0xff]
      %v162 = vld [vmem:[%s142 + $0x58] sm:$0xff]
      %v163 = vld [vmem:[%s142 + $0x60] sm:$0xff]
      %v164 = vld [vmem:[%s142 + $0x68] sm:$0xff]
      %v165 = vld [vmem:[%s142 + $0x70] sm:$0xff]
      %v166 = vld [vmem:[%s142 + $0x78] sm:$0xff]
      %v167 = vld [vmem:[%s142 + $0x80] sm:$0xff]
      %v168 = vld [vmem:[%s142 + $0x88] sm:$0xff]
      %v169 = vld [vmem:[%s142 + $0x90] sm:$0xff]
      %v170 = vld [vmem:[%s142 + $0x98] sm:$0xff]
      %v171 = vld [vmem:[%s142 + $0xa0] sm:$0xff]
      %v172 = vld [vmem:[%s142 + $0xa8] sm:$0xff]
      %v173 = vld [vmem:[%s142 + $0xb0] sm:$0xff]
      %v174 = vld [vmem:[%s142 + $0xb8] sm:$0xff]
      %v175 = vld [vmem:[%s142 + $0xc0] sm:$0xff]
      %v176 = vld [vmem:[%s142 + $0xc8] sm:$0xff]
      %v177 = vld [vmem:[%s142 + $0xd0] sm:$0xff]
      %v178 = vld [vmem:[%s142 + $0xd8] sm:$0xff]
      %v179 = vld [vmem:[%s142 + $0xe0] sm:$0xff]
      %v180 = vld [vmem:[%s142 + $0xe8] sm:$0xff]
      %v181 = vld [vmem:[%s142 + $0xf0] sm:$0xff]
      %v182 = vld [vmem:[%s142 + $0xf8] sm:$0xff]
      %v183 = vld [vmem:[%s1] sm:$0xf]
      %v184 = vld [vmem:[%s1 + $0x4] sm:$0xf]
      %v185 = vld [vmem:[%s1 + $0x8] sm:$0xf]
      %v186 = vld [vmem:[%s1 + $0xc] sm:$0xf]
      %v187 = vld [vmem:[%s1 + $0x10] sm:$0xf]
      %v188 = vld [vmem:[%s1 + $0x14] sm:$0xf]
      %v189 = vld [vmem:[%s1 + $0x18] sm:$0xf]
      %v190 = vld [vmem:[%s1 + $0x1c] sm:$0xf]
      %v191 = vld [vmem:[%s1 + $0x20] sm:$0xf]
      %v192 = vld [vmem:[%s1 + $0x24] sm:$0xf]
      %v193 = vld [vmem:[%s1 + $0x28] sm:$0xf]
      %v194 = vld [vmem:[%s1 + $0x2c] sm:$0xf]
      %v195 = vld [vmem:[%s1 + $0x30] sm:$0xf]
      %v196 = vld [vmem:[%s1 + $0x34] sm:$0xf]
      %v197 = vld [vmem:[%s1 + $0x38] sm:$0xf]
      %v198 = vld [vmem:[%s1 + $0x3c] sm:$0xf]
      %v199 = vld [vmem:[%s1 + $0x40] sm:$0xf]
      %v200 = vld [vmem:[%s1 + $0x44] sm:$0xf]
      %v201 = vld [vmem:[%s1 + $0x48] sm:$0xf]
      %v202 = vld [vmem:[%s1 + $0x4c] sm:$0xf]
      %v203 = vld [vmem:[%s1 + $0x50] sm:$0xf]
      %v204 = vld [vmem:[%s1 + $0x54] sm:$0xf]
      %v205 = vld [vmem:[%s1 + $0x58] sm:$0xf]
      %v206 = vld [vmem:[%s1 + $0x5c] sm:$0xf]
      %v207 = vld [vmem:[%s1 + $0x60] sm:$0xf]
      %v208 = vld [vmem:[%s1 + $0x64] sm:$0xf]
      %v209 = vld [vmem:[%s1 + $0x68] sm:$0xf]
      %v210 = vld [vmem:[%s1 + $0x6c] sm:$0xf]
      %v211 = vld [vmem:[%s1 + $0x70] sm:$0xf]
      %v212 = vld [vmem:[%s1 + $0x74] sm:$0xf]
      %v213 = vld [vmem:[%s1 + $0x78] sm:$0xf]
      %v214 = vld [vmem:[%s1 + $0x7c] sm:$0xf]
      %v247 = vunpack.c.l.b16 %v151
      %v248 = vunpack.c.h.b16 %v151
      %v249 = vunpack.c.l.b16 %v152
      %v250 = vunpack.c.h.b16 %v152
      %v251 = vunpack.c.l.b16 %v153
      %v252 = vunpack.c.h.b16 %v153
      %v253 = vunpack.c.l.b16 %v154
      %v254 = vunpack.c.h.b16 %v154
      %v255 = vunpack.c.l.b16 %v155
      %v256 = vunpack.c.h.b16 %v155
      %v257 = vunpack.c.l.b16 %v156
      %v258 = vunpack.c.h.b16 %v156
      %v259 = vunpack.c.l.b16 %v157
      %v260 = vunpack.c.h.b16 %v157
      %v261 = vunpack.c.l.b16 %v158
      %v262 = vunpack.c.h.b16 %v158
      %v263 = vunpack.c.l.b16 %v159
      %v264 = vunpack.c.h.b16 %v159
      %v265 = vunpack.c.l.b16 %v160
      %v266 = vunpack.c.h.b16 %v160
      %v267 = vunpack.c.l.b16 %v161
      %v268 = vunpack.c.h.b16 %v161
      %v269 = vunpack.c.l.b16 %v162
      %v270 = vunpack.c.h.b16 %v162
      %v271 = vunpack.c.l.b16 %v163
      %v272 = vunpack.c.h.b16 %v163
      %v273 = vunpack.c.l.b16 %v164
      %v274 = vunpack.c.h.b16 %v164
      %v275 = vunpack.c.l.b16 %v165
      %v276 = vunpack.c.h.b16 %v165
      %v277 = vunpack.c.l.b16 %v166
      %v278 = vunpack.c.h.b16 %v166
      %v279 = vunpack.c.l.b16 %v167
      %v280 = vunpack.c.h.b16 %v167
      %v281 = vunpack.c.l.b16 %v168
      %v282 = vunpack.c.h.b16 %v168
      %v283 = vunpack.c.l.b16 %v169
      %v284 = vunpack.c.h.b16 %v169
      %v285 = vunpack.c.l.b16 %v170
      %v286 = vunpack.c.h.b16 %v170
      %v287 = vunpack.c.l.b16 %v171
      %v288 = vunpack.c.h.b16 %v171
      %v289 = vunpack.c.l.b16 %v172
      %v290 = vunpack.c.h.b16 %v172
      %v291 = vunpack.c.l.b16 %v173
      %v292 = vunpack.c.h.b16 %v173
      %v293 = vunpack.c.l.b16 %v174
      %v294 = vunpack.c.h.b16 %v174
      %v295 = vunpack.c.l.b16 %v175
      %v296 = vunpack.c.h.b16 %v175
      %v297 = vunpack.c.l.b16 %v176
      %v298 = vunpack.c.h.b16 %v176
      %v299 = vunpack.c.l.b16 %v177
      %v300 = vunpack.c.h.b16 %v177
      %v301 = vunpack.c.l.b16 %v178
      %v302 = vunpack.c.h.b16 %v178
      %v303 = vunpack.c.l.b16 %v179
      %v304 = vunpack.c.h.b16 %v179
      %v305 = vunpack.c.l.b16 %v180
      %v306 = vunpack.c.h.b16 %v180
      %v307 = vunpack.c.l.b16 %v181
      %v308 = vunpack.c.h.b16 %v181
      %v309 = vunpack.c.l.b16 %v182
      %v310 = vunpack.c.h.b16 %v182
      %v311 = vpack.c.b16 %v249, %v247
      %v312 = vpack.c.b16 %v250, %v248
      %v313 = vpack.c.b16 %v253, %v251
      %v314 = vpack.c.b16 %v254, %v252
      %v315 = vpack.c.b16 %v257, %v255
      %v316 = vpack.c.b16 %v258, %v256
      %v317 = vpack.c.b16 %v261, %v259
      %v318 = vpack.c.b16 %v262, %v260
      %v319 = vpack.c.b16 %v265, %v263
      %v320 = vpack.c.b16 %v266, %v264
      %v321 = vpack.c.b16 %v269, %v267
      %v322 = vpack.c.b16 %v270, %v268
      %v323 = vpack.c.b16 %v273, %v271
      %v324 = vpack.c.b16 %v274, %v272
      %v325 = vpack.c.b16 %v277, %v275
      %v326 = vpack.c.b16 %v278, %v276
      %v327 = vpack.c.b16 %v281, %v279
      %v328 = vpack.c.b16 %v282, %v280
      %v329 = vpack.c.b16 %v285, %v283
      %v330 = vpack.c.b16 %v286, %v284
      %v331 = vpack.c.b16 %v289, %v287
      %v332 = vpack.c.b16 %v290, %v288
      %v333 = vpack.c.b16 %v293, %v291
      %v334 = vpack.c.b16 %v294, %v292
      %v335 = vpack.c.b16 %v297, %v295
      %v336 = vpack.c.b16 %v298, %v296
      %v337 = vpack.c.b16 %v301, %v299
      %v338 = vpack.c.b16 %v302, %v300
      %v339 = vpack.c.b16 %v305, %v303
      %v340 = vpack.c.b16 %v306, %v304
      %v341 = vpack.c.b16 %v309, %v307
      %v342 = vpack.c.b16 %v310, %v308
      %v407 = vunpack.c.l.b16 %v183
      %v408 = vunpack.c.l.b16 %v184
      %v409 = vunpack.c.l.b16 %v185
      %v410 = vunpack.c.l.b16 %v186
      %v411 = vunpack.c.l.b16 %v187
      %v412 = vunpack.c.l.b16 %v188
      %v413 = vunpack.c.l.b16 %v189
      %v414 = vunpack.c.l.b16 %v190
      %v415 = vunpack.c.l.b16 %v191
      %v416 = vunpack.c.l.b16 %v192
      %v417 = vunpack.c.l.b16 %v193
      %v418 = vunpack.c.l.b16 %v194
      %v419 = vunpack.c.l.b16 %v195
      %v420 = vunpack.c.l.b16 %v196
      %v421 = vunpack.c.l.b16 %v197
      %v422 = vunpack.c.l.b16 %v198
      %v423 = vunpack.c.l.b16 %v199
      %v424 = vunpack.c.l.b16 %v200
      %v425 = vunpack.c.l.b16 %v201
      %v426 = vunpack.c.l.b16 %v202
      %v427 = vunpack.c.l.b16 %v203
      %v428 = vunpack.c.l.b16 %v204
      %v429 = vunpack.c.l.b16 %v205
      %v430 = vunpack.c.l.b16 %v206
      %v431 = vunpack.c.l.b16 %v207
      %v432 = vunpack.c.l.b16 %v208
      %v433 = vunpack.c.l.b16 %v209
      %v434 = vunpack.c.l.b16 %v210
      %v435 = vunpack.c.l.b16 %v211
      %v436 = vunpack.c.l.b16 %v212
      %v437 = vunpack.c.l.b16 %v213
      %v438 = vunpack.c.l.b16 %v214
      %v439 = vpack.c.b16 %v408, %v407
      %v440 = vpack.c.b16 %v410, %v409
      %v441 = vpack.c.b16 %v412, %v411
      %v442 = vpack.c.b16 %v414, %v413
      %v443 = vpack.c.b16 %v416, %v415
      %v444 = vpack.c.b16 %v418, %v417
      %v445 = vpack.c.b16 %v420, %v419
      %v446 = vpack.c.b16 %v422, %v421
      %v447 = vpack.c.b16 %v424, %v423
      %v448 = vpack.c.b16 %v426, %v425
      %v449 = vpack.c.b16 %v428, %v427
      %v450 = vpack.c.b16 %v430, %v429
      %v451 = vpack.c.b16 %v432, %v431
      %v452 = vpack.c.b16 %v434, %v433
      %v453 = vpack.c.b16 %v436, %v435
      %v454 = vpack.c.b16 %v438, %v437
      %471 = vmatprep.subr.bf16.mxu0 0
      %472 = vmatpush1.bf16.msra.mxu0 %v446
      %473 = vmatprep.subr.bf16.mxu0 0
      %474 = vmatpush1.bf16.msra.mxu0 %v445
      %475 = vmatprep.subr.bf16.mxu0 0
      %476 = vmatpush1.bf16.msra.mxu0 %v444
      %477 = vmatprep.subr.bf16.mxu0 0
      %478 = vmatpush1.bf16.msra.mxu0 %v443
      %479 = vmatprep.subr.bf16.mxu0 0
      %480 = vmatpush1.bf16.msra.mxu0 %v442
      %481 = vmatprep.subr.bf16.mxu0 0
      %482 = vmatpush1.bf16.msra.mxu0 %v441
      %483 = vmatprep.subr.bf16.mxu0 0
      %484 = vmatpush1.bf16.msra.mxu0 %v440
      %485 = vmatprep.subr.bf16.mxu0 0
      %486 = vmatpush1.bf16.msra.mxu0 %v439
      %487 = vmatprep.subr.bf16.mxu0 0
      %488 = vmatpush2.bf16.msra.mxu0 %v454
      %489 = vmatprep.subr.bf16.mxu0 0
      %490 = vmatpush2.bf16.msra.mxu0 %v453
      %491 = vmatprep.subr.bf16.mxu0 0
      %492 = vmatpush2.bf16.msra.mxu0 %v452
      %493 = vmatprep.subr.bf16.mxu0 0
      %494 = vmatpush2.bf16.msra.mxu0 %v451
      %495 = vmatprep.subr.bf16.mxu0 0
      %496 = vmatpush2.bf16.msra.mxu0 %v450
      %497 = vmatprep.subr.bf16.mxu0 0
      %498 = vmatpush2.bf16.msra.mxu0 %v449
      %499 = vmatprep.subr.bf16.mxu0 0
      %500 = vmatpush2.bf16.msra.mxu0 %v448
      %501 = vmatprep.subr.bf16.mxu0 0
      %502 = vmatpush2.bf16.msra.mxu0 %v447
      %503 = vmatprep.mubr.bf16.mxu0 %v312
      %504 = vmatmul.mubr.bf16.gmra.mxu0 %v311
      %v505 = vpop.f32.mrf.mxu0
      %v506 = vadd.f32 0.0, %v505
      %v507 = vpop.f32.mrf.mxu0
      %v508 = vpop.f32.mrf.mxu0
      %v509 = vadd.f32 0.0, %v508
      %v510 = vpop.f32.mrf.mxu0
      %511 = vmatprep.mubr.bf16.mxu0 %v314
      %512 = vmatmul.mubr.bf16.gmra.mxu0 %v313
      %v513 = vpop.f32.mrf.mxu0
      %v514 = vadd.f32 0.0, %v513
      %v515 = vpop.f32.mrf.mxu0
      %v516 = vpop.f32.mrf.mxu0
      %v517 = vadd.f32 0.0, %v516
      %v518 = vpop.f32.mrf.mxu0
      %519 = vmatprep.mubr.bf16.mxu0 %v316
      %520 = vmatmul.mubr.bf16.gmra.mxu0 %v315
      %v521 = vpop.f32.mrf.mxu0
      %v522 = vadd.f32 0.0, %v521
      %v523 = vpop.f32.mrf.mxu0
      %v524 = vpop.f32.mrf.mxu0
      %v525 = vadd.f32 0.0, %v524
      %v526 = vpop.f32.mrf.mxu0
      %527 = vmatprep.mubr.bf16.mxu0 %v318
      %528 = vmatmul.mubr.bf16.gmra.mxu0 %v317
      %v529 = vpop.f32.mrf.mxu0
      %v530 = vadd.f32 0.0, %v529
      %v531 = vpop.f32.mrf.mxu0
      %v532 = vpop.f32.mrf.mxu0
      %v533 = vadd.f32 0.0, %v532
      %v534 = vpop.f32.mrf.mxu0
      %535 = vmatprep.mubr.bf16.mxu0 %v320
      %536 = vmatmul.mubr.bf16.gmra.mxu0 %v319
      %v537 = vpop.f32.mrf.mxu0
      %v538 = vadd.f32 0.0, %v537
      %v539 = vpop.f32.mrf.mxu0
      %v540 = vpop.f32.mrf.mxu0
      %v541 = vadd.f32 0.0, %v540
      %v542 = vpop.f32.mrf.mxu0
      %543 = vmatprep.mubr.bf16.mxu0 %v322
      %544 = vmatmul.mubr.bf16.gmra.mxu0 %v321
      %v545 = vpop.f32.mrf.mxu0
      %v546 = vadd.f32 0.0, %v545
      %v547 = vpop.f32.mrf.mxu0
      %v548 = vpop.f32.mrf.mxu0
      %v549 = vadd.f32 0.0, %v548
      %v550 = vpop.f32.mrf.mxu0
      %551 = vmatprep.mubr.bf16.mxu0 %v324
      %552 = vmatmul.mubr.bf16.gmra.mxu0 %v323
      %v553 = vpop.f32.mrf.mxu0
      %v554 = vadd.f32 0.0, %v553
      %v555 = vpop.f32.mrf.mxu0
      %v556 = vpop.f32.mrf.mxu0
      %v557 = vadd.f32 0.0, %v556
      %v558 = vpop.f32.mrf.mxu0
      %559 = vmatprep.mubr.bf16.mxu0 %v326
      %560 = vmatmul.mubr.bf16.gmra.mxu0 %v325
      %v561 = vpop.f32.mrf.mxu0
      %v562 = vadd.f32 0.0, %v561
      %v563 = vpop.f32.mrf.mxu0
      %v564 = vpop.f32.mrf.mxu0
      %v565 = vadd.f32 0.0, %v564
      %v566 = vpop.f32.mrf.mxu0
      %567 = vmatprep.mubr.bf16.mxu0 %v328
      %568 = vmatmul.mubr.bf16.gmra.mxu0 %v327
      %v569 = vpop.f32.mrf.mxu0
      %v570 = vadd.f32 0.0, %v569
      %v571 = vpop.f32.mrf.mxu0
      %v572 = vpop.f32.mrf.mxu0
      %v573 = vadd.f32 0.0, %v572
      %v574 = vpop.f32.mrf.mxu0
      %575 = vmatprep.mubr.bf16.mxu0 %v330
      %576 = vmatmul.mubr.bf16.gmra.mxu0 %v329
      %v577 = vpop.f32.mrf.mxu0
      %v578 = vadd.f32 0.0, %v577
      %v579 = vpop.f32.mrf.mxu0
      %v580 = vpop.f32.mrf.mxu0
      %v581 = vadd.f32 0.0, %v580
      %v582 = vpop.f32.mrf.mxu0
      %583 = vmatprep.mubr.bf16.mxu0 %v332
      %584 = vmatmul.mubr.bf16.gmra.mxu0 %v331
      %v585 = vpop.f32.mrf.mxu0
      %v586 = vadd.f32 0.0, %v585
      %v587 = vpop.f32.mrf.mxu0
      %v588 = vpop.f32.mrf.mxu0
      %v589 = vadd.f32 0.0, %v588
      %v590 = vpop.f32.mrf.mxu0
      %591 = vmatprep.mubr.bf16.mxu0 %v334
      %592 = vmatmul.mubr.bf16.gmra.mxu0 %v333
      %v593 = vpop.f32.mrf.mxu0
      %v594 = vadd.f32 0.0, %v593
      %v595 = vpop.f32.mrf.mxu0
      %v596 = vpop.f32.mrf.mxu0
      %v597 = vadd.f32 0.0, %v596
      %v598 = vpop.f32.mrf.mxu0
      %599 = vmatprep.mubr.bf16.mxu0 %v336
      %600 = vmatmul.mubr.bf16.gmra.mxu0 %v335
      %v601 = vpop.f32.mrf.mxu0
      %v602 = vadd.f32 0.0, %v601
      %v603 = vpop.f32.mrf.mxu0
      %v604 = vpop.f32.mrf.mxu0
      %v605 = vadd.f32 0.0, %v604
      %v606 = vpop.f32.mrf.mxu0
      %607 = vmatprep.mubr.bf16.mxu0 %v338
      %608 = vmatmul.mubr.bf16.gmra.mxu0 %v337
      %v609 = vpop.f32.mrf.mxu0
      %v610 = vadd.f32 0.0, %v609
      %v611 = vpop.f32.mrf.mxu0
      %v612 = vpop.f32.mrf.mxu0
      %v613 = vadd.f32 0.0, %v612
      %v614 = vpop.f32.mrf.mxu0
      %615 = vmatprep.mubr.bf16.mxu0 %v340
      %616 = vmatmul.mubr.bf16.gmra.mxu0 %v339
      %v617 = vpop.f32.mrf.mxu0
      %v618 = vadd.f32 0.0, %v617
      %v619 = vpop.f32.mrf.mxu0
      %v620 = vpop.f32.mrf.mxu0
      %v621 = vadd.f32 0.0, %v620
      %v622 = vpop.f32.mrf.mxu0
      %623 = vmatprep.mubr.bf16.mxu0 %v342
      %624 = vmatmul.mubr.bf16.gmra.mxu0 %v341
      %v625 = vpop.f32.mrf.mxu0
      %v626 = vadd.f32 0.0, %v625
      %v627 = vpop.f32.mrf.mxu0
      %v628 = vpop.f32.mrf.mxu0
      %v629 = vadd.f32 0.0, %v628
      %v630 = vpop.f32.mrf.mxu0
      %631 = vdwg.mxu0
      %v632 = vpack.c.bf16 %v509, %v506
      %v633 = vpack.c.bf16 %v517, %v514
      %v634 = vpack.c.bf16 %v525, %v522
      %v635 = vpack.c.bf16 %v533, %v530
      %v636 = vpack.c.bf16 %v541, %v538
      %v637 = vpack.c.bf16 %v549, %v546
      %v638 = vpack.c.bf16 %v557, %v554
      %v639 = vpack.c.bf16 %v565, %v562
      %v640 = vpack.c.bf16 %v573, %v570
      %v641 = vpack.c.bf16 %v581, %v578
      %v642 = vpack.c.bf16 %v589, %v586
      %v643 = vpack.c.bf16 %v597, %v594
      %v644 = vpack.c.bf16 %v605, %v602
      %v645 = vpack.c.bf16 %v613, %v610
      %v646 = vpack.c.bf16 %v621, %v618
      %v647 = vpack.c.bf16 %v629, %v626
      %v664 = vunpack.c.l.b16 %v632
      %v665 = vunpack.c.h.b16 %v632
      %v666 = vunpack.c.l.b16 %v633
      %v667 = vunpack.c.h.b16 %v633
      %v668 = vunpack.c.l.b16 %v634
      %v669 = vunpack.c.h.b16 %v634
      %v670 = vunpack.c.l.b16 %v635
      %v671 = vunpack.c.h.b16 %v635
      %v672 = vunpack.c.l.b16 %v636
      %v673 = vunpack.c.h.b16 %v636
      %v674 = vunpack.c.l.b16 %v637
      %v675 = vunpack.c.h.b16 %v637
      %v676 = vunpack.c.l.b16 %v638
      %v677 = vunpack.c.h.b16 %v638
      %v678 = vunpack.c.l.b16 %v639
      %v679 = vunpack.c.h.b16 %v639
      %v680 = vunpack.c.l.b16 %v640
      %v681 = vunpack.c.h.b16 %v640
      %v682 = vunpack.c.l.b16 %v641
      %v683 = vunpack.c.h.b16 %v641
      %v684 = vunpack.c.l.b16 %v642
      %v685 = vunpack.c.h.b16 %v642
      %v686 = vunpack.c.l.b16 %v643
      %v687 = vunpack.c.h.b16 %v643
      %v688 = vunpack.c.l.b16 %v644
      %v689 = vunpack.c.h.b16 %v644
      %v690 = vunpack.c.l.b16 %v645
      %v691 = vunpack.c.h.b16 %v645
      %v692 = vunpack.c.l.b16 %v646
      %v693 = vunpack.c.h.b16 %v646
      %v694 = vunpack.c.l.b16 %v647
      %v695 = vunpack.c.h.b16 %v647
      %v696 = vpack.c.b16 %v664, %v664
      %v697 = vpack.c.b16 %v665, %v665
      %v698 = vpack.c.b16 %v666, %v666
      %v699 = vpack.c.b16 %v667, %v667
      %v700 = vpack.c.b16 %v668, %v668
      %v701 = vpack.c.b16 %v669, %v669
      %v702 = vpack.c.b16 %v670, %v670
      %v703 = vpack.c.b16 %v671, %v671
      %v704 = vpack.c.b16 %v672, %v672
      %v705 = vpack.c.b16 %v673, %v673
      %v706 = vpack.c.b16 %v674, %v674
      %v707 = vpack.c.b16 %v675, %v675
      %v708 = vpack.c.b16 %v676, %v676
      %v709 = vpack.c.b16 %v677, %v677
      %v710 = vpack.c.b16 %v678, %v678
      %v711 = vpack.c.b16 %v679, %v679
      %v712 = vpack.c.b16 %v680, %v680
      %v713 = vpack.c.b16 %v681, %v681
      %v714 = vpack.c.b16 %v682, %v682
      %v715 = vpack.c.b16 %v683, %v683
      %v716 = vpack.c.b16 %v684, %v684
      %v717 = vpack.c.b16 %v685, %v685
      %v718 = vpack.c.b16 %v686, %v686
      %v719 = vpack.c.b16 %v687, %v687
      %v720 = vpack.c.b16 %v688, %v688
      %v721 = vpack.c.b16 %v689, %v689
      %v722 = vpack.c.b16 %v690, %v690
      %v723 = vpack.c.b16 %v691, %v691
      %v724 = vpack.c.b16 %v692, %v692
      %v725 = vpack.c.b16 %v693, %v693
      %v726 = vpack.c.b16 %v694, %v694
      %v727 = vpack.c.b16 %v695, %v695
      %760 = vst [vmem:[%s148] sm:$0xf] %v696
      %761 = vst [vmem:[%s148 + $0x4] sm:$0xf] %v697
      %762 = vst [vmem:[%s148 + $0x8] sm:$0xf] %v698
      %763 = vst [vmem:[%s148 + $0xc] sm:$0xf] %v699
      %764 = vst [vmem:[%s148 + $0x10] sm:$0xf] %v700
      %765 = vst [vmem:[%s148 + $0x14] sm:$0xf] %v701
      %766 = vst [vmem:[%s148 + $0x18] sm:$0xf] %v702
      %767 = vst [vmem:[%s148 + $0x1c] sm:$0xf] %v703
      %768 = vst [vmem:[%s148 + $0x20] sm:$0xf] %v704
      %769 = vst [vmem:[%s148 + $0x24] sm:$0xf] %v705
      %770 = vst [vmem:[%s148 + $0x28] sm:$0xf] %v706
      %771 = vst [vmem:[%s148 + $0x2c] sm:$0xf] %v707
      %772 = vst [vmem:[%s148 + $0x30] sm:$0xf] %v708
      %773 = vst [vmem:[%s148 + $0x34] sm:$0xf] %v709
      %774 = vst [vmem:[%s148 + $0x38] sm:$0xf] %v710
      %775 = vst [vmem:[%s148 + $0x3c] sm:$0xf] %v711
      %776 = vst [vmem:[%s148 + $0x40] sm:$0xf] %v712
      %777 = vst [vmem:[%s148 + $0x44] sm:$0xf] %v713
      %778 = vst [vmem:[%s148 + $0x48] sm:$0xf] %v714
      %779 = vst [vmem:[%s148 + $0x4c] sm:$0xf] %v715
      %780 = vst [vmem:[%s148 + $0x50] sm:$0xf] %v716
      %781 = vst [vmem:[%s148 + $0x54] sm:$0xf] %v717
      %782 = vst [vmem:[%s148 + $0x58] sm:$0xf] %v718
      %783 = vst [vmem:[%s148 + $0x5c] sm:$0xf] %v719
      %784 = vst [vmem:[%s148 + $0x60] sm:$0xf] %v720
      %785 = vst [vmem:[%s148 + $0x64] sm:$0xf] %v721
      %786 = vst [vmem:[%s148 + $0x68] sm:$0xf] %v722
      %787 = vst [vmem:[%s148 + $0x6c] sm:$0xf] %v723
      %788 = vst [vmem:[%s148 + $0x70] sm:$0xf] %v724
      %789 = vst [vmem:[%s148 + $0x74] sm:$0xf] %v725
      %790 = vst [vmem:[%s148 + $0x78] sm:$0xf] %v726
      %791 = vst [vmem:[%s148 + $0x7c] sm:$0xf] %v727
      %s792 = smul.u32 32, %s13
      %p793 = scmp.lt.s32.totalorder %s792, 63
      %s794 = scalar_select %p793, %s792, 63
      %s795 = smul.addr %s794, 4
      %s796 = scalar_lea.vmem %s2, %s795
      // Predicated region
      $region29: #{gae_forward.5} parent=27 // pred_check
        %p797 = pneg %p78
      $region30: #{gae_forward.5} parent=27 // pred_check_branch
        %799 = sbr.rel (%p797) target = $region32
      $region31: #{gae_forward.5} parent=27 // pred_region
        %s800 = smul.u32 32, %s13
      $region32: #{gae_forward.5} parent=27 // pred_fallthru
        _
    $region28: #{gae_forward.5} parent=5 // pred_fallthru
      _
    %p801 = scmp.le.s32.totalorder 2, %s8
    // Predicated region
    $region33: #{gae_forward.5} parent=5 // pred_check
      %p802 = pneg %p801
    $region34: #{gae_forward.5} parent=5 // pred_check_branch
      %804 = sbr.rel (%p802) target = $region36
    $region35: #{gae_forward.5} parent=5 // pred_region
      %s805 = ssub.s32 %s8, 2
      // Predicated region
      $region37: #{gae_forward.5} parent=35 // pred_check
        %p806 = pneg %p84
      $region38: #{gae_forward.5} parent=35 // pred_check_branch
        %808 = sbr.rel (%p806) target = $region40
      $region39: #{gae_forward.5} parent=35 // pred_region
        %s809 = smul.u32 32, %s14
        %p810 = scmp.lt.s32.totalorder %s809, 63
        %s811 = scalar_select %p810, %s809, 63
        %s812 = smul.addr %s811, 4
        %s813 = scalar_lea.vmem %s2, %s812
      $region40: #{gae_forward.5} parent=35 // pred_fallthru
        _
    $region36: #{gae_forward.5} parent=5 // pred_fallthru
      _
  $region6: #{gae_forward.5} parent=0 // loop_footer
    %s12 = sadd.s32 1, %s8
  $region7: #{gae_forward.5} parent=0 // loop_footer_branch
    %7 = sbr.rel target = $region3
  $region8: #{gae_forward.5} parent=0 // loop_exit
    _

// kernel: gae_forward.6
$region0: #{gae_forward.6}
  #allocation0 [shape = 'u32[]', space=smem, size = 0x4, offset = 0x4, fixed_abs, tag = 'smem constant byte address 0x4 - core index']
  #allocation1 [shape = 'u32[144,128]{1,0:T(1,128)}', space=vmem, size = 0x12000, scoped, tag = 'internal scratch']
  %s0 = inlined_call_operand.vmem [shape: bf16[512,512], index: 0, kind: input, shape index: {}]
  %s1 = inlined_call_operand.vmem [shape: bf16[512,128], index: 1, kind: input, shape index: {}]
  %s2 = inlined_call_operand.vmem [shape: bf16[512,128], index: 2, kind: output, shape index: {}]
  %s3 = sld [smem:[#allocation0]]
  $region41: #{gae_forward.6} parent=0
    _
  %s5 = ssub.s32 1, %s3
  %s6 = scalar_select 0, %s5, %s3
  loop: start=0, step=1, limit=4
  $region2: #{gae_forward.6} parent=0 // loop_pre_header
    _
  $region3: #{gae_forward.6} parent=0 // loop_header
    %s8 = sphi 0, %s12
    %p9 = scmp.ge.s32.totalorder %s8, 4
    %s18 = sphi 0, %s20
    %s21 = sphi 0, %s18
    %s22 = sphi 0, %s21
    %s38 = sphi 0, %s22
    %s42 = sphi 0, %s42
    %s44 = sphi 0, %s42
    %s45 = sphi 0, %s44
    %s59 = sphi 0, %s45
    %s65 = sphi 0, %s67
    %s68 = sphi 0, %s65
    %s69 = sphi 0, %s68
    %s85 = sphi 0, %s69
  $region4: #{gae_forward.6} parent=0 // loop_header_branch
    %11 = sbr.rel (%p9) target = $region8
  $region5: #{gae_forward.6} parent=0 // loop_body
    %s13 = ssub.s32 %s8, 1
    %s14 = ssub.s32 %s8, 2
    %s15 = sadd.s32 %s8, 1
    %s16 = ssub.s32 %s8, %s15
    %p17 = scmp.eq.s32.totalorder %s16, 0
    %s19 = sadd.s32 %s18, 1
    %s20 = scalar_select %p17, %s18, %s19
    %p23 = pneg %p17
    %p24 = scmp.eq.s32.totalorder %s8, 1
    %p25 = por %p23, %p24
    %p26 = scmp.ne.s32.totalorder %s18, %s21
    %p27 = scmp.eq.s32.totalorder %s8, 0
    %p28 = por %p26, %p27
    %p29 = scmp.ne.s32.totalorder %s18, %s21
    %p30 = scmp.eq.s32.totalorder %s13, 1
    %p31 = por %p29, %p30
    %p32 = scmp.ne.s32.totalorder %s21, %s22
    %p33 = scmp.eq.s32.totalorder %s13, 0
    %p34 = por %p32, %p33
    %p35 = scmp.ne.s32.totalorder %s21, %s22
    %p36 = scmp.eq.s32.totalorder %s14, 1
    %p37 = por %p35, %p36
    %p39 = scmp.ne.s32.totalorder %s22, %s38
    %p40 = scmp.eq.s32.totalorder %s14, 0
    %p41 = por %p39, %p40
    %s43 = sadd.s32 %s42, 1
    %p46 = scmp.eq.s32.totalorder %s8, 1
    %p47 = scmp.ne.s32.totalorder %s42, %s44
    %p48 = scmp.eq.s32.totalorder %s8, 0
    %p49 = por %p47, %p48
    %p50 = scmp.ne.s32.totalorder %s42, %s44
    %p51 = scmp.eq.s32.totalorder %s13, 1
    %p52 = por %p50, %p51
    %p53 = scmp.ne.s32.totalorder %s44, %s45
    %p54 = scmp.eq.s32.totalorder %s13, 0
    %p55 = por %p53, %p54
    %p56 = scmp.ne.s32.totalorder %s44, %s45
    %p57 = scmp.eq.s32.totalorder %s14, 1
    %p58 = por %p56, %p57
    %p60 = scmp.ne.s32.totalorder %s45, %s59
    %p61 = scmp.eq.s32.totalorder %s14, 0
    %p62 = por %p60, %p61
    %s63 = ssub.s32 %s8, %s15
    %p64 = scmp.eq.s32.totalorder %s63, 0
    %s66 = sadd.s32 %s65, 1
    %s67 = scalar_select %p64, %s65, %s66
    %p70 = pneg %p64
    %p71 = scmp.eq.s32.totalorder %s8, 1
    %p72 = por %p70, %p71
    %p73 = scmp.ne.s32.totalorder %s65, %s68
    %p74 = scmp.eq.s32.totalorder %s8, 0
    %p75 = por %p73, %p74
    %p76 = scmp.ne.s32.totalorder %s65, %s68
    %p77 = scmp.eq.s32.totalorder %s13, 1
    %p78 = por %p76, %p77
    %p79 = scmp.ne.s32.totalorder %s68, %s69
    %p80 = scmp.eq.s32.totalorder %s13, 0
    %p81 = por %p79, %p80
    %p82 = scmp.ne.s32.totalorder %s68, %s69
    %p83 = scmp.eq.s32.totalorder %s14, 1
    %p84 = por %p82, %p83
    %p86 = scmp.ne.s32.totalorder %s69, %s85
    %p87 = scmp.eq.s32.totalorder %s14, 0
    %p88 = por %p86, %p87
    %p89 = scmp.le.s32.totalorder 1, %s8
    %p90 = scmp.lt.s32.totalorder %s8, 3
    %p91 = pnand %p89, %p90
    %p92 = pneg %p91
    // Predicated region
    $region9: #{gae_forward.6} parent=5 // pred_check
      _
    $region10: #{gae_forward.6} parent=5 // pred_check_branch
      %94 = sbr.rel (%p91) target = $region12
    $region11: #{gae_forward.6} parent=5 // pred_region
      %s95 = ssub.s32 %s8, 1
      // Predicated region
      $region13: #{gae_forward.6} parent=11 // pred_check
        %p96 = pneg %p55
      $region14: #{gae_forward.6} parent=11 // pred_check_branch
        %98 = sbr.rel (%p96) target = $region16
      $region15: #{gae_forward.6} parent=11 // pred_region
        _
      $region16: #{gae_forward.6} parent=11 // pred_fallthru
        _
    $region12: #{gae_forward.6} parent=5 // pred_fallthru
      _
    %p99 = scmp.lt.s32.totalorder %s8, 2
    // Predicated region
    $region17: #{gae_forward.6} parent=5 // pred_check
      %p100 = pneg %p99
    $region18: #{gae_forward.6} parent=5 // pred_check_branch
      %102 = sbr.rel (%p100) target = $region20
    $region19: #{gae_forward.6} parent=5 // pred_region
      // Predicated region
      $region21: #{gae_forward.6} parent=19 // pred_check
        %p103 = pneg %p28
      $region22: #{gae_forward.6} parent=19 // pred_check_branch
        %105 = sbr.rel (%p103) target = $region24
      $region23: #{gae_forward.6} parent=19 // pred_region
        %s106 = smul.u32 32, %s8
        %p107 = scmp.lt.s32.totalorder %s106, 63
        %s108 = scalar_select %p107, %s106, 63
        %s109 = smul.addr %s108, 4
        %s110 = smul.addr %s109, 4
        %s111 = scalar_lea.vmem %s0, %s110
        %s112 = smul.u32 32, %s8
      $region24: #{gae_forward.6} parent=19 // pred_fallthru
        _
    $region20: #{gae_forward.6} parent=5 // pred_fallthru
      _
    %p113 = scmp.le.s32.totalorder 1, %s8
    %p114 = scmp.lt.s32.totalorder %s8, 3
    %p115 = pnand %p113, %p114
    %p116 = pneg %p115
    // Predicated region
    $region25: #{gae_forward.6} parent=5 // pred_check
      _
    $region26: #{gae_forward.6} parent=5 // pred_check_branch
      %118 = sbr.rel (%p115) target = $region28
    $region27: #{gae_forward.6} parent=5 // pred_region
      %s119 = ssub.s32 %s8, 1
      %s120 = smul.u32 32, %s13
      %p121 = scmp.lt.s32.totalorder %s120, 63
      %s122 = scalar_select %p121, %s120, 63
      %s123 = smul.addr %s122, 4
      %s124 = smul.addr %s123, 4
      %s125 = scalar_lea.vmem %s0, %s124
      %p126 = pneg %p34
      %p127 = pneg %p31
      %p128 = pneg %p55
      %p129 = pneg %p52
      %p130 = pneg %p81
      %p131 = pneg %p78
      %s132 = smul.u32 32, %s13
      %p133 = scmp.lt.s32.totalorder %s132, 63
      %s134 = scalar_select %p133, %s132, 63
      %s135 = smul.addr %s134, 4
      %s136 = scalar_lea.vmem %s2, %s135
      %s137 = smul.u32 32, %s13
      %p138 = scmp.lt.s32.totalorder %s137, 63
      %s139 = scalar_select %p138, %s137, 63
      %s140 = smul.addr %s139, 4
      %s141 = smul.addr %s140, 4
      %s142 = scalar_lea.vmem %s0, %s141
      %s143 = smul.u32 32, %s13
      %s144 = smul.u32 32, %s13
      %p145 = scmp.lt.s32.totalorder %s144, 63
      %s146 = scalar_select %p145, %s144, 63
      %s147 = smul.addr %s146, 4
      %s148 = scalar_lea.vmem %s2, %s147
      %s149 = smul.u32 32, %s13
      %v151 = vld [vmem:[%s142] sm:$0xff]
      %v152 = vld [vmem:[%s142 + $0x8] sm:$0xff]
      %v153 = vld [vmem:[%s142 + $0x10] sm:$0xff]
      %v154 = vld [vmem:[%s142 + $0x18] sm:$0xff]
      %v155 = vld [vmem:[%s142 + $0x20] sm:$0xff]
      %v156 = vld [vmem:[%s142 + $0x28] sm:$0xff]
      %v157 = vld [vmem:[%s142 + $0x30] sm:$0xff]
      %v158 = vld [vmem:[%s142 + $0x38] sm:$0xff]
      %v159 = vld [vmem:[%s142 + $0x40] sm:$0xff]
      %v160 = vld [vmem:[%s142 + $0x48] sm:$0xff]
      %v161 = vld [vmem:[%s142 + $0x50] sm:$0xff]
      %v162 = vld [vmem:[%s142 + $0x58] sm:$0xff]
      %v163 = vld [vmem:[%s142 + $0x60] sm:$0xff]
      %v164 = vld [vmem:[%s142 + $0x68] sm:$0xff]
      %v165 = vld [vmem:[%s142 + $0x70] sm:$0xff]
      %v166 = vld [vmem:[%s142 + $0x78] sm:$0xff]
      %v167 = vld [vmem:[%s142 + $0x80] sm:$0xff]
      %v168 = vld [vmem:[%s142 + $0x88] sm:$0xff]
      %v169 = vld [vmem:[%s142 + $0x90] sm:$0xff]
      %v170 = vld [vmem:[%s142 + $0x98] sm:$0xff]
      %v171 = vld [vmem:[%s142 + $0xa0] sm:$0xff]
      %v172 = vld [vmem:[%s142 + $0xa8] sm:$0xff]
      %v173 = vld [vmem:[%s142 + $0xb0] sm:$0xff]
      %v174 = vld [vmem:[%s142 + $0xb8] sm:$0xff]
      %v175 = vld [vmem:[%s142 + $0xc0] sm:$0xff]
      %v176 = vld [vmem:[%s142 + $0xc8] sm:$0xff]
      %v177 = vld [vmem:[%s142 + $0xd0] sm:$0xff]
      %v178 = vld [vmem:[%s142 + $0xd8] sm:$0xff]
      %v179 = vld [vmem:[%s142 + $0xe0] sm:$0xff]
      %v180 = vld [vmem:[%s142 + $0xe8] sm:$0xff]
      %v181 = vld [vmem:[%s142 + $0xf0] sm:$0xff]
      %v182 = vld [vmem:[%s142 + $0xf8] sm:$0xff]
      %v183 = vld [vmem:[%s142 + $0x100] sm:$0xff]
      %v184 = vld [vmem:[%s142 + $0x108] sm:$0xff]
      %v185 = vld [vmem:[%s142 + $0x110] sm:$0xff]
      %v186 = vld [vmem:[%s142 + $0x118] sm:$0xff]
      %v187 = vld [vmem:[%s142 + $0x120] sm:$0xff]
      %v188 = vld [vmem:[%s142 + $0x128] sm:$0xff]
      %v189 = vld [vmem:[%s142 + $0x130] sm:$0xff]
      %v190 = vld [vmem:[%s142 + $0x138] sm:$0xff]
      %v191 = vld [vmem:[%s142 + $0x140] sm:$0xff]
      %v192 = vld [vmem:[%s142 + $0x148] sm:$0xff]
      %v193 = vld [vmem:[%s142 + $0x150] sm:$0xff]
      %v194 = vld [vmem:[%s142 + $0x158] sm:$0xff]
      %v195 = vld [vmem:[%s142 + $0x160] sm:$0xff]
      %v196 = vld [vmem:[%s142 + $0x168] sm:$0xff]
      %v197 = vld [vmem:[%s142 + $0x170] sm:$0xff]
      %v198 = vld [vmem:[%s142 + $0x178] sm:$0xff]
      %v199 = vld [vmem:[%s142 + $0x180] sm:$0xff]
      %v200 = vld [vmem:[%s142 + $0x188] sm:$0xff]
      %v201 = vld [vmem:[%s142 + $0x190] sm:$0xff]
      %v202 = vld [vmem:[%s142 + $0x198] sm:$0xff]
      %v203 = vld [vmem:[%s142 + $0x1a0] sm:$0xff]
      %v204 = vld [vmem:[%s142 + $0x1a8] sm:$0xff]
      %v205 = vld [vmem:[%s142 + $0x1b0] sm:$0xff]
      %v206 = vld [vmem:[%s142 + $0x1b8] sm:$0xff]
      %v207 = vld [vmem:[%s142 + $0x1c0] sm:$0xff]
      %v208 = vld [vmem:[%s142 + $0x1c8] sm:$0xff]
      %v209 = vld [vmem:[%s142 + $0x1d0] sm:$0xff]
      %v210 = vld [vmem:[%s142 + $0x1d8] sm:$0xff]
      %v211 = vld [vmem:[%s142 + $0x1e0] sm:$0xff]
      %v212 = vld [vmem:[%s142 + $0x1e8] sm:$0xff]
      %v213 = vld [vmem:[%s142 + $0x1f0] sm:$0xff]
      %v214 = vld [vmem:[%s142 + $0x1f8] sm:$0xff]
      %v215 = vld [vmem:[%s1] sm:$0xf]
      %v216 = vld [vmem:[%s1 + $0x4] sm:$0xf]
      %v217 = vld [vmem:[%s1 + $0x8] sm:$0xf]
      %v218 = vld [vmem:[%s1 + $0xc] sm:$0xf]
      %v219 = vld [vmem:[%s1 + $0x10] sm:$0xf]
      %v220 = vld [vmem:[%s1 + $0x14] sm:$0xf]
      %v221 = vld [vmem:[%s1 + $0x18] sm:$0xf]
      %v222 = vld [vmem:[%s1 + $0x1c] sm:$0xf]
      %v223 = vld [vmem:[%s1 + $0x20] sm:$0xf]
      %v224 = vld [vmem:[%s1 + $0x24] sm:$0xf]
      %v225 = vld [vmem:[%s1 + $0x28] sm:$0xf]
      %v226 = vld [vmem:[%s1 + $0x2c] sm:$0xf]
      %v227 = vld [vmem:[%s1 + $0x30] sm:$0xf]
      %v228 = vld [vmem:[%s1 + $0x34] sm:$0xf]
      %v229 = vld [vmem:[%s1 + $0x38] sm:$0xf]
      %v230 = vld [vmem:[%s1 + $0x3c] sm:$0xf]
      %v231 = vld [vmem:[%s1 + $0x40] sm:$0xf]
      %v232 = vld [vmem:[%s1 + $0x44] sm:$0xf]
      %v233 = vld [vmem:[%s1 + $0x48] sm:$0xf]
      %v234 = vld [vmem:[%s1 + $0x4c] sm:$0xf]
      %v235 = vld [vmem:[%s1 + $0x50] sm:$0xf]
      %v236 = vld [vmem:[%s1 + $0x54] sm:$0xf]
      %v237 = vld [vmem:[%s1 + $0x58] sm:$0xf]
      %v238 = vld [vmem:[%s1 + $0x5c] sm:$0xf]
      %v239 = vld [vmem:[%s1 + $0x60] sm:$0xf]
      %v240 = vld [vmem:[%s1 + $0x64] sm:$0xf]
      %v241 = vld [vmem:[%s1 + $0x68] sm:$0xf]
      %v242 = vld [vmem:[%s1 + $0x6c] sm:$0xf]
      %v243 = vld [vmem:[%s1 + $0x70] sm:$0xf]
      %v244 = vld [vmem:[%s1 + $0x74] sm:$0xf]
      %v245 = vld [vmem:[%s1 + $0x78] sm:$0xf]
      %v246 = vld [vmem:[%s1 + $0x7c] sm:$0xf]
      %v247 = vld [vmem:[%s1 + $0x80] sm:$0xf]
      %v248 = vld [vmem:[%s1 + $0x84] sm:$0xf]
      %v249 = vld [vmem:[%s1 + $0x88] sm:$0xf]
      %v250 = vld [vmem:[%s1 + $0x8c] sm:$0xf]
      %v251 = vld [vmem:[%s1 + $0x90] sm:$0xf]
      %v252 = vld [vmem:[%s1 + $0x94] sm:$0xf]
      %v253 = vld [vmem:[%s1 + $0x98] sm:$0xf]
      %v254 = vld [vmem:[%s1 + $0x9c] sm:$0xf]
      %v255 = vld [vmem:[%s1 + $0xa0] sm:$0xf]
      %v256 = vld [vmem:[%s1 + $0xa4] sm:$0xf]
      %v257 = vld [vmem:[%s1 + $0xa8] sm:$0xf]
      %v258 = vld [vmem:[%s1 + $0xac] sm:$0xf]
      %v259 = vld [vmem:[%s1 + $0xb0] sm:$0xf]
      %v260 = vld [vmem:[%s1 + $0xb4] sm:$0xf]
      %v261 = vld [vmem:[%s1 + $0xb8] sm:$0xf]
      %v262 = vld [vmem:[%s1 + $0xbc] sm:$0xf]
      %v263 = vld [vmem:[%s1 + $0xc0] sm:$0xf]
      %v264 = vld [vmem:[%s1 + $0xc4] sm:$0xf]
      %v265 = vld [vmem:[%s1 + $0xc8] sm:$0xf]
      %v266 = vld [vmem:[%s1 + $0xcc] sm:$0xf]
      %v267 = vld [vmem:[%s1 + $0xd0] sm:$0xf]
      %v268 = vld [vmem:[%s1 + $0xd4] sm:$0xf]
      %v269 = vld [vmem:[%s1 + $0xd8] sm:$0xf]
      %v270 = vld [vmem:[%s1 + $0xdc] sm:$0xf]
      %v271 = vld [vmem:[%s1 + $0xe0] sm:$0xf]
      %v272 = vld [vmem:[%s1 + $0xe4] sm:$0xf]
      %v273 = vld [vmem:[%s1 + $0xe8] sm:$0xf]
      %v274 = vld [vmem:[%s1 + $0xec] sm:$0xf]
      %v275 = vld [vmem:[%s1 + $0xf0] sm:$0xf]
      %v276 = vld [vmem:[%s1 + $0xf4] sm:$0xf]
      %v277 = vld [vmem:[%s1 + $0xf8] sm:$0xf]
      %v278 = vld [vmem:[%s1 + $0xfc] sm:$0xf]
      %v343 = vunpack.c.l.b16 %v151
      %v344 = vunpack.c.h.b16 %v151
      %v345 = vunpack.c.l.b16 %v152
      %v346 = vunpack.c.h.b16 %v152
      %v347 = vunpack.c.l.b16 %v153
      %v348 = vunpack.c.h.b16 %v153
      %v349 = vunpack.c.l.b16 %v154
      %v350 = vunpack.c.h.b16 %v154
      %v351 = vunpack.c.l.b16 %v155
      %v352 = vunpack.c.h.b16 %v155
      %v353 = vunpack.c.l.b16 %v156
      %v354 = vunpack.c.h.b16 %v156
      %v355 = vunpack.c.l.b16 %v157
      %v356 = vunpack.c.h.b16 %v157
      %v357 = vunpack.c.l.b16 %v158
      %v358 = vunpack.c.h.b16 %v158
      %v359 = vunpack.c.l.b16 %v159
      %v360 = vunpack.c.h.b16 %v159
      %v361 = vunpack.c.l.b16 %v160
      %v362 = vunpack.c.h.b16 %v160
      %v363 = vunpack.c.l.b16 %v161
      %v364 = vunpack.c.h.b16 %v161
      %v365 = vunpack.c.l.b16 %v162
      %v366 = vunpack.c.h.b16 %v162
      %v367 = vunpack.c.l.b16 %v163
      %v368 = vunpack.c.h.b16 %v163
      %v369 = vunpack.c.l.b16 %v164
      %v370 = vunpack.c.h.b16 %v164
      %v371 = vunpack.c.l.b16 %v165
      %v372 = vunpack.c.h.b16 %v165
      %v373 = vunpack.c.l.b16 %v166
      %v374 = vunpack.c.h.b16 %v166
      %v375 = vunpack.c.l.b16 %v167
      %v376 = vunpack.c.h.b16 %v167
      %v377 = vunpack.c.l.b16 %v168
      %v378 = vunpack.c.h.b16 %v168
      %v379 = vunpack.c.l.b16 %v169
      %v380 = vunpack.c.h.b16 %v169
      %v381 = vunpack.c.l.b16 %v170
      %v382 = vunpack.c.h.b16 %v170
      %v383 = vunpack.c.l.b16 %v171
      %v384 = vunpack.c.h.b16 %v171
      %v385 = vunpack.c.l.b16 %v172
      %v386 = vunpack.c.h.b16 %v172
      %v387 = vunpack.c.l.b16 %v173
      %v388 = vunpack.c.h.b16 %v173
      %v389 = vunpack.c.l.b16 %v174
      %v390 = vunpack.c.h.b16 %v174
      %v391 = vunpack.c.l.b16 %v175
      %v392 = vunpack.c.h.b16 %v175
      %v393 = vunpack.c.l.b16 %v176
      %v394 = vunpack.c.h.b16 %v176
      %v395 = vunpack.c.l.b16 %v177
      %v396 = vunpack.c.h.b16 %v177
      %v397 = vunpack.c.l.b16 %v178
      %v398 = vunpack.c.h.b16 %v178
      %v399 = vunpack.c.l.b16 %v179
      %v400 = vunpack.c.h.b16 %v179
      %v401 = vunpack.c.l.b16 %v180
      %v402 = vunpack.c.h.b16 %v180
      %v403 = vunpack.c.l.b16 %v181
      %v404 = vunpack.c.h.b16 %v181
      %v405 = vunpack.c.l.b16 %v182
      %v406 = vunpack.c.h.b16 %v182
      %v407 = vunpack.c.l.b16 %v183
      %v408 = vunpack.c.h.b16 %v183
      %v409 = vunpack.c.l.b16 %v184
      %v410 = vunpack.c.h.b16 %v184
      %v411 = vunpack.c.l.b16 %v185
      %v412 = vunpack.c.h.b16 %v185
      %v413 = vunpack.c.l.b16 %v186
      %v414 = vunpack.c.h.b16 %v186
      %v415 = vunpack.c.l.b16 %v187
      %v416 = vunpack.c.h.b16 %v187
      %v417 = vunpack.c.l.b16 %v188
      %v418 = vunpack.c.h.b16 %v188
      %v419 = vunpack.c.l.b16 %v189
      %v420 = vunpack.c.h.b16 %v189
      %v421 = vunpack.c.l.b16 %v190
      %v422 = vunpack.c.h.b16 %v190
      %v423 = vunpack.c.l.b16 %v191
      %v424 = vunpack.c.h.b16 %v191
      %v425 = vunpack.c.l.b16 %v192
      %v426 = vunpack.c.h.b16 %v192
      %v427 = vunpack.c.l.b16 %v193
      %v428 = vunpack.c.h.b16 %v193
      %v429 = vunpack.c.l.b16 %v194
      %v430 = vunpack.c.h.b16 %v194
      %v431 = vunpack.c.l.b16 %v195
      %v432 = vunpack.c.h.b16 %v195
      %v433 = vunpack.c.l.b16 %v196
      %v434 = vunpack.c.h.b16 %v196
      %v435 = vunpack.c.l.b16 %v197
      %v436 = vunpack.c.h.b16 %v197
      %v437 = vunpack.c.l.b16 %v198
      %v438 = vunpack.c.h.b16 %v198
      %v439 = vunpack.c.l.b16 %v199
      %v440 = vunpack.c.h.b16 %v199
      %v441 = vunpack.c.l.b16 %v200
      %v442 = vunpack.c.h.b16 %v200
      %v443 = vunpack.c.l.b16 %v201
      %v444 = vunpack.c.h.b16 %v201
      %v445 = vunpack.c.l.b16 %v202
      %v446 = vunpack.c.h.b16 %v202
      %v447 = vunpack.c.l.b16 %v203
      %v448 = vunpack.c.h.b16 %v203
      %v449 = vunpack.c.l.b16 %v204
      %v450 = vunpack.c.h.b16 %v204
      %v451 = vunpack.c.l.b16 %v205
      %v452 = vunpack.c.h.b16 %v205
      %v453 = vunpack.c.l.b16 %v206
      %v454 = vunpack.c.h.b16 %v206
      %v455 = vunpack.c.l.b16 %v207
      %v456 = vunpack.c.h.b16 %v207
      %v457 = vunpack.c.l.b16 %v208
      %v458 = vunpack.c.h.b16 %v208
      %v459 = vunpack.c.l.b16 %v209
      %v460 = vunpack.c.h.b16 %v209
      %v461 = vunpack.c.l.b16 %v210
      %v462 = vunpack.c.h.b16 %v210
      %v463 = vunpack.c.l.b16 %v211
      %v464 = vunpack.c.h.b16 %v211
      %v465 = vunpack.c.l.b16 %v212
      %v466 = vunpack.c.h.b16 %v212
      %v467 = vunpack.c.l.b16 %v213
      %v468 = vunpack.c.h.b16 %v213
      %v469 = vunpack.c.l.b16 %v214
      %v470 = vunpack.c.h.b16 %v214
      %v471 = vpack.c.b16 %v347, %v343
      %v472 = vpack.c.b16 %v348, %v344
      %v473 = vpack.c.b16 %v349, %v345
      %v474 = vpack.c.b16 %v350, %v346
      %v475 = vpack.c.b16 %v355, %v351
      %v476 = vpack.c.b16 %v356, %v352
      %v477 = vpack.c.b16 %v357, %v353
      %v478 = vpack.c.b16 %v358, %v354
      %v479 = vpack.c.b16 %v363, %v359
      %v480 = vpack.c.b16 %v364, %v360
      %v481 = vpack.c.b16 %v365, %v361
      %v482 = vpack.c.b16 %v366, %v362
      %v483 = vpack.c.b16 %v371, %v367
      %v484 = vpack.c.b16 %v372, %v368
      %v485 = vpack.c.b16 %v373, %v369
      %v486 = vpack.c.b16 %v374, %v370
      %v487 = vpack.c.b16 %v379, %v375
      %v488 = vpack.c.b16 %v380, %v376
      %v489 = vpack.c.b16 %v381, %v377
      %v490 = vpack.c.b16 %v382, %v378
      %v491 = vpack.c.b16 %v387, %v383
      %v492 = vpack.c.b16 %v388, %v384
      %v493 = vpack.c.b16 %v389, %v385
      %v494 = vpack.c.b16 %v390, %v386
      %v495 = vpack.c.b16 %v395, %v391
      %v496 = vpack.c.b16 %v396, %v392
      %v497 = vpack.c.b16 %v397, %v393
      %v498 = vpack.c.b16 %v398, %v394
      %v499 = vpack.c.b16 %v403, %v399
      %v500 = vpack.c.b16 %v404, %v400
      %v501 = vpack.c.b16 %v405, %v401
      %v502 = vpack.c.b16 %v406, %v402
      %v503 = vpack.c.b16 %v411, %v407
      %v504 = vpack.c.b16 %v412, %v408
      %v505 = vpack.c.b16 %v413, %v409
      %v506 = vpack.c.b16 %v414, %v410
      %v507 = vpack.c.b16 %v419, %v415
      %v508 = vpack.c.b16 %v420, %v416
      %v509 = vpack.c.b16 %v421, %v417
      %v510 = vpack.c.b16 %v422, %v418
      %v511 = vpack.c.b16 %v427, %v423
      %v512 = vpack.c.b16 %v428, %v424
      %v513 = vpack.c.b16 %v429, %v425
      %v514 = vpack.c.b16 %v430, %v426
      %v515 = vpack.c.b16 %v435, %v431
      %v516 = vpack.c.b16 %v436, %v432
      %v517 = vpack.c.b16 %v437, %v433
      %v518 = vpack.c.b16 %v438, %v434
      %v519 = vpack.c.b16 %v443, %v439
      %v520 = vpack.c.b16 %v444, %v440
      %v521 = vpack.c.b16 %v445, %v441
      %v522 = vpack.c.b16 %v446, %v442
      %v523 = vpack.c.b16 %v451, %v447
      %v524 = vpack.c.b16 %v452, %v448
      %v525 = vpack.c.b16 %v453, %v449
      %v526 = vpack.c.b16 %v454, %v450
      %v527 = vpack.c.b16 %v459, %v455
      %v528 = vpack.c.b16 %v460, %v456
      %v529 = vpack.c.b16 %v461, %v457
      %v530 = vpack.c.b16 %v462, %v458
      %v531 = vpack.c.b16 %v467, %v463
      %v532 = vpack.c.b16 %v468, %v464
      %v533 = vpack.c.b16 %v469, %v465
      %v534 = vpack.c.b16 %v470, %v466
      %v663 = vunpack.c.l.b16 %v215
      %v664 = vunpack.c.l.b16 %v216
      %v665 = vunpack.c.l.b16 %v217
      %v666 = vunpack.c.l.b16 %v218
      %v667 = vunpack.c.l.b16 %v219
      %v668 = vunpack.c.l.b16 %v220
      %v669 = vunpack.c.l.b16 %v221
      %v670 = vunpack.c.l.b16 %v222
      %v671 = vunpack.c.l.b16 %v223
      %v672 = vunpack.c.l.b16 %v224
      %v673 = vunpack.c.l.b16 %v225
      %v674 = vunpack.c.l.b16 %v226
      %v675 = vunpack.c.l.b16 %v227
      %v676 = vunpack.c.l.b16 %v228
      %v677 = vunpack.c.l.b16 %v229
      %v678 = vunpack.c.l.b16 %v230
      %v679 = vunpack.c.l.b16 %v231
      %v680 = vunpack.c.l.b16 %v232
      %v681 = vunpack.c.l.b16 %v233
      %v682 = vunpack.c.l.b16 %v234
      %v683 = vunpack.c.l.b16 %v235
      %v684 = vunpack.c.l.b16 %v236
      %v685 = vunpack.c.l.b16 %v237
      %v686 = vunpack.c.l.b16 %v238
      %v687 = vunpack.c.l.b16 %v239
      %v688 = vunpack.c.l.b16 %v240
      %v689 = vunpack.c.l.b16 %v241
      %v690 = vunpack.c.l.b16 %v242
      %v691 = vunpack.c.l.b16 %v243
      %v692 = vunpack.c.l.b16 %v244
      %v693 = vunpack.c.l.b16 %v245
      %v694 = vunpack.c.l.b16 %v246
      %v695 = vunpack.c.l.b16 %v247
      %v696 = vunpack.c.l.b16 %v248
      %v697 = vunpack.c.l.b16 %v249
      %v698 = vunpack.c.l.b16 %v250
      %v699 = vunpack.c.l.b16 %v251
      %v700 = vunpack.c.l.b16 %v252
      %v701 = vunpack.c.l.b16 %v253
      %v702 = vunpack.c.l.b16 %v254
      %v703 = vunpack.c.l.b16 %v255
      %v704 = vunpack.c.l.b16 %v256
      %v705 = vunpack.c.l.b16 %v257
      %v706 = vunpack.c.l.b16 %v258
      %v707 = vunpack.c.l.b16 %v259
      %v708 = vunpack.c.l.b16 %v260
      %v709 = vunpack.c.l.b16 %v261
      %v710 = vunpack.c.l.b16 %v262
      %v711 = vunpack.c.l.b16 %v263
      %v712 = vunpack.c.l.b16 %v264
      %v713 = vunpack.c.l.b16 %v265
      %v714 = vunpack.c.l.b16 %v266
      %v715 = vunpack.c.l.b16 %v267
      %v716 = vunpack.c.l.b16 %v268
      %v717 = vunpack.c.l.b16 %v269
      %v718 = vunpack.c.l.b16 %v270
      %v719 = vunpack.c.l.b16 %v271
      %v720 = vunpack.c.l.b16 %v272
      %v721 = vunpack.c.l.b16 %v273
      %v722 = vunpack.c.l.b16 %v274
      %v723 = vunpack.c.l.b16 %v275
      %v724 = vunpack.c.l.b16 %v276
      %v725 = vunpack.c.l.b16 %v277
      %v726 = vunpack.c.l.b16 %v278
      %v727 = vpack.c.b16 %v664, %v663
      %v728 = vpack.c.b16 %v666, %v665
      %v729 = vpack.c.b16 %v668, %v667
      %v730 = vpack.c.b16 %v670, %v669
      %v731 = vpack.c.b16 %v672, %v671
      %v732 = vpack.c.b16 %v674, %v673
      %v733 = vpack.c.b16 %v676, %v675
      %v734 = vpack.c.b16 %v678, %v677
      %v735 = vpack.c.b16 %v680, %v679
      %v736 = vpack.c.b16 %v682, %v681
      %v737 = vpack.c.b16 %v684, %v683
      %v738 = vpack.c.b16 %v686, %v685
      %v739 = vpack.c.b16 %v688, %v687
      %v740 = vpack.c.b16 %v690, %v689
      %v741 = vpack.c.b16 %v692, %v691
      %v742 = vpack.c.b16 %v694, %v693
      %v743 = vpack.c.b16 %v696, %v695
      %v744 = vpack.c.b16 %v698, %v697
      %v745 = vpack.c.b16 %v700, %v699
      %v746 = vpack.c.b16 %v702, %v701
      %v747 = vpack.c.b16 %v704, %v703
      %v748 = vpack.c.b16 %v706, %v705
      %v749 = vpack.c.b16 %v708, %v707
      %v750 = vpack.c.b16 %v710, %v709
      %v751 = vpack.c.b16 %v712, %v711
      %v752 = vpack.c.b16 %v714, %v713
      %v753 = vpack.c.b16 %v716, %v715
      %v754 = vpack.c.b16 %v718, %v717
      %v755 = vpack.c.b16 %v720, %v719
      %v756 = vpack.c.b16 %v722, %v721
      %v757 = vpack.c.b16 %v724, %v723
      %v758 = vpack.c.b16 %v726, %v725
      %791 = vmatprep.subr.bf16.mxu0 0
      %792 = vmatpush1.bf16.msra.mxu0 %v734
      %793 = vmatprep.subr.bf16.mxu0 0
      %794 = vmatpush1.bf16.msra.mxu0 %v733
      %795 = vmatprep.subr.bf16.mxu0 0
      %796 = vmatpush1.bf16.msra.mxu0 %v732
      %797 = vmatprep.subr.bf16.mxu0 0
      %798 = vmatpush1.bf16.msra.mxu0 %v731
      %799 = vmatprep.subr.bf16.mxu0 0
      %800 = vmatpush1.bf16.msra.mxu0 %v730
      %801 = vmatprep.subr.bf16.mxu0 0
      %802 = vmatpush1.bf16.msra.mxu0 %v729
      %803 = vmatprep.subr.bf16.mxu0 0
      %804 = vmatpush1.bf16.msra.mxu0 %v728
      %805 = vmatprep.subr.bf16.mxu0 0
      %806 = vmatpush1.bf16.msra.mxu0 %v727
      %807 = vmatprep.subr.bf16.mxu0 0
      %808 = vmatpush2.bf16.msra.mxu0 %v742
      %809 = vmatprep.subr.bf16.mxu0 0
      %810 = vmatpush2.bf16.msra.mxu0 %v741
      %811 = vmatprep.subr.bf16.mxu0 0
      %812 = vmatpush2.bf16.msra.mxu0 %v740
      %813 = vmatprep.subr.bf16.mxu0 0
      %814 = vmatpush2.bf16.msra.mxu0 %v739
      %815 = vmatprep.subr.bf16.mxu0 0
      %816 = vmatpush2.bf16.msra.mxu0 %v738
      %817 = vmatprep.subr.bf16.mxu0 0
      %818 = vmatpush2.bf16.msra.mxu0 %v737
      %819 = vmatprep.subr.bf16.mxu0 0
      %820 = vmatpush2.bf16.msra.mxu0 %v736
      %821 = vmatprep.subr.bf16.mxu0 0
      %822 = vmatpush2.bf16.msra.mxu0 %v735
      %823 = vmatprep.mubr.bf16.mxu0 %v472
      %824 = vmatmul.mubr.bf16.gmra.mxu0 %v471
      %v825 = vpop.f32.mrf.mxu0
      %v826 = vadd.f32 0.0, %v825
      %v827 = vpop.f32.mrf.mxu0
      %v828 = vpop.f32.mrf.mxu0
      %v829 = vadd.f32 0.0, %v828
      %v830 = vpop.f32.mrf.mxu0
      %831 = vmatprep.mubr.bf16.mxu0 %v476
      %832 = vmatmul.mubr.bf16.gmra.mxu0 %v475
      %v833 = vpop.f32.mrf.mxu0
      %v834 = vadd.f32 0.0, %v833
      %v835 = vpop.f32.mrf.mxu0
      %v836 = vpop.f32.mrf.mxu0
      %v837 = vadd.f32 0.0, %v836
      %v838 = vpop.f32.mrf.mxu0
      %839 = vmatprep.mubr.bf16.mxu0 %v480
      %840 = vmatmul.mubr.bf16.gmra.mxu0 %v479
      %v841 = vpop.f32.mrf.mxu0
      %v842 = vadd.f32 0.0, %v841
      %v843 = vpop.f32.mrf.mxu0
      %v844 = vpop.f32.mrf.mxu0
      %v845 = vadd.f32 0.0, %v844
      %v846 = vpop.f32.mrf.mxu0
      %847 = vmatprep.mubr.bf16.mxu0 %v484
      %848 = vmatmul.mubr.bf16.gmra.mxu0 %v483
      %v849 = vpop.f32.mrf.mxu0
      %v850 = vadd.f32 0.0, %v849
      %v851 = vpop.f32.mrf.mxu0
      %v852 = vpop.f32.mrf.mxu0
      %v853 = vadd.f32 0.0, %v852
      %v854 = vpop.f32.mrf.mxu0
      %855 = vmatprep.mubr.bf16.mxu0 %v488
      %856 = vmatmul.mubr.bf16.gmra.mxu0 %v487
      %v857 = vpop.f32.mrf.mxu0
      %v858 = vadd.f32 0.0, %v857
      %v859 = vpop.f32.mrf.mxu0
      %v860 = vpop.f32.mrf.mxu0
      %v861 = vadd.f32 0.0, %v860
      %v862 = vpop.f32.mrf.mxu0
      %863 = vmatprep.mubr.bf16.mxu0 %v492
      %864 = vmatmul.mubr.bf16.gmra.mxu0 %v491
      %v865 = vpop.f32.mrf.mxu0
      %v866 = vadd.f32 0.0, %v865
      %v867 = vpop.f32.mrf.mxu0
      %v868 = vpop.f32.mrf.mxu0
      %v869 = vadd.f32 0.0, %v868
      %v870 = vpop.f32.mrf.mxu0
      %871 = vmatprep.mubr.bf16.mxu0 %v496
      %872 = vmatmul.mubr.bf16.gmra.mxu0 %v495
      %v873 = vpop.f32.mrf.mxu0
      %v874 = vadd.f32 0.0, %v873
      %v875 = vpop.f32.mrf.mxu0
      %v876 = vpop.f32.mrf.mxu0
      %v877 = vadd.f32 0.0, %v876
      %v878 = vpop.f32.mrf.mxu0
      %879 = vmatprep.mubr.bf16.mxu0 %v500
      %880 = vmatmul.mubr.bf16.gmra.mxu0 %v499
      %v881 = vpop.f32.mrf.mxu0
      %v882 = vadd.f32 0.0, %v881
      %v883 = vpop.f32.mrf.mxu0
      %v884 = vpop.f32.mrf.mxu0
      %v885 = vadd.f32 0.0, %v884
      %v886 = vpop.f32.mrf.mxu0
      %887 = vmatprep.mubr.bf16.mxu0 %v504
      %888 = vmatmul.mubr.bf16.gmra.mxu0 %v503
      %v889 = vpop.f32.mrf.mxu0
      %v890 = vadd.f32 0.0, %v889
      %v891 = vpop.f32.mrf.mxu0
      %v892 = vpop.f32.mrf.mxu0
      %v893 = vadd.f32 0.0, %v892
      %v894 = vpop.f32.mrf.mxu0
      %895 = vmatprep.mubr.bf16.mxu0 %v508
      %896 = vmatmul.mubr.bf16.gmra.mxu0 %v507
      %v897 = vpop.f32.mrf.mxu0
      %v898 = vadd.f32 0.0, %v897
      %v899 = vpop.f32.mrf.mxu0
      %v900 = vpop.f32.mrf.mxu0
      %v901 = vadd.f32 0.0, %v900
      %v902 = vpop.f32.mrf.mxu0
      %903 = vmatprep.mubr.bf16.mxu0 %v512
      %904 = vmatmul.mubr.bf16.gmra.mxu0 %v511
      %v905 = vpop.f32.mrf.mxu0
      %v906 = vadd.f32 0.0, %v905
      %v907 = vpop.f32.mrf.mxu0
      %v908 = vpop.f32.mrf.mxu0
      %v909 = vadd.f32 0.0, %v908
      %v910 = vpop.f32.mrf.mxu0
      %911 = vmatprep.mubr.bf16.mxu0 %v516
      %912 = vmatmul.mubr.bf16.gmra.mxu0 %v515
      %v913 = vpop.f32.mrf.mxu0
      %v914 = vadd.f32 0.0, %v913
      %v915 = vpop.f32.mrf.mxu0
      %v916 = vpop.f32.mrf.mxu0
      %v917 = vadd.f32 0.0, %v916
      %v918 = vpop.f32.mrf.mxu0
      %919 = vmatprep.mubr.bf16.mxu0 %v520
      %920 = vmatmul.mubr.bf16.gmra.mxu0 %v519
      %v921 = vpop.f32.mrf.mxu0
      %v922 = vadd.f32 0.0, %v921
      %v923 = vpop.f32.mrf.mxu0
      %v924 = vpop.f32.mrf.mxu0
      %v925 = vadd.f32 0.0, %v924
      %v926 = vpop.f32.mrf.mxu0
      %927 = vmatprep.mubr.bf16.mxu0 %v524
      %928 = vmatmul.mubr.bf16.gmra.mxu0 %v523
      %v929 = vpop.f32.mrf.mxu0
      %v930 = vadd.f32 0.0, %v929
      %v931 = vpop.f32.mrf.mxu0
      %v932 = vpop.f32.mrf.mxu0
      %v933 = vadd.f32 0.0, %v932
      %v934 = vpop.f32.mrf.mxu0
      %935 = vmatprep.mubr.bf16.mxu0 %v528
      %936 = vmatmul.mubr.bf16.gmra.mxu0 %v527
      %v937 = vpop.f32.mrf.mxu0
      %v938 = vadd.f32 0.0, %v937
      %v939 = vpop.f32.mrf.mxu0
      %v940 = vpop.f32.mrf.mxu0
      %v941 = vadd.f32 0.0, %v940
      %v942 = vpop.f32.mrf.mxu0
      %943 = vmatprep.mubr.bf16.mxu0 %v532
      %944 = vmatmul.mubr.bf16.gmra.mxu0 %v531
      %v945 = vpop.f32.mrf.mxu0
      %v946 = vadd.f32 0.0, %v945
      %v947 = vpop.f32.mrf.mxu0
      %v948 = vpop.f32.mrf.mxu0
      %v949 = vadd.f32 0.0, %v948
      %v950 = vpop.f32.mrf.mxu0
      %951 = vdwg.mxu0
      %952 = vmatprep.subr.bf16.mxu0 0
      %953 = vmatpush1.bf16.msra.mxu0 %v750
      %954 = vmatprep.subr.bf16.mxu0 0
      %955 = vmatpush1.bf16.msra.mxu0 %v749
      %956 = vmatprep.subr.bf16.mxu0 0
      %957 = vmatpush1.bf16.msra.mxu0 %v748
      %958 = vmatprep.subr.bf16.mxu0 0
      %959 = vmatpush1.bf16.msra.mxu0 %v747
      %960 = vmatprep.subr.bf16.mxu0 0
      %961 = vmatpush1.bf16.msra.mxu0 %v746
      %962 = vmatprep.subr.bf16.mxu0 0
      %963 = vmatpush1.bf16.msra.mxu0 %v745
      %964 = vmatprep.subr.bf16.mxu0 0
      %965 = vmatpush1.bf16.msra.mxu0 %v744
      %966 = vmatprep.subr.bf16.mxu0 0
      %967 = vmatpush1.bf16.msra.mxu0 %v743
      %968 = vmatprep.subr.bf16.mxu0 0
      %969 = vmatpush2.bf16.msra.mxu0 %v758
      %970 = vmatprep.subr.bf16.mxu0 0
      %971 = vmatpush2.bf16.msra.mxu0 %v757
      %972 = vmatprep.subr.bf16.mxu0 0
      %973 = vmatpush2.bf16.msra.mxu0 %v756
      %974 = vmatprep.subr.bf16.mxu0 0
      %975 = vmatpush2.bf16.msra.mxu0 %v755
      %976 = vmatprep.subr.bf16.mxu0 0
      %977 = vmatpush2.bf16.msra.mxu0 %v754
      %978 = vmatprep.subr.bf16.mxu0 0
      %979 = vmatpush2.bf16.msra.mxu0 %v753
      %980 = vmatprep.subr.bf16.mxu0 0
      %981 = vmatpush2.bf16.msra.mxu0 %v752
      %982 = vmatprep.subr.bf16.mxu0 0
      %983 = vmatpush2.bf16.msra.mxu0 %v751
      %984 = vmatprep.mubr.bf16.mxu0 %v474
      %985 = vmatmul.mubr.bf16.gmra.mxu0 %v473
      %v986 = vpop.f32.mrf.mxu0
      %v987 = vadd.f32 %v826, %v986
      %v988 = vpop.f32.mrf.mxu0
      %v989 = vpop.f32.mrf.mxu0
      %v990 = vadd.f32 %v829, %v989
      %v991 = vpop.f32.mrf.mxu0
      %992 = vmatprep.mubr.bf16.mxu0 %v478
      %993 = vmatmul.mubr.bf16.gmra.mxu0 %v477
      %v994 = vpop.f32.mrf.mxu0
      %v995 = vadd.f32 %v834, %v994
      %v996 = vpop.f32.mrf.mxu0
      %v997 = vpop.f32.mrf.mxu0
      %v998 = vadd.f32 %v837, %v997
      %v999 = vpop.f32.mrf.mxu0
      %1000 = vmatprep.mubr.bf16.mxu0 %v482
      %1001 = vmatmul.mubr.bf16.gmra.mxu0 %v481
      %v1002 = vpop.f32.mrf.mxu0
      %v1003 = vadd.f32 %v842, %v1002
      %v1004 = vpop.f32.mrf.mxu0
      %v1005 = vpop.f32.mrf.mxu0
      %v1006 = vadd.f32 %v845, %v1005
      %v1007 = vpop.f32.mrf.mxu0
      %1008 = vmatprep.mubr.bf16.mxu0 %v486
      %1009 = vmatmul.mubr.bf16.gmra.mxu0 %v485
      %v1010 = vpop.f32.mrf.mxu0
      %v1011 = vadd.f32 %v850, %v1010
      %v1012 = vpop.f32.mrf.mxu0
      %v1013 = vpop.f32.mrf.mxu0
      %v1014 = vadd.f32 %v853, %v1013
      %v1015 = vpop.f32.mrf.mxu0
      %1016 = vmatprep.mubr.bf16.mxu0 %v490
      %1017 = vmatmul.mubr.bf16.gmra.mxu0 %v489
      %v1018 = vpop.f32.mrf.mxu0
      %v1019 = vadd.f32 %v858, %v1018
      %v1020 = vpop.f32.mrf.mxu0
      %v1021 = vpop.f32.mrf.mxu0
      %v1022 = vadd.f32 %v861, %v1021
      %v1023 = vpop.f32.mrf.mxu0
      %1024 = vmatprep.mubr.bf16.mxu0 %v494
      %1025 = vmatmul.mubr.bf16.gmra.mxu0 %v493
      %v1026 = vpop.f32.mrf.mxu0
      %v1027 = vadd.f32 %v866, %v1026
      %v1028 = vpop.f32.mrf.mxu0
      %v1029 = vpop.f32.mrf.mxu0
      %v1030 = vadd.f32 %v869, %v1029
      %v1031 = vpop.f32.mrf.mxu0
      %1032 = vmatprep.mubr.bf16.mxu0 %v498
      %1033 = vmatmul.mubr.bf16.gmra.mxu0 %v497
      %v1034 = vpop.f32.mrf.mxu0
      %v1035 = vadd.f32 %v874, %v1034
      %v1036 = vpop.f32.mrf.mxu0
      %v1037 = vpop.f32.mrf.mxu0
      %v1038 = vadd.f32 %v877, %v1037
      %v1039 = vpop.f32.mrf.mxu0
      %1040 = vmatprep.mubr.bf16.mxu0 %v502
      %1041 = vmatmul.mubr.bf16.gmra.mxu0 %v501
      %v1042 = vpop.f32.mrf.mxu0
      %v1043 = vadd.f32 %v882, %v1042
      %v1044 = vpop.f32.mrf.mxu0
      %v1045 = vpop.f32.mrf.mxu0
      %v1046 = vadd.f32 %v885, %v1045
      %v1047 = vpop.f32.mrf.mxu0
      %1048 = vmatprep.mubr.bf16.mxu0 %v506
      %1049 = vmatmul.mubr.bf16.gmra.mxu0 %v505
      %v1050 = vpop.f32.mrf.mxu0
      %v1051 = vadd.f32 %v890, %v1050
      %v1052 = vpop.f32.mrf.mxu0
      %v1053 = vpop.f32.mrf.mxu0
      %v1054 = vadd.f32 %v893, %v1053
      %v1055 = vpop.f32.mrf.mxu0
      %1056 = vmatprep.mubr.bf16.mxu0 %v510
      %1057 = vmatmul.mubr.bf16.gmra.mxu0 %v509
      %v1058 = vpop.f32.mrf.mxu0
      %v1059 = vadd.f32 %v898, %v1058
      %v1060 = vpop.f32.mrf.mxu0
      %v1061 = vpop.f32.mrf.mxu0
      %v1062 = vadd.f32 %v901, %v1061
      %v1063 = vpop.f32.mrf.mxu0
      %1064 = vmatprep.mubr.bf16.mxu0 %v514
      %1065 = vmatmul.mubr.bf16.gmra.mxu0 %v513
      %v1066 = vpop.f32.mrf.mxu0
      %v1067 = vadd.f32 %v906, %v1066
      %v1068 = vpop.f32.mrf.mxu0
      %v1069 = vpop.f32.mrf.mxu0
      %v1070 = vadd.f32 %v909, %v1069
      %v1071 = vpop.f32.mrf.mxu0
      %1072 = vmatprep.mubr.bf16.mxu0 %v518
      %1073 = vmatmul.mubr.bf16.gmra.mxu0 %v517
      %v1074 = vpop.f32.mrf.mxu0
      %v1075 = vadd.f32 %v914, %v1074
      %v1076 = vpop.f32.mrf.mxu0
      %v1077 = vpop.f32.mrf.mxu0
      %v1078 = vadd.f32 %v917, %v1077
      %v1079 = vpop.f32.mrf.mxu0
      %1080 = vmatprep.mubr.bf16.mxu0 %v522
      %1081 = vmatmul.mubr.bf16.gmra.mxu0 %v521
      %v1082 = vpop.f32.mrf.mxu0
      %v1083 = vadd.f32 %v922, %v1082
      %v1084 = vpop.f32.mrf.mxu0
      %v1085 = vpop.f32.mrf.mxu0
      %v1086 = vadd.f32 %v925, %v1085
      %v1087 = vpop.f32.mrf.mxu0
      %1088 = vmatprep.mubr.bf16.mxu0 %v526
      %1089 = vmatmul.mubr.bf16.gmra.mxu0 %v525
      %v1090 = vpop.f32.mrf.mxu0
      %v1091 = vadd.f32 %v930, %v1090
      %v1092 = vpop.f32.mrf.mxu0
      %v1093 = vpop.f32.mrf.mxu0
      %v1094 = vadd.f32 %v933, %v1093
      %v1095 = vpop.f32.mrf.mxu0
      %1096 = vmatprep.mubr.bf16.mxu0 %v530
      %1097 = vmatmul.mubr.bf16.gmra.mxu0 %v529
      %v1098 = vpop.f32.mrf.mxu0
      %v1099 = vadd.f32 %v938, %v1098
      %v1100 = vpop.f32.mrf.mxu0
      %v1101 = vpop.f32.mrf.mxu0
      %v1102 = vadd.f32 %v941, %v1101
      %v1103 = vpop.f32.mrf.mxu0
      %1104 = vmatprep.mubr.bf16.mxu0 %v534
      %1105 = vmatmul.mubr.bf16.gmra.mxu0 %v533
      %v1106 = vpop.f32.mrf.mxu0
      %v1107 = vadd.f32 %v946, %v1106
      %v1108 = vpop.f32.mrf.mxu0
      %v1109 = vpop.f32.mrf.mxu0
      %v1110 = vadd.f32 %v949, %v1109
      %v1111 = vpop.f32.mrf.mxu0
      %1112 = vdwg.mxu0
      %v1113 = vmax.f32 %v987, 0.0
      %v1114 = vmax.f32 %v990, 0.0
      %v1115 = vmax.f32 %v995, 0.0
      %v1116 = vmax.f32 %v998, 0.0
      %v1117 = vmax.f32 %v1003, 0.0
      %v1118 = vmax.f32 %v1006, 0.0
      %v1119 = vmax.f32 %v1011, 0.0
      %v1120 = vmax.f32 %v1014, 0.0
      %v1121 = vmax.f32 %v1019, 0.0
      %v1122 = vmax.f32 %v1022, 0.0
      %v1123 = vmax.f32 %v1027, 0.0
      %v1124 = vmax.f32 %v1030, 0.0
      %v1125 = vmax.f32 %v1035, 0.0
      %v1126 = vmax.f32 %v1038, 0.0
      %v1127 = vmax.f32 %v1043, 0.0
      %v1128 = vmax.f32 %v1046, 0.0
      %v1129 = vmax.f32 %v1051, 0.0
      %v1130 = vmax.f32 %v1054, 0.0
      %v1131 = vmax.f32 %v1059, 0.0
      %v1132 = vmax.f32 %v1062, 0.0
      %v1133 = vmax.f32 %v1067, 0.0
      %v1134 = vmax.f32 %v1070, 0.0
      %v1135 = vmax.f32 %v1075, 0.0
      %v1136 = vmax.f32 %v1078, 0.0
      %v1137 = vmax.f32 %v1083, 0.0
      %v1138 = vmax.f32 %v1086, 0.0
      %v1139 = vmax.f32 %v1091, 0.0
      %v1140 = vmax.f32 %v1094, 0.0
      %v1141 = vmax.f32 %v1099, 0.0
      %v1142 = vmax.f32 %v1102, 0.0
      %v1143 = vmax.f32 %v1107, 0.0
      %v1144 = vmax.f32 %v1110, 0.0
      %v1145 = vpack.c.bf16 %v1114, %v1113
      %v1146 = vpack.c.bf16 %v1116, %v1115
      %v1147 = vpack.c.bf16 %v1118, %v1117
      %v1148 = vpack.c.bf16 %v1120, %v1119
      %v1149 = vpack.c.bf16 %v1122, %v1121
      %v1150 = vpack.c.bf16 %v1124, %v1123
      %v1151 = vpack.c.bf16 %v1126, %v1125
      %v1152 = vpack.c.bf16 %v1128, %v1127
      %v1153 = vpack.c.bf16 %v1130, %v1129
      %v1154 = vpack.c.bf16 %v1132, %v1131
      %v1155 = vpack.c.bf16 %v1134, %v1133
      %v1156 = vpack.c.bf16 %v1136, %v1135
      %v1157 = vpack.c.bf16 %v1138, %v1137
      %v1158 = vpack.c.bf16 %v1140, %v1139
      %v1159 = vpack.c.bf16 %v1142, %v1141
      %v1160 = vpack.c.bf16 %v1144, %v1143
      %v1177 = vunpack.c.l.b16 %v1145
      %v1178 = vunpack.c.h.b16 %v1145
      %v1179 = vunpack.c.l.b16 %v1146
      %v1180 = vunpack.c.h.b16 %v1146
      %v1181 = vunpack.c.l.b16 %v1147
      %v1182 = vunpack.c.h.b16 %v1147
      %v1183 = vunpack.c.l.b16 %v1148
      %v1184 = vunpack.c.h.b16 %v1148
      %v1185 = vunpack.c.l.b16 %v1149
      %v1186 = vunpack.c.h.b16 %v1149
      %v1187 = vunpack.c.l.b16 %v1150
      %v1188 = vunpack.c.h.b16 %v1150
      %v1189 = vunpack.c.l.b16 %v1151
      %v1190 = vunpack.c.h.b16 %v1151
      %v1191 = vunpack.c.l.b16 %v1152
      %v1192 = vunpack.c.h.b16 %v1152
      %v1193 = vunpack.c.l.b16 %v1153
      %v1194 = vunpack.c.h.b16 %v1153
      %v1195 = vunpack.c.l.b16 %v1154
      %v1196 = vunpack.c.h.b16 %v1154
      %v1197 = vunpack.c.l.b16 %v1155
      %v1198 = vunpack.c.h.b16 %v1155
      %v1199 = vunpack.c.l.b16 %v1156
      %v1200 = vunpack.c.h.b16 %v1156
      %v1201 = vunpack.c.l.b16 %v1157
      %v1202 = vunpack.c.h.b16 %v1157
      %v1203 = vunpack.c.l.b16 %v1158
      %v1204 = vunpack.c.h.b16 %v1158
      %v1205 = vunpack.c.l.b16 %v1159
      %v1206 = vunpack.c.h.b16 %v1159
      %v1207 = vunpack.c.l.b16 %v1160
      %v1208 = vunpack.c.h.b16 %v1160
      %v1209 = vpack.c.b16 %v1177, %v1177
      %v1210 = vpack.c.b16 %v1178, %v1178
      %v1211 = vpack.c.b16 %v1179, %v1179
      %v1212 = vpack.c.b16 %v1180, %v1180
      %v1213 = vpack.c.b16 %v1181, %v1181
      %v1214 = vpack.c.b16 %v1182, %v1182
      %v1215 = vpack.c.b16 %v1183, %v1183
      %v1216 = vpack.c.b16 %v1184, %v1184
      %v1217 = vpack.c.b16 %v1185, %v1185
      %v1218 = vpack.c.b16 %v1186, %v1186
      %v1219 = vpack.c.b16 %v1187, %v1187
      %v1220 = vpack.c.b16 %v1188, %v1188
      %v1221 = vpack.c.b16 %v1189, %v1189
      %v1222 = vpack.c.b16 %v1190, %v1190
      %v1223 = vpack.c.b16 %v1191, %v1191
      %v1224 = vpack.c.b16 %v1192, %v1192
      %v1225 = vpack.c.b16 %v1193, %v1193
      %v1226 = vpack.c.b16 %v1194, %v1194
      %v1227 = vpack.c.b16 %v1195, %v1195
      %v1228 = vpack.c.b16 %v1196, %v1196
      %v1229 = vpack.c.b16 %v1197, %v1197
      %v1230 = vpack.c.b16 %v1198, %v1198
      %v1231 = vpack.c.b16 %v1199, %v1199
      %v1232 = vpack.c.b16 %v1200, %v1200
      %v1233 = vpack.c.b16 %v1201, %v1201
      %v1234 = vpack.c.b16 %v1202, %v1202
      %v1235 = vpack.c.b16 %v1203, %v1203
      %v1236 = vpack.c.b16 %v1204, %v1204
      %v1237 = vpack.c.b16 %v1205, %v1205
      %v1238 = vpack.c.b16 %v1206, %v1206
      %v1239 = vpack.c.b16 %v1207, %v1207
      %v1240 = vpack.c.b16 %v1208, %v1208
      %1273 = vst [vmem:[%s148] sm:$0xf] %v1209
      %1274 = vst [vmem:[%s148 + $0x4] sm:$0xf] %v1210
      %1275 = vst [vmem:[%s148 + $0x8] sm:$0xf] %v1211
      %1276 = vst [vmem:[%s148 + $0xc] sm:$0xf] %v1212
      %1277 = vst [vmem:[%s148 + $0x10] sm:$0xf] %v1213
      %1278 = vst [vmem:[%s148 + $0x14] sm:$0xf] %v1214
      %1279 = vst [vmem:[%s148 + $0x18] sm:$0xf] %v1215
      %1280 = vst [vmem:[%s148 + $0x1c] sm:$0xf] %v1216
      %1281 = vst [vmem:[%s148 + $0x20] sm:$0xf] %v1217
      %1282 = vst [vmem:[%s148 + $0x24] sm:$0xf] %v1218
      %1283 = vst [vmem:[%s148 + $0x28] sm:$0xf] %v1219
      %1284 = vst [vmem:[%s148 + $0x2c] sm:$0xf] %v1220
      %1285 = vst [vmem:[%s148 + $0x30] sm:$0xf] %v1221
      %1286 = vst [vmem:[%s148 + $0x34] sm:$0xf] %v1222
      %1287 = vst [vmem:[%s148 + $0x38] sm:$0xf] %v1223
      %1288 = vst [vmem:[%s148 + $0x3c] sm:$0xf] %v1224
      %1289 = vst [vmem:[%s148 + $0x40] sm:$0xf] %v1225
      %1290 = vst [vmem:[%s148 + $0x44] sm:$0xf] %v1226
      %1291 = vst [vmem:[%s148 + $0x48] sm:$0xf] %v1227
      %1292 = vst [vmem:[%s148 + $0x4c] sm:$0xf] %v1228
      %1293 = vst [vmem:[%s148 + $0x50] sm:$0xf] %v1229
      %1294 = vst [vmem:[%s148 + $0x54] sm:$0xf] %v1230
      %1295 = vst [vmem:[%s148 + $0x58] sm:$0xf] %v1231
      %1296 = vst [vmem:[%s148 + $0x5c] sm:$0xf] %v1232
      %1297 = vst [vmem:[%s148 + $0x60] sm:$0xf] %v1233
      %1298 = vst [vmem:[%s148 + $0x64] sm:$0xf] %v1234
      %1299 = vst [vmem:[%s148 + $0x68] sm:$0xf] %v1235
      %1300 = vst [vmem:[%s148 + $0x6c] sm:$0xf] %v1236
      %1301 = vst [vmem:[%s148 + $0x70] sm:$0xf] %v1237
      %1302 = vst [vmem:[%s148 + $0x74] sm:$0xf] %v1238
      %1303 = vst [vmem:[%s148 + $0x78] sm:$0xf] %v1239
      %1304 = vst [vmem:[%s148 + $0x7c] sm:$0xf] %v1240
      %s1305 = smul.u32 32, %s13
      %p1306 = scmp.lt.s32.totalorder %s1305, 63
      %s1307 = scalar_select %p1306, %s1305, 63
      %s1308 = smul.addr %s1307, 4
      %s1309 = scalar_lea.vmem %s2, %s1308
      // Predicated region
      $region29: #{gae_forward.6} parent=27 // pred_check
        %p1310 = pneg %p78
      $region30: #{gae_forward.6} parent=27 // pred_check_branch
        %1312 = sbr.rel (%p1310) target = $region32
      $region31: #{gae_forward.6} parent=27 // pred_region
        %s1313 = smul.u32 32, %s13
      $region32: #{gae_forward.6} parent=27 // pred_fallthru
        _
    $region28: #{gae_forward.6} parent=5 // pred_fallthru
      _
    %p1314 = scmp.le.s32.totalorder 2, %s8
    // Predicated region
    $region33: #{gae_forward.6} parent=5 // pred_check
      %p1315 = pneg %p1314
    $region34: #{gae_forward.6} parent=5 // pred_check_branch
      %1317 = sbr.rel (%p1315) target = $region36
    $region35: #{gae_forward.6} parent=5 // pred_region
      %s1318 = ssub.s32 %s8, 2
      // Predicated region
      $region37: #{gae_forward.6} parent=35 // pred_check
        %p1319 = pneg %p84
      $region38: #{gae_forward.6} parent=35 // pred_check_branch
        %1321 = sbr.rel (%p1319) target = $region40
      $region39: #{gae_forward.6} parent=35 // pred_region
        %s1322 = smul.u32 32, %s14
        %p1323 = scmp.lt.s32.totalorder %s1322, 63
        %s1324 = scalar_select %p1323, %s1322, 63
        %s1325 = smul.addr %s1324, 4
        %s1326 = scalar_lea.vmem %s2, %s1325
      $region40: #{gae_forward.6} parent=35 // pred_fallthru
        _
    $region36: #{gae_forward.6} parent=5 // pred_fallthru
      _
  $region6: #{gae_forward.6} parent=0 // loop_footer
    %s12 = sadd.s32 1, %s8
  $region7: #{gae_forward.6} parent=0 // loop_footer_branch
    %7 = sbr.rel target = $region3
  $region8: #{gae_forward.6} parent=0 // loop_exit
    _

// kernel: gae_forward.8
$region0: #{gae_forward.8}
  #allocation0 [shape = 'u32[]', space=smem, size = 0x4, offset = 0x4, fixed_abs, tag = 'smem constant byte address 0x4 - core index']
  #allocation1 [shape = 'u32[144,128]{1,0:T(1,128)}', space=vmem, size = 0x12000, scoped, tag = 'internal scratch']
  %s0 = inlined_call_operand.vmem [shape: bf16[512,512], index: 0, kind: input, shape index: {}]
  %s1 = inlined_call_operand.vmem [shape: bf16[512,64], index: 1, kind: input, shape index: {}]
  %s2 = inlined_call_operand.vmem [shape: f32[512,64], index: 2, kind: output, shape index: {}]
  %s3 = sld [smem:[#allocation0]]
  $region41: #{gae_forward.8} parent=0
    _
  %s5 = ssub.s32 1, %s3
  %s6 = scalar_select 0, %s5, %s3
  loop: start=0, step=1, limit=4
  $region2: #{gae_forward.8} parent=0 // loop_pre_header
    _
  $region3: #{gae_forward.8} parent=0 // loop_header
    %s8 = sphi 0, %s12
    %p9 = scmp.ge.s32.totalorder %s8, 4
    %s18 = sphi 0, %s20
    %s21 = sphi 0, %s18
    %s22 = sphi 0, %s21
    %s38 = sphi 0, %s22
    %s42 = sphi 0, %s42
    %s44 = sphi 0, %s42
    %s45 = sphi 0, %s44
    %s59 = sphi 0, %s45
    %s65 = sphi 0, %s67
    %s68 = sphi 0, %s65
    %s69 = sphi 0, %s68
    %s85 = sphi 0, %s69
  $region4: #{gae_forward.8} parent=0 // loop_header_branch
    %11 = sbr.rel (%p9) target = $region8
  $region5: #{gae_forward.8} parent=0 // loop_body
    %s13 = ssub.s32 %s8, 1
    %s14 = ssub.s32 %s8, 2
    %s15 = sadd.s32 %s8, 1
    %s16 = ssub.s32 %s8, %s15
    %p17 = scmp.eq.s32.totalorder %s16, 0
    %s19 = sadd.s32 %s18, 1
    %s20 = scalar_select %p17, %s18, %s19
    %p23 = pneg %p17
    %p24 = scmp.eq.s32.totalorder %s8, 1
    %p25 = por %p23, %p24
    %p26 = scmp.ne.s32.totalorder %s18, %s21
    %p27 = scmp.eq.s32.totalorder %s8, 0
    %p28 = por %p26, %p27
    %p29 = scmp.ne.s32.totalorder %s18, %s21
    %p30 = scmp.eq.s32.totalorder %s13, 1
    %p31 = por %p29, %p30
    %p32 = scmp.ne.s32.totalorder %s21, %s22
    %p33 = scmp.eq.s32.totalorder %s13, 0
    %p34 = por %p32, %p33
    %p35 = scmp.ne.s32.totalorder %s21, %s22
    %p36 = scmp.eq.s32.totalorder %s14, 1
    %p37 = por %p35, %p36
    %p39 = scmp.ne.s32.totalorder %s22, %s38
    %p40 = scmp.eq.s32.totalorder %s14, 0
    %p41 = por %p39, %p40
    %s43 = sadd.s32 %s42, 1
    %p46 = scmp.eq.s32.totalorder %s8, 1
    %p47 = scmp.ne.s32.totalorder %s42, %s44
    %p48 = scmp.eq.s32.totalorder %s8, 0
    %p49 = por %p47, %p48
    %p50 = scmp.ne.s32.totalorder %s42, %s44
    %p51 = scmp.eq.s32.totalorder %s13, 1
    %p52 = por %p50, %p51
    %p53 = scmp.ne.s32.totalorder %s44, %s45
    %p54 = scmp.eq.s32.totalorder %s13, 0
    %p55 = por %p53, %p54
    %p56 = scmp.ne.s32.totalorder %s44, %s45
    %p57 = scmp.eq.s32.totalorder %s14, 1
    %p58 = por %p56, %p57
    %p60 = scmp.ne.s32.totalorder %s45, %s59
    %p61 = scmp.eq.s32.totalorder %s14, 0
    %p62 = por %p60, %p61
    %s63 = ssub.s32 %s8, %s15
    %p64 = scmp.eq.s32.totalorder %s63, 0
    %s66 = sadd.s32 %s65, 1
    %s67 = scalar_select %p64, %s65, %s66
    %p70 = pneg %p64
    %p71 = scmp.eq.s32.totalorder %s8, 1
    %p72 = por %p70, %p71
    %p73 = scmp.ne.s32.totalorder %s65, %s68
    %p74 = scmp.eq.s32.totalorder %s8, 0
    %p75 = por %p73, %p74
    %p76 = scmp.ne.s32.totalorder %s65, %s68
    %p77 = scmp.eq.s32.totalorder %s13, 1
    %p78 = por %p76, %p77
    %p79 = scmp.ne.s32.totalorder %s68, %s69
    %p80 = scmp.eq.s32.totalorder %s13, 0
    %p81 = por %p79, %p80
    %p82 = scmp.ne.s32.totalorder %s68, %s69
    %p83 = scmp.eq.s32.totalorder %s14, 1
    %p84 = por %p82, %p83
    %p86 = scmp.ne.s32.totalorder %s69, %s85
    %p87 = scmp.eq.s32.totalorder %s14, 0
    %p88 = por %p86, %p87
    %p89 = scmp.le.s32.totalorder 1, %s8
    %p90 = scmp.lt.s32.totalorder %s8, 3
    %p91 = pnand %p89, %p90
    %p92 = pneg %p91
    // Predicated region
    $region9: #{gae_forward.8} parent=5 // pred_check
      _
    $region10: #{gae_forward.8} parent=5 // pred_check_branch
      %94 = sbr.rel (%p91) target = $region12
    $region11: #{gae_forward.8} parent=5 // pred_region
      %s95 = ssub.s32 %s8, 1
      // Predicated region
      $region13: #{gae_forward.8} parent=11 // pred_check
        %p96 = pneg %p55
      $region14: #{gae_forward.8} parent=11 // pred_check_branch
        %98 = sbr.rel (%p96) target = $region16
      $region15: #{gae_forward.8} parent=11 // pred_region
        _
      $region16: #{gae_forward.8} parent=11 // pred_fallthru
        _
    $region12: #{gae_forward.8} parent=5 // pred_fallthru
      _
    %p99 = scmp.lt.s32.totalorder %s8, 2
    // Predicated region
    $region17: #{gae_forward.8} parent=5 // pred_check
      %p100 = pneg %p99
    $region18: #{gae_forward.8} parent=5 // pred_check_branch
      %102 = sbr.rel (%p100) target = $region20
    $region19: #{gae_forward.8} parent=5 // pred_region
      // Predicated region
      $region21: #{gae_forward.8} parent=19 // pred_check
        %p103 = pneg %p28
      $region22: #{gae_forward.8} parent=19 // pred_check_branch
        %105 = sbr.rel (%p103) target = $region24
      $region23: #{gae_forward.8} parent=19 // pred_region
        %s106 = smul.u32 32, %s8
        %p107 = scmp.lt.s32.totalorder %s106, 63
        %s108 = scalar_select %p107, %s106, 63
        %s109 = smul.addr %s108, 4
        %s110 = smul.addr %s109, 4
        %s111 = scalar_lea.vmem %s0, %s110
        %s112 = smul.u32 32, %s8
      $region24: #{gae_forward.8} parent=19 // pred_fallthru
        _
    $region20: #{gae_forward.8} parent=5 // pred_fallthru
      _
    %p113 = scmp.le.s32.totalorder 1, %s8
    %p114 = scmp.lt.s32.totalorder %s8, 3
    %p115 = pnand %p113, %p114
    %p116 = pneg %p115
    // Predicated region
    $region25: #{gae_forward.8} parent=5 // pred_check
      _
    $region26: #{gae_forward.8} parent=5 // pred_check_branch
      %118 = sbr.rel (%p115) target = $region28
    $region27: #{gae_forward.8} parent=5 // pred_region
      %s119 = ssub.s32 %s8, 1
      %s120 = smul.u32 32, %s13
      %p121 = scmp.lt.s32.totalorder %s120, 63
      %s122 = scalar_select %p121, %s120, 63
      %s123 = smul.addr %s122, 4
      %s124 = smul.addr %s123, 4
      %s125 = scalar_lea.vmem %s0, %s124
      %p126 = pneg %p34
      %p127 = pneg %p31
      %p128 = pneg %p55
      %p129 = pneg %p52
      %p130 = pneg %p81
      %p131 = pneg %p78
      %s132 = smul.u32 32, %s13
      %p133 = scmp.lt.s32.totalorder %s132, 63
      %s134 = scalar_select %p133, %s132, 63
      %s135 = smul.addr %s134, 8
      %s136 = scalar_lea.vmem %s2, %s135
      %s137 = smul.u32 32, %s13
      %p138 = scmp.lt.s32.totalorder %s137, 63
      %s139 = scalar_select %p138, %s137, 63
      %s140 = smul.addr %s139, 4
      %s141 = smul.addr %s140, 4
      %s142 = scalar_lea.vmem %s0, %s141
      %s143 = smul.u32 32, %s13
      %s144 = smul.u32 32, %s13
      %p145 = scmp.lt.s32.totalorder %s144, 63
      %s146 = scalar_select %p145, %s144, 63
      %s147 = smul.addr %s146, 8
      %s148 = scalar_lea.vmem %s2, %s147
      %s149 = smul.u32 32, %s13
      %v151 = vld [vmem:[%s142] sm:$0xff]
      %v152 = vld [vmem:[%s142 + $0x8] sm:$0xff]
      %v153 = vld [vmem:[%s142 + $0x10] sm:$0xff]
      %v154 = vld [vmem:[%s142 + $0x18] sm:$0xff]
      %v155 = vld [vmem:[%s142 + $0x20] sm:$0xff]
      %v156 = vld [vmem:[%s142 + $0x28] sm:$0xff]
      %v157 = vld [vmem:[%s142 + $0x30] sm:$0xff]
      %v158 = vld [vmem:[%s142 + $0x38] sm:$0xff]
      %v159 = vld [vmem:[%s142 + $0x40] sm:$0xff]
      %v160 = vld [vmem:[%s142 + $0x48] sm:$0xff]
      %v161 = vld [vmem:[%s142 + $0x50] sm:$0xff]
      %v162 = vld [vmem:[%s142 + $0x58] sm:$0xff]
      %v163 = vld [vmem:[%s142 + $0x60] sm:$0xff]
      %v164 = vld [vmem:[%s142 + $0x68] sm:$0xff]
      %v165 = vld [vmem:[%s142 + $0x70] sm:$0xff]
      %v166 = vld [vmem:[%s142 + $0x78] sm:$0xff]
      %v167 = vld [vmem:[%s142 + $0x80] sm:$0xff]
      %v168 = vld [vmem:[%s142 + $0x88] sm:$0xff]
      %v169 = vld [vmem:[%s142 + $0x90] sm:$0xff]
      %v170 = vld [vmem:[%s142 + $0x98] sm:$0xff]
      %v171 = vld [vmem:[%s142 + $0xa0] sm:$0xff]
      %v172 = vld [vmem:[%s142 + $0xa8] sm:$0xff]
      %v173 = vld [vmem:[%s142 + $0xb0] sm:$0xff]
      %v174 = vld [vmem:[%s142 + $0xb8] sm:$0xff]
      %v175 = vld [vmem:[%s142 + $0xc0] sm:$0xff]
      %v176 = vld [vmem:[%s142 + $0xc8] sm:$0xff]
      %v177 = vld [vmem:[%s142 + $0xd0] sm:$0xff]
      %v178 = vld [vmem:[%s142 + $0xd8] sm:$0xff]
      %v179 = vld [vmem:[%s142 + $0xe0] sm:$0xff]
      %v180 = vld [vmem:[%s142 + $0xe8] sm:$0xff]
      %v181 = vld [vmem:[%s142 + $0xf0] sm:$0xff]
      %v182 = vld [vmem:[%s142 + $0xf8] sm:$0xff]
      %v183 = vld [vmem:[%s142 + $0x100] sm:$0xff]
      %v184 = vld [vmem:[%s142 + $0x108] sm:$0xff]
      %v185 = vld [vmem:[%s142 + $0x110] sm:$0xff]
      %v186 = vld [vmem:[%s142 + $0x118] sm:$0xff]
      %v187 = vld [vmem:[%s142 + $0x120] sm:$0xff]
      %v188 = vld [vmem:[%s142 + $0x128] sm:$0xff]
      %v189 = vld [vmem:[%s142 + $0x130] sm:$0xff]
      %v190 = vld [vmem:[%s142 + $0x138] sm:$0xff]
      %v191 = vld [vmem:[%s142 + $0x140] sm:$0xff]
      %v192 = vld [vmem:[%s142 + $0x148] sm:$0xff]
      %v193 = vld [vmem:[%s142 + $0x150] sm:$0xff]
      %v194 = vld [vmem:[%s142 + $0x158] sm:$0xff]
      %v195 = vld [vmem:[%s142 + $0x160] sm:$0xff]
      %v196 = vld [vmem:[%s142 + $0x168] sm:$0xff]
      %v197 = vld [vmem:[%s142 + $0x170] sm:$0xff]
      %v198 = vld [vmem:[%s142 + $0x178] sm:$0xff]
      %v199 = vld [vmem:[%s142 + $0x180] sm:$0xff]
      %v200 = vld [vmem:[%s142 + $0x188] sm:$0xff]
      %v201 = vld [vmem:[%s142 + $0x190] sm:$0xff]
      %v202 = vld [vmem:[%s142 + $0x198] sm:$0xff]
      %v203 = vld [vmem:[%s142 + $0x1a0] sm:$0xff]
      %v204 = vld [vmem:[%s142 + $0x1a8] sm:$0xff]
      %v205 = vld [vmem:[%s142 + $0x1b0] sm:$0xff]
      %v206 = vld [vmem:[%s142 + $0x1b8] sm:$0xff]
      %v207 = vld [vmem:[%s142 + $0x1c0] sm:$0xff]
      %v208 = vld [vmem:[%s142 + $0x1c8] sm:$0xff]
      %v209 = vld [vmem:[%s142 + $0x1d0] sm:$0xff]
      %v210 = vld [vmem:[%s142 + $0x1d8] sm:$0xff]
      %v211 = vld [vmem:[%s142 + $0x1e0] sm:$0xff]
      %v212 = vld [vmem:[%s142 + $0x1e8] sm:$0xff]
      %v213 = vld [vmem:[%s142 + $0x1f0] sm:$0xff]
      %v214 = vld [vmem:[%s142 + $0x1f8] sm:$0xff]
      %v215 = vld [vmem:[%s1] sm:$0xf]
      %v216 = vld [vmem:[%s1 + $0x4] sm:$0xf]
      %v217 = vld [vmem:[%s1 + $0x8] sm:$0xf]
      %v218 = vld [vmem:[%s1 + $0xc] sm:$0xf]
      %v219 = vld [vmem:[%s1 + $0x10] sm:$0xf]
      %v220 = vld [vmem:[%s1 + $0x14] sm:$0xf]
      %v221 = vld [vmem:[%s1 + $0x18] sm:$0xf]
      %v222 = vld [vmem:[%s1 + $0x1c] sm:$0xf]
      %v223 = vld [vmem:[%s1 + $0x20] sm:$0xf]
      %v224 = vld [vmem:[%s1 + $0x24] sm:$0xf]
      %v225 = vld [vmem:[%s1 + $0x28] sm:$0xf]
      %v226 = vld [vmem:[%s1 + $0x2c] sm:$0xf]
      %v227 = vld [vmem:[%s1 + $0x30] sm:$0xf]
      %v228 = vld [vmem:[%s1 + $0x34] sm:$0xf]
      %v229 = vld [vmem:[%s1 + $0x38] sm:$0xf]
      %v230 = vld [vmem:[%s1 + $0x3c] sm:$0xf]
      %v231 = vld [vmem:[%s1 + $0x40] sm:$0xf]
      %v232 = vld [vmem:[%s1 + $0x44] sm:$0xf]
      %v233 = vld [vmem:[%s1 + $0x48] sm:$0xf]
      %v234 = vld [vmem:[%s1 + $0x4c] sm:$0xf]
      %v235 = vld [vmem:[%s1 + $0x50] sm:$0xf]
      %v236 = vld [vmem:[%s1 + $0x54] sm:$0xf]
      %v237 = vld [vmem:[%s1 + $0x58] sm:$0xf]
      %v238 = vld [vmem:[%s1 + $0x5c] sm:$0xf]
      %v239 = vld [vmem:[%s1 + $0x60] sm:$0xf]
      %v240 = vld [vmem:[%s1 + $0x64] sm:$0xf]
      %v241 = vld [vmem:[%s1 + $0x68] sm:$0xf]
      %v242 = vld [vmem:[%s1 + $0x6c] sm:$0xf]
      %v243 = vld [vmem:[%s1 + $0x70] sm:$0xf]
      %v244 = vld [vmem:[%s1 + $0x74] sm:$0xf]
      %v245 = vld [vmem:[%s1 + $0x78] sm:$0xf]
      %v246 = vld [vmem:[%s1 + $0x7c] sm:$0xf]
      %v247 = vld [vmem:[%s1 + $0x80] sm:$0xf]
      %v248 = vld [vmem:[%s1 + $0x84] sm:$0xf]
      %v249 = vld [vmem:[%s1 + $0x88] sm:$0xf]
      %v250 = vld [vmem:[%s1 + $0x8c] sm:$0xf]
      %v251 = vld [vmem:[%s1 + $0x90] sm:$0xf]
      %v252 = vld [vmem:[%s1 + $0x94] sm:$0xf]
      %v253 = vld [vmem:[%s1 + $0x98] sm:$0xf]
      %v254 = vld [vmem:[%s1 + $0x9c] sm:$0xf]
      %v255 = vld [vmem:[%s1 + $0xa0] sm:$0xf]
      %v256 = vld [vmem:[%s1 + $0xa4] sm:$0xf]
      %v257 = vld [vmem:[%s1 + $0xa8] sm:$0xf]
      %v258 = vld [vmem:[%s1 + $0xac] sm:$0xf]
      %v259 = vld [vmem:[%s1 + $0xb0] sm:$0xf]
      %v260 = vld [vmem:[%s1 + $0xb4] sm:$0xf]
      %v261 = vld [vmem:[%s1 + $0xb8] sm:$0xf]
      %v262 = vld [vmem:[%s1 + $0xbc] sm:$0xf]
      %v263 = vld [vmem:[%s1 + $0xc0] sm:$0xf]
      %v264 = vld [vmem:[%s1 + $0xc4] sm:$0xf]
      %v265 = vld [vmem:[%s1 + $0xc8] sm:$0xf]
      %v266 = vld [vmem:[%s1 + $0xcc] sm:$0xf]
      %v267 = vld [vmem:[%s1 + $0xd0] sm:$0xf]
      %v268 = vld [vmem:[%s1 + $0xd4] sm:$0xf]
      %v269 = vld [vmem:[%s1 + $0xd8] sm:$0xf]
      %v270 = vld [vmem:[%s1 + $0xdc] sm:$0xf]
      %v271 = vld [vmem:[%s1 + $0xe0] sm:$0xf]
      %v272 = vld [vmem:[%s1 + $0xe4] sm:$0xf]
      %v273 = vld [vmem:[%s1 + $0xe8] sm:$0xf]
      %v274 = vld [vmem:[%s1 + $0xec] sm:$0xf]
      %v275 = vld [vmem:[%s1 + $0xf0] sm:$0xf]
      %v276 = vld [vmem:[%s1 + $0xf4] sm:$0xf]
      %v277 = vld [vmem:[%s1 + $0xf8] sm:$0xf]
      %v278 = vld [vmem:[%s1 + $0xfc] sm:$0xf]
      %v343 = vunpack.c.l.b16 %v151
      %v344 = vunpack.c.h.b16 %v151
      %v345 = vunpack.c.l.b16 %v152
      %v346 = vunpack.c.h.b16 %v152
      %v347 = vunpack.c.l.b16 %v153
      %v348 = vunpack.c.h.b16 %v153
      %v349 = vunpack.c.l.b16 %v154
      %v350 = vunpack.c.h.b16 %v154
      %v351 = vunpack.c.l.b16 %v155
      %v352 = vunpack.c.h.b16 %v155
      %v353 = vunpack.c.l.b16 %v156
      %v354 = vunpack.c.h.b16 %v156
      %v355 = vunpack.c.l.b16 %v157
      %v356 = vunpack.c.h.b16 %v157
      %v357 = vunpack.c.l.b16 %v158
      %v358 = vunpack.c.h.b16 %v158
      %v359 = vunpack.c.l.b16 %v159
      %v360 = vunpack.c.h.b16 %v159
      %v361 = vunpack.c.l.b16 %v160
      %v362 = vunpack.c.h.b16 %v160
      %v363 = vunpack.c.l.b16 %v161
      %v364 = vunpack.c.h.b16 %v161
      %v365 = vunpack.c.l.b16 %v162
      %v366 = vunpack.c.h.b16 %v162
      %v367 = vunpack.c.l.b16 %v163
      %v368 = vunpack.c.h.b16 %v163
      %v369 = vunpack.c.l.b16 %v164
      %v370 = vunpack.c.h.b16 %v164
      %v371 = vunpack.c.l.b16 %v165
      %v372 = vunpack.c.h.b16 %v165
      %v373 = vunpack.c.l.b16 %v166
      %v374 = vunpack.c.h.b16 %v166
      %v375 = vunpack.c.l.b16 %v167
      %v376 = vunpack.c.h.b16 %v167
      %v377 = vunpack.c.l.b16 %v168
      %v378 = vunpack.c.h.b16 %v168
      %v379 = vunpack.c.l.b16 %v169
      %v380 = vunpack.c.h.b16 %v169
      %v381 = vunpack.c.l.b16 %v170
      %v382 = vunpack.c.h.b16 %v170
      %v383 = vunpack.c.l.b16 %v171
      %v384 = vunpack.c.h.b16 %v171
      %v385 = vunpack.c.l.b16 %v172
      %v386 = vunpack.c.h.b16 %v172
      %v387 = vunpack.c.l.b16 %v173
      %v388 = vunpack.c.h.b16 %v173
      %v389 = vunpack.c.l.b16 %v174
      %v390 = vunpack.c.h.b16 %v174
      %v391 = vunpack.c.l.b16 %v175
      %v392 = vunpack.c.h.b16 %v175
      %v393 = vunpack.c.l.b16 %v176
      %v394 = vunpack.c.h.b16 %v176
      %v395 = vunpack.c.l.b16 %v177
      %v396 = vunpack.c.h.b16 %v177
      %v397 = vunpack.c.l.b16 %v178
      %v398 = vunpack.c.h.b16 %v178
      %v399 = vunpack.c.l.b16 %v179
      %v400 = vunpack.c.h.b16 %v179
      %v401 = vunpack.c.l.b16 %v180
      %v402 = vunpack.c.h.b16 %v180
      %v403 = vunpack.c.l.b16 %v181
      %v404 = vunpack.c.h.b16 %v181
      %v405 = vunpack.c.l.b16 %v182
      %v406 = vunpack.c.h.b16 %v182
      %v407 = vunpack.c.l.b16 %v183
      %v408 = vunpack.c.h.b16 %v183
      %v409 = vunpack.c.l.b16 %v184
      %v410 = vunpack.c.h.b16 %v184
      %v411 = vunpack.c.l.b16 %v185
      %v412 = vunpack.c.h.b16 %v185
      %v413 = vunpack.c.l.b16 %v186
      %v414 = vunpack.c.h.b16 %v186
      %v415 = vunpack.c.l.b16 %v187
      %v416 = vunpack.c.h.b16 %v187
      %v417 = vunpack.c.l.b16 %v188
      %v418 = vunpack.c.h.b16 %v188
      %v419 = vunpack.c.l.b16 %v189
      %v420 = vunpack.c.h.b16 %v189
      %v421 = vunpack.c.l.b16 %v190
      %v422 = vunpack.c.h.b16 %v190
      %v423 = vunpack.c.l.b16 %v191
      %v424 = vunpack.c.h.b16 %v191
      %v425 = vunpack.c.l.b16 %v192
      %v426 = vunpack.c.h.b16 %v192
      %v427 = vunpack.c.l.b16 %v193
      %v428 = vunpack.c.h.b16 %v193
      %v429 = vunpack.c.l.b16 %v194
      %v430 = vunpack.c.h.b16 %v194
      %v431 = vunpack.c.l.b16 %v195
      %v432 = vunpack.c.h.b16 %v195
      %v433 = vunpack.c.l.b16 %v196
      %v434 = vunpack.c.h.b16 %v196
      %v435 = vunpack.c.l.b16 %v197
      %v436 = vunpack.c.h.b16 %v197
      %v437 = vunpack.c.l.b16 %v198
      %v438 = vunpack.c.h.b16 %v198
      %v439 = vunpack.c.l.b16 %v199
      %v440 = vunpack.c.h.b16 %v199
      %v441 = vunpack.c.l.b16 %v200
      %v442 = vunpack.c.h.b16 %v200
      %v443 = vunpack.c.l.b16 %v201
      %v444 = vunpack.c.h.b16 %v201
      %v445 = vunpack.c.l.b16 %v202
      %v446 = vunpack.c.h.b16 %v202
      %v447 = vunpack.c.l.b16 %v203
      %v448 = vunpack.c.h.b16 %v203
      %v449 = vunpack.c.l.b16 %v204
      %v450 = vunpack.c.h.b16 %v204
      %v451 = vunpack.c.l.b16 %v205
      %v452 = vunpack.c.h.b16 %v205
      %v453 = vunpack.c.l.b16 %v206
      %v454 = vunpack.c.h.b16 %v206
      %v455 = vunpack.c.l.b16 %v207
      %v456 = vunpack.c.h.b16 %v207
      %v457 = vunpack.c.l.b16 %v208
      %v458 = vunpack.c.h.b16 %v208
      %v459 = vunpack.c.l.b16 %v209
      %v460 = vunpack.c.h.b16 %v209
      %v461 = vunpack.c.l.b16 %v210
      %v462 = vunpack.c.h.b16 %v210
      %v463 = vunpack.c.l.b16 %v211
      %v464 = vunpack.c.h.b16 %v211
      %v465 = vunpack.c.l.b16 %v212
      %v466 = vunpack.c.h.b16 %v212
      %v467 = vunpack.c.l.b16 %v213
      %v468 = vunpack.c.h.b16 %v213
      %v469 = vunpack.c.l.b16 %v214
      %v470 = vunpack.c.h.b16 %v214
      %v471 = vpack.c.b16 %v347, %v343
      %v472 = vpack.c.b16 %v348, %v344
      %v473 = vpack.c.b16 %v349, %v345
      %v474 = vpack.c.b16 %v350, %v346
      %v475 = vpack.c.b16 %v355, %v351
      %v476 = vpack.c.b16 %v356, %v352
      %v477 = vpack.c.b16 %v357, %v353
      %v478 = vpack.c.b16 %v358, %v354
      %v479 = vpack.c.b16 %v363, %v359
      %v480 = vpack.c.b16 %v364, %v360
      %v481 = vpack.c.b16 %v365, %v361
      %v482 = vpack.c.b16 %v366, %v362
      %v483 = vpack.c.b16 %v371, %v367
      %v484 = vpack.c.b16 %v372, %v368
      %v485 = vpack.c.b16 %v373, %v369
      %v486 = vpack.c.b16 %v374, %v370
      %v487 = vpack.c.b16 %v379, %v375
      %v488 = vpack.c.b16 %v380, %v376
      %v489 = vpack.c.b16 %v381, %v377
      %v490 = vpack.c.b16 %v382, %v378
      %v491 = vpack.c.b16 %v387, %v383
      %v492 = vpack.c.b16 %v388, %v384
      %v493 = vpack.c.b16 %v389, %v385
      %v494 = vpack.c.b16 %v390, %v386
      %v495 = vpack.c.b16 %v395, %v391
      %v496 = vpack.c.b16 %v396, %v392
      %v497 = vpack.c.b16 %v397, %v393
      %v498 = vpack.c.b16 %v398, %v394
      %v499 = vpack.c.b16 %v403, %v399
      %v500 = vpack.c.b16 %v404, %v400
      %v501 = vpack.c.b16 %v405, %v401
      %v502 = vpack.c.b16 %v406, %v402
      %v503 = vpack.c.b16 %v411, %v407
      %v504 = vpack.c.b16 %v412, %v408
      %v505 = vpack.c.b16 %v413, %v409
      %v506 = vpack.c.b16 %v414, %v410
      %v507 = vpack.c.b16 %v419, %v415
      %v508 = vpack.c.b16 %v420, %v416
      %v509 = vpack.c.b16 %v421, %v417
      %v510 = vpack.c.b16 %v422, %v418
      %v511 = vpack.c.b16 %v427, %v423
      %v512 = vpack.c.b16 %v428, %v424
      %v513 = vpack.c.b16 %v429, %v425
      %v514 = vpack.c.b16 %v430, %v426
      %v515 = vpack.c.b16 %v435, %v431
      %v516 = vpack.c.b16 %v436, %v432
      %v517 = vpack.c.b16 %v437, %v433
      %v518 = vpack.c.b16 %v438, %v434
      %v519 = vpack.c.b16 %v443, %v439
      %v520 = vpack.c.b16 %v444, %v440
      %v521 = vpack.c.b16 %v445, %v441
      %v522 = vpack.c.b16 %v446, %v442
      %v523 = vpack.c.b16 %v451, %v447
      %v524 = vpack.c.b16 %v452, %v448
      %v525 = vpack.c.b16 %v453, %v449
      %v526 = vpack.c.b16 %v454, %v450
      %v527 = vpack.c.b16 %v459, %v455
      %v528 = vpack.c.b16 %v460, %v456
      %v529 = vpack.c.b16 %v461, %v457
      %v530 = vpack.c.b16 %v462, %v458
      %v531 = vpack.c.b16 %v467, %v463
      %v532 = vpack.c.b16 %v468, %v464
      %v533 = vpack.c.b16 %v469, %v465
      %v534 = vpack.c.b16 %v470, %v466
      %v663 = vunpack.c.l.b16 %v215
      %v664 = vunpack.c.l.b16 %v216
      %v665 = vunpack.c.l.b16 %v217
      %v666 = vunpack.c.l.b16 %v218
      %v667 = vunpack.c.l.b16 %v219
      %v668 = vunpack.c.l.b16 %v220
      %v669 = vunpack.c.l.b16 %v221
      %v670 = vunpack.c.l.b16 %v222
      %v671 = vunpack.c.l.b16 %v223
      %v672 = vunpack.c.l.b16 %v224
      %v673 = vunpack.c.l.b16 %v225
      %v674 = vunpack.c.l.b16 %v226
      %v675 = vunpack.c.l.b16 %v227
      %v676 = vunpack.c.l.b16 %v228
      %v677 = vunpack.c.l.b16 %v229
      %v678 = vunpack.c.l.b16 %v230
      %v679 = vunpack.c.l.b16 %v231
      %v680 = vunpack.c.l.b16 %v232
      %v681 = vunpack.c.l.b16 %v233
      %v682 = vunpack.c.l.b16 %v234
      %v683 = vunpack.c.l.b16 %v235
      %v684 = vunpack.c.l.b16 %v236
      %v685 = vunpack.c.l.b16 %v237
      %v686 = vunpack.c.l.b16 %v238
      %v687 = vunpack.c.l.b16 %v239
      %v688 = vunpack.c.l.b16 %v240
      %v689 = vunpack.c.l.b16 %v241
      %v690 = vunpack.c.l.b16 %v242
      %v691 = vunpack.c.l.b16 %v243
      %v692 = vunpack.c.l.b16 %v244
      %v693 = vunpack.c.l.b16 %v245
      %v694 = vunpack.c.l.b16 %v246
      %v695 = vunpack.c.l.b16 %v247
      %v696 = vunpack.c.l.b16 %v248
      %v697 = vunpack.c.l.b16 %v249
      %v698 = vunpack.c.l.b16 %v250
      %v699 = vunpack.c.l.b16 %v251
      %v700 = vunpack.c.l.b16 %v252
      %v701 = vunpack.c.l.b16 %v253
      %v702 = vunpack.c.l.b16 %v254
      %v703 = vunpack.c.l.b16 %v255
      %v704 = vunpack.c.l.b16 %v256
      %v705 = vunpack.c.l.b16 %v257
      %v706 = vunpack.c.l.b16 %v258
      %v707 = vunpack.c.l.b16 %v259
      %v708 = vunpack.c.l.b16 %v260
      %v709 = vunpack.c.l.b16 %v261
      %v710 = vunpack.c.l.b16 %v262
      %v711 = vunpack.c.l.b16 %v263
      %v712 = vunpack.c.l.b16 %v264
      %v713 = vunpack.c.l.b16 %v265
      %v714 = vunpack.c.l.b16 %v266
      %v715 = vunpack.c.l.b16 %v267
      %v716 = vunpack.c.l.b16 %v268
      %v717 = vunpack.c.l.b16 %v269
      %v718 = vunpack.c.l.b16 %v270
      %v719 = vunpack.c.l.b16 %v271
      %v720 = vunpack.c.l.b16 %v272
      %v721 = vunpack.c.l.b16 %v273
      %v722 = vunpack.c.l.b16 %v274
      %v723 = vunpack.c.l.b16 %v275
      %v724 = vunpack.c.l.b16 %v276
      %v725 = vunpack.c.l.b16 %v277
      %v726 = vunpack.c.l.b16 %v278
      %v727 = vpack.c.b16 %v664, %v663
      %v728 = vpack.c.b16 %v666, %v665
      %v729 = vpack.c.b16 %v668, %v667
      %v730 = vpack.c.b16 %v670, %v669
      %v731 = vpack.c.b16 %v672, %v671
      %v732 = vpack.c.b16 %v674, %v673
      %v733 = vpack.c.b16 %v676, %v675
      %v734 = vpack.c.b16 %v678, %v677
      %v735 = vpack.c.b16 %v680, %v679
      %v736 = vpack.c.b16 %v682, %v681
      %v737 = vpack.c.b16 %v684, %v683
      %v738 = vpack.c.b16 %v686, %v685
      %v739 = vpack.c.b16 %v688, %v687
      %v740 = vpack.c.b16 %v690, %v689
      %v741 = vpack.c.b16 %v692, %v691
      %v742 = vpack.c.b16 %v694, %v693
      %v743 = vpack.c.b16 %v696, %v695
      %v744 = vpack.c.b16 %v698, %v697
      %v745 = vpack.c.b16 %v700, %v699
      %v746 = vpack.c.b16 %v702, %v701
      %v747 = vpack.c.b16 %v704, %v703
      %v748 = vpack.c.b16 %v706, %v705
      %v749 = vpack.c.b16 %v708, %v707
      %v750 = vpack.c.b16 %v710, %v709
      %v751 = vpack.c.b16 %v712, %v711
      %v752 = vpack.c.b16 %v714, %v713
      %v753 = vpack.c.b16 %v716, %v715
      %v754 = vpack.c.b16 %v718, %v717
      %v755 = vpack.c.b16 %v720, %v719
      %v756 = vpack.c.b16 %v722, %v721
      %v757 = vpack.c.b16 %v724, %v723
      %v758 = vpack.c.b16 %v726, %v725
      %791 = vmatprep.subr.bf16.mxu0 0
      %792 = vmatpush1.bf16.msra.mxu0 %v734
      %793 = vmatprep.subr.bf16.mxu0 0
      %794 = vmatpush1.bf16.msra.mxu0 %v733
      %795 = vmatprep.subr.bf16.mxu0 0
      %796 = vmatpush1.bf16.msra.mxu0 %v732
      %797 = vmatprep.subr.bf16.mxu0 0
      %798 = vmatpush1.bf16.msra.mxu0 %v731
      %799 = vmatprep.subr.bf16.mxu0 0
      %800 = vmatpush1.bf16.msra.mxu0 %v730
      %801 = vmatprep.subr.bf16.mxu0 0
      %802 = vmatpush1.bf16.msra.mxu0 %v729
      %803 = vmatprep.subr.bf16.mxu0 0
      %804 = vmatpush1.bf16.msra.mxu0 %v728
      %805 = vmatprep.subr.bf16.mxu0 0
      %806 = vmatpush1.bf16.msra.mxu0 %v727
      %807 = vmatprep.subr.bf16.mxu0 0
      %808 = vmatpush2.bf16.msra.mxu0 %v742
      %809 = vmatprep.subr.bf16.mxu0 0
      %810 = vmatpush2.bf16.msra.mxu0 %v741
      %811 = vmatprep.subr.bf16.mxu0 0
      %812 = vmatpush2.bf16.msra.mxu0 %v740
      %813 = vmatprep.subr.bf16.mxu0 0
      %814 = vmatpush2.bf16.msra.mxu0 %v739
      %815 = vmatprep.subr.bf16.mxu0 0
      %816 = vmatpush2.bf16.msra.mxu0 %v738
      %817 = vmatprep.subr.bf16.mxu0 0
      %818 = vmatpush2.bf16.msra.mxu0 %v737
      %819 = vmatprep.subr.bf16.mxu0 0
      %820 = vmatpush2.bf16.msra.mxu0 %v736
      %821 = vmatprep.subr.bf16.mxu0 0
      %822 = vmatpush2.bf16.msra.mxu0 %v735
      %823 = vmatprep.mubr.bf16.mxu0 %v472
      %824 = vmatmul.mubr.bf16.gmra.mxu0 %v471
      %v825 = vpop.f32.mrf.mxu0
      %v826 = vadd.f32 0.0, %v825
      %v827 = vpop.f32.mrf.mxu0
      %v828 = vpop.f32.mrf.mxu0
      %v829 = vadd.f32 0.0, %v828
      %v830 = vpop.f32.mrf.mxu0
      %831 = vmatprep.mubr.bf16.mxu0 %v476
      %832 = vmatmul.mubr.bf16.gmra.mxu0 %v475
      %v833 = vpop.f32.mrf.mxu0
      %v834 = vadd.f32 0.0, %v833
      %v835 = vpop.f32.mrf.mxu0
      %v836 = vpop.f32.mrf.mxu0
      %v837 = vadd.f32 0.0, %v836
      %v838 = vpop.f32.mrf.mxu0
      %839 = vmatprep.mubr.bf16.mxu0 %v480
      %840 = vmatmul.mubr.bf16.gmra.mxu0 %v479
      %v841 = vpop.f32.mrf.mxu0
      %v842 = vadd.f32 0.0, %v841
      %v843 = vpop.f32.mrf.mxu0
      %v844 = vpop.f32.mrf.mxu0
      %v845 = vadd.f32 0.0, %v844
      %v846 = vpop.f32.mrf.mxu0
      %847 = vmatprep.mubr.bf16.mxu0 %v484
      %848 = vmatmul.mubr.bf16.gmra.mxu0 %v483
      %v849 = vpop.f32.mrf.mxu0
      %v850 = vadd.f32 0.0, %v849
      %v851 = vpop.f32.mrf.mxu0
      %v852 = vpop.f32.mrf.mxu0
      %v853 = vadd.f32 0.0, %v852
      %v854 = vpop.f32.mrf.mxu0
      %855 = vmatprep.mubr.bf16.mxu0 %v488
      %856 = vmatmul.mubr.bf16.gmra.mxu0 %v487
      %v857 = vpop.f32.mrf.mxu0
      %v858 = vadd.f32 0.0, %v857
      %v859 = vpop.f32.mrf.mxu0
      %v860 = vpop.f32.mrf.mxu0
      %v861 = vadd.f32 0.0, %v860
      %v862 = vpop.f32.mrf.mxu0
      %863 = vmatprep.mubr.bf16.mxu0 %v492
      %864 = vmatmul.mubr.bf16.gmra.mxu0 %v491
      %v865 = vpop.f32.mrf.mxu0
      %v866 = vadd.f32 0.0, %v865
      %v867 = vpop.f32.mrf.mxu0
      %v868 = vpop.f32.mrf.mxu0
      %v869 = vadd.f32 0.0, %v868
      %v870 = vpop.f32.mrf.mxu0
      %871 = vmatprep.mubr.bf16.mxu0 %v496
      %872 = vmatmul.mubr.bf16.gmra.mxu0 %v495
      %v873 = vpop.f32.mrf.mxu0
      %v874 = vadd.f32 0.0, %v873
      %v875 = vpop.f32.mrf.mxu0
      %v876 = vpop.f32.mrf.mxu0
      %v877 = vadd.f32 0.0, %v876
      %v878 = vpop.f32.mrf.mxu0
      %879 = vmatprep.mubr.bf16.mxu0 %v500
      %880 = vmatmul.mubr.bf16.gmra.mxu0 %v499
      %v881 = vpop.f32.mrf.mxu0
      %v882 = vadd.f32 0.0, %v881
      %v883 = vpop.f32.mrf.mxu0
      %v884 = vpop.f32.mrf.mxu0
      %v885 = vadd.f32 0.0, %v884
      %v886 = vpop.f32.mrf.mxu0
      %887 = vmatprep.mubr.bf16.mxu0 %v504
      %888 = vmatmul.mubr.bf16.gmra.mxu0 %v503
      %v889 = vpop.f32.mrf.mxu0
      %v890 = vadd.f32 0.0, %v889
      %v891 = vpop.f32.mrf.mxu0
      %v892 = vpop.f32.mrf.mxu0
      %v893 = vadd.f32 0.0, %v892
      %v894 = vpop.f32.mrf.mxu0
      %895 = vmatprep.mubr.bf16.mxu0 %v508
      %896 = vmatmul.mubr.bf16.gmra.mxu0 %v507
      %v897 = vpop.f32.mrf.mxu0
      %v898 = vadd.f32 0.0, %v897
      %v899 = vpop.f32.mrf.mxu0
      %v900 = vpop.f32.mrf.mxu0
      %v901 = vadd.f32 0.0, %v900
      %v902 = vpop.f32.mrf.mxu0
      %903 = vmatprep.mubr.bf16.mxu0 %v512
      %904 = vmatmul.mubr.bf16.gmra.mxu0 %v511
      %v905 = vpop.f32.mrf.mxu0
      %v906 = vadd.f32 0.0, %v905
      %v907 = vpop.f32.mrf.mxu0
      %v908 = vpop.f32.mrf.mxu0
      %v909 = vadd.f32 0.0, %v908
      %v910 = vpop.f32.mrf.mxu0
      %911 = vmatprep.mubr.bf16.mxu0 %v516
      %912 = vmatmul.mubr.bf16.gmra.mxu0 %v515
      %v913 = vpop.f32.mrf.mxu0
      %v914 = vadd.f32 0.0, %v913
      %v915 = vpop.f32.mrf.mxu0
      %v916 = vpop.f32.mrf.mxu0
      %v917 = vadd.f32 0.0, %v916
      %v918 = vpop.f32.mrf.mxu0
      %919 = vmatprep.mubr.bf16.mxu0 %v520
      %920 = vmatmul.mubr.bf16.gmra.mxu0 %v519
      %v921 = vpop.f32.mrf.mxu0
      %v922 = vadd.f32 0.0, %v921
      %v923 = vpop.f32.mrf.mxu0
      %v924 = vpop.f32.mrf.mxu0
      %v925 = vadd.f32 0.0, %v924
      %v926 = vpop.f32.mrf.mxu0
      %927 = vmatprep.mubr.bf16.mxu0 %v524
      %928 = vmatmul.mubr.bf16.gmra.mxu0 %v523
      %v929 = vpop.f32.mrf.mxu0
      %v930 = vadd.f32 0.0, %v929
      %v931 = vpop.f32.mrf.mxu0
      %v932 = vpop.f32.mrf.mxu0
      %v933 = vadd.f32 0.0, %v932
      %v934 = vpop.f32.mrf.mxu0
      %935 = vmatprep.mubr.bf16.mxu0 %v528
      %936 = vmatmul.mubr.bf16.gmra.mxu0 %v527
      %v937 = vpop.f32.mrf.mxu0
      %v938 = vadd.f32 0.0, %v937
      %v939 = vpop.f32.mrf.mxu0
      %v940 = vpop.f32.mrf.mxu0
      %v941 = vadd.f32 0.0, %v940
      %v942 = vpop.f32.mrf.mxu0
      %943 = vmatprep.mubr.bf16.mxu0 %v532
      %944 = vmatmul.mubr.bf16.gmra.mxu0 %v531
      %v945 = vpop.f32.mrf.mxu0
      %v946 = vadd.f32 0.0, %v945
      %v947 = vpop.f32.mrf.mxu0
      %v948 = vpop.f32.mrf.mxu0
      %v949 = vadd.f32 0.0, %v948
      %v950 = vpop.f32.mrf.mxu0
      %951 = vdwg.mxu0
      %952 = vmatprep.subr.bf16.mxu0 0
      %953 = vmatpush1.bf16.msra.mxu0 %v750
      %954 = vmatprep.subr.bf16.mxu0 0
      %955 = vmatpush1.bf16.msra.mxu0 %v749
      %956 = vmatprep.subr.bf16.mxu0 0
      %957 = vmatpush1.bf16.msra.mxu0 %v748
      %958 = vmatprep.subr.bf16.mxu0 0
      %959 = vmatpush1.bf16.msra.mxu0 %v747
      %960 = vmatprep.subr.bf16.mxu0 0
      %961 = vmatpush1.bf16.msra.mxu0 %v746
      %962 = vmatprep.subr.bf16.mxu0 0
      %963 = vmatpush1.bf16.msra.mxu0 %v745
      %964 = vmatprep.subr.bf16.mxu0 0
      %965 = vmatpush1.bf16.msra.mxu0 %v744
      %966 = vmatprep.subr.bf16.mxu0 0
      %967 = vmatpush1.bf16.msra.mxu0 %v743
      %968 = vmatprep.subr.bf16.mxu0 0
      %969 = vmatpush2.bf16.msra.mxu0 %v758
      %970 = vmatprep.subr.bf16.mxu0 0
      %971 = vmatpush2.bf16.msra.mxu0 %v757
      %972 = vmatprep.subr.bf16.mxu0 0
      %973 = vmatpush2.bf16.msra.mxu0 %v756
      %974 = vmatprep.subr.bf16.mxu0 0
      %975 = vmatpush2.bf16.msra.mxu0 %v755
      %976 = vmatprep.subr.bf16.mxu0 0
      %977 = vmatpush2.bf16.msra.mxu0 %v754
      %978 = vmatprep.subr.bf16.mxu0 0
      %979 = vmatpush2.bf16.msra.mxu0 %v753
      %980 = vmatprep.subr.bf16.mxu0 0
      %981 = vmatpush2.bf16.msra.mxu0 %v752
      %982 = vmatprep.subr.bf16.mxu0 0
      %983 = vmatpush2.bf16.msra.mxu0 %v751
      %984 = vmatprep.mubr.bf16.mxu0 %v474
      %985 = vmatmul.mubr.bf16.gmra.mxu0 %v473
      %v986 = vpop.f32.mrf.mxu0
      %v987 = vadd.f32 %v826, %v986
      %v988 = vpop.f32.mrf.mxu0
      %v989 = vpop.f32.mrf.mxu0
      %v990 = vadd.f32 %v829, %v989
      %v991 = vpop.f32.mrf.mxu0
      %992 = vmatprep.mubr.bf16.mxu0 %v478
      %993 = vmatmul.mubr.bf16.gmra.mxu0 %v477
      %v994 = vpop.f32.mrf.mxu0
      %v995 = vadd.f32 %v834, %v994
      %v996 = vpop.f32.mrf.mxu0
      %v997 = vpop.f32.mrf.mxu0
      %v998 = vadd.f32 %v837, %v997
      %v999 = vpop.f32.mrf.mxu0
      %1000 = vmatprep.mubr.bf16.mxu0 %v482
      %1001 = vmatmul.mubr.bf16.gmra.mxu0 %v481
      %v1002 = vpop.f32.mrf.mxu0
      %v1003 = vadd.f32 %v842, %v1002
      %v1004 = vpop.f32.mrf.mxu0
      %v1005 = vpop.f32.mrf.mxu0
      %v1006 = vadd.f32 %v845, %v1005
      %v1007 = vpop.f32.mrf.mxu0
      %1008 = vmatprep.mubr.bf16.mxu0 %v486
      %1009 = vmatmul.mubr.bf16.gmra.mxu0 %v485
      %v1010 = vpop.f32.mrf.mxu0
      %v1011 = vadd.f32 %v850, %v1010
      %v1012 = vpop.f32.mrf.mxu0
      %v1013 = vpop.f32.mrf.mxu0
      %v1014 = vadd.f32 %v853, %v1013
      %v1015 = vpop.f32.mrf.mxu0
      %1016 = vmatprep.mubr.bf16.mxu0 %v490
      %1017 = vmatmul.mubr.bf16.gmra.mxu0 %v489
      %v1018 = vpop.f32.mrf.mxu0
      %v1019 = vadd.f32 %v858, %v1018
      %v1020 = vpop.f32.mrf.mxu0
      %v1021 = vpop.f32.mrf.mxu0
      %v1022 = vadd.f32 %v861, %v1021
      %v1023 = vpop.f32.mrf.mxu0
      %1024 = vmatprep.mubr.bf16.mxu0 %v494
      %1025 = vmatmul.mubr.bf16.gmra.mxu0 %v493
      %v1026 = vpop.f32.mrf.mxu0
      %v1027 = vadd.f32 %v866, %v1026
      %v1028 = vpop.f32.mrf.mxu0
      %v1029 = vpop.f32.mrf.mxu0
      %v1030 = vadd.f32 %v869, %v1029
      %v1031 = vpop.f32.mrf.mxu0
      %1032 = vmatprep.mubr.bf16.mxu0 %v498
      %1033 = vmatmul.mubr.bf16.gmra.mxu0 %v497
      %v1034 = vpop.f32.mrf.mxu0
      %v1035 = vadd.f32 %v874, %v1034
      %v1036 = vpop.f32.mrf.mxu0
      %v1037 = vpop.f32.mrf.mxu0
      %v1038 = vadd.f32 %v877, %v1037
      %v1039 = vpop.f32.mrf.mxu0
      %1040 = vmatprep.mubr.bf16.mxu0 %v502
      %1041 = vmatmul.mubr.bf16.gmra.mxu0 %v501
      %v1042 = vpop.f32.mrf.mxu0
      %v1043 = vadd.f32 %v882, %v1042
      %v1044 = vpop.f32.mrf.mxu0
      %v1045 = vpop.f32.mrf.mxu0
      %v1046 = vadd.f32 %v885, %v1045
      %v1047 = vpop.f32.mrf.mxu0
      %1048 = vmatprep.mubr.bf16.mxu0 %v506
      %1049 = vmatmul.mubr.bf16.gmra.mxu0 %v505
      %v1050 = vpop.f32.mrf.mxu0
      %v1051 = vadd.f32 %v890, %v1050
      %v1052 = vpop.f32.mrf.mxu0
      %v1053 = vpop.f32.mrf.mxu0
      %v1054 = vadd.f32 %v893, %v1053
      %v1055 = vpop.f32.mrf.mxu0
      %1056 = vmatprep.mubr.bf16.mxu0 %v510
      %1057 = vmatmul.mubr.bf16.gmra.mxu0 %v509
      %v1058 = vpop.f32.mrf.mxu0
      %v1059 = vadd.f32 %v898, %v1058
      %v1060 = vpop.f32.mrf.mxu0
      %v1061 = vpop.f32.mrf.mxu0
      %v1062 = vadd.f32 %v901, %v1061
      %v1063 = vpop.f32.mrf.mxu0
      %1064 = vmatprep.mubr.bf16.mxu0 %v514
      %1065 = vmatmul.mubr.bf16.gmra.mxu0 %v513
      %v1066 = vpop.f32.mrf.mxu0
      %v1067 = vadd.f32 %v906, %v1066
      %v1068 = vpop.f32.mrf.mxu0
      %v1069 = vpop.f32.mrf.mxu0
      %v1070 = vadd.f32 %v909, %v1069
      %v1071 = vpop.f32.mrf.mxu0
      %1072 = vmatprep.mubr.bf16.mxu0 %v518
      %1073 = vmatmul.mubr.bf16.gmra.mxu0 %v517
      %v1074 = vpop.f32.mrf.mxu0
      %v1075 = vadd.f32 %v914, %v1074
      %v1076 = vpop.f32.mrf.mxu0
      %v1077 = vpop.f32.mrf.mxu0
      %v1078 = vadd.f32 %v917, %v1077
      %v1079 = vpop.f32.mrf.mxu0
      %1080 = vmatprep.mubr.bf16.mxu0 %v522
      %1081 = vmatmul.mubr.bf16.gmra.mxu0 %v521
      %v1082 = vpop.f32.mrf.mxu0
      %v1083 = vadd.f32 %v922, %v1082
      %v1084 = vpop.f32.mrf.mxu0
      %v1085 = vpop.f32.mrf.mxu0
      %v1086 = vadd.f32 %v925, %v1085
      %v1087 = vpop.f32.mrf.mxu0
      %1088 = vmatprep.mubr.bf16.mxu0 %v526
      %1089 = vmatmul.mubr.bf16.gmra.mxu0 %v525
      %v1090 = vpop.f32.mrf.mxu0
      %v1091 = vadd.f32 %v930, %v1090
      %v1092 = vpop.f32.mrf.mxu0
      %v1093 = vpop.f32.mrf.mxu0
      %v1094 = vadd.f32 %v933, %v1093
      %v1095 = vpop.f32.mrf.mxu0
      %1096 = vmatprep.mubr.bf16.mxu0 %v530
      %1097 = vmatmul.mubr.bf16.gmra.mxu0 %v529
      %v1098 = vpop.f32.mrf.mxu0
      %v1099 = vadd.f32 %v938, %v1098
      %v1100 = vpop.f32.mrf.mxu0
      %v1101 = vpop.f32.mrf.mxu0
      %v1102 = vadd.f32 %v941, %v1101
      %v1103 = vpop.f32.mrf.mxu0
      %1104 = vmatprep.mubr.bf16.mxu0 %v534
      %1105 = vmatmul.mubr.bf16.gmra.mxu0 %v533
      %v1106 = vpop.f32.mrf.mxu0
      %v1107 = vadd.f32 %v946, %v1106
      %v1108 = vpop.f32.mrf.mxu0
      %v1109 = vpop.f32.mrf.mxu0
      %v1110 = vadd.f32 %v949, %v1109
      %v1111 = vpop.f32.mrf.mxu0
      %1112 = vdwg.mxu0
      %vm1113 = vcmask 523264
      %1114 = vst.msk [vmem:[%s148] sm:$0xff] %vm1113, %v987
      %1115 = vst.msk [vmem:[%s148 + $0x8] sm:$0xff] %vm1113, %v990
      %1116 = vst.msk [vmem:[%s148 + $0x10] sm:$0xff] %vm1113, %v995
      %1117 = vst.msk [vmem:[%s148 + $0x18] sm:$0xff] %vm1113, %v998
      %1118 = vst.msk [vmem:[%s148 + $0x20] sm:$0xff] %vm1113, %v1003
      %1119 = vst.msk [vmem:[%s148 + $0x28] sm:$0xff] %vm1113, %v1006
      %1120 = vst.msk [vmem:[%s148 + $0x30] sm:$0xff] %vm1113, %v1011
      %1121 = vst.msk [vmem:[%s148 + $0x38] sm:$0xff] %vm1113, %v1014
      %1122 = vst.msk [vmem:[%s148 + $0x40] sm:$0xff] %vm1113, %v1019
      %1123 = vst.msk [vmem:[%s148 + $0x48] sm:$0xff] %vm1113, %v1022
      %1124 = vst.msk [vmem:[%s148 + $0x50] sm:$0xff] %vm1113, %v1027
      %1125 = vst.msk [vmem:[%s148 + $0x58] sm:$0xff] %vm1113, %v1030
      %1126 = vst.msk [vmem:[%s148 + $0x60] sm:$0xff] %vm1113, %v1035
      %1127 = vst.msk [vmem:[%s148 + $0x68] sm:$0xff] %vm1113, %v1038
      %1128 = vst.msk [vmem:[%s148 + $0x70] sm:$0xff] %vm1113, %v1043
      %1129 = vst.msk [vmem:[%s148 + $0x78] sm:$0xff] %vm1113, %v1046
      %1130 = vst.msk [vmem:[%s148 + $0x80] sm:$0xff] %vm1113, %v1051
      %1131 = vst.msk [vmem:[%s148 + $0x88] sm:$0xff] %vm1113, %v1054
      %1132 = vst.msk [vmem:[%s148 + $0x90] sm:$0xff] %vm1113, %v1059
      %1133 = vst.msk [vmem:[%s148 + $0x98] sm:$0xff] %vm1113, %v1062
      %1134 = vst.msk [vmem:[%s148 + $0xa0] sm:$0xff] %vm1113, %v1067
      %1135 = vst.msk [vmem:[%s148 + $0xa8] sm:$0xff] %vm1113, %v1070
      %1136 = vst.msk [vmem:[%s148 + $0xb0] sm:$0xff] %vm1113, %v1075
      %1137 = vst.msk [vmem:[%s148 + $0xb8] sm:$0xff] %vm1113, %v1078
      %1138 = vst.msk [vmem:[%s148 + $0xc0] sm:$0xff] %vm1113, %v1083
      %1139 = vst.msk [vmem:[%s148 + $0xc8] sm:$0xff] %vm1113, %v1086
      %1140 = vst.msk [vmem:[%s148 + $0xd0] sm:$0xff] %vm1113, %v1091
      %1141 = vst.msk [vmem:[%s148 + $0xd8] sm:$0xff] %vm1113, %v1094
      %1142 = vst.msk [vmem:[%s148 + $0xe0] sm:$0xff] %vm1113, %v1099
      %1143 = vst.msk [vmem:[%s148 + $0xe8] sm:$0xff] %vm1113, %v1102
      %1144 = vst.msk [vmem:[%s148 + $0xf0] sm:$0xff] %vm1113, %v1107
      %1145 = vst.msk [vmem:[%s148 + $0xf8] sm:$0xff] %vm1113, %v1110
      %s1146 = smul.u32 32, %s13
      %p1147 = scmp.lt.s32.totalorder %s1146, 63
      %s1148 = scalar_select %p1147, %s1146, 63
      %s1149 = smul.addr %s1148, 8
      %s1150 = scalar_lea.vmem %s2, %s1149
      // Predicated region
      $region29: #{gae_forward.8} parent=27 // pred_check
        %p1151 = pneg %p78
      $region30: #{gae_forward.8} parent=27 // pred_check_branch
        %1153 = sbr.rel (%p1151) target = $region32
      $region31: #{gae_forward.8} parent=27 // pred_region
        %s1154 = smul.u32 32, %s13
      $region32: #{gae_forward.8} parent=27 // pred_fallthru
        _
    $region28: #{gae_forward.8} parent=5 // pred_fallthru
      _
    %p1155 = scmp.le.s32.totalorder 2, %s8
    // Predicated region
    $region33: #{gae_forward.8} parent=5 // pred_check
      %p1156 = pneg %p1155
    $region34: #{gae_forward.8} parent=5 // pred_check_branch
      %1158 = sbr.rel (%p1156) target = $region36
    $region35: #{gae_forward.8} parent=5 // pred_region
      %s1159 = ssub.s32 %s8, 2
      // Predicated region
      $region37: #{gae_forward.8} parent=35 // pred_check
        %p1160 = pneg %p84
      $region38: #{gae_forward.8} parent=35 // pred_check_branch
        %1162 = sbr.rel (%p1160) target = $region40
      $region39: #{gae_forward.8} parent=35 // pred_region
        %s1163 = smul.u32 32, %s14
        %p1164 = scmp.lt.s32.totalorder %s1163, 63
        %s1165 = scalar_select %p1164, %s1163, 63
        %s1166 = smul.addr %s1165, 8
        %s1167 = scalar_lea.vmem %s2, %s1166
      $region40: #{gae_forward.8} parent=35 // pred_fallthru
        _
    $region36: #{gae_forward.8} parent=5 // pred_fallthru
      _
  $region6: #{gae_forward.8} parent=0 // loop_footer
    %s12 = sadd.s32 1, %s8
  $region7: #{gae_forward.8} parent=0 // loop_footer_branch
    %7 = sbr.rel target = $region3
  $region8: #{gae_forward.8} parent=0 // loop_exit
    _

// kernel: gae_forward.9
$region0: #{gae_forward.9}
  #allocation0 [shape = 'u32[]', space=smem, size = 0x4, offset = 0x4, fixed_abs, tag = 'smem constant byte address 0x4 - core index']
  #allocation1 [shape = 'u32[144,128]{1,0:T(1,128)}', space=vmem, size = 0x12000, scoped, tag = 'internal scratch']
  %s0 = inlined_call_operand.vmem [shape: f32[512,64], index: 0, kind: input, shape index: {}, may-alias: {0,1}]
  %s1 = inlined_call_operand.vmem [shape: f32[512,64], index: 1, kind: input, shape index: {}, may-alias: {0,1}]
  %s2 = inlined_call_operand.hbm [shape: f32[512,512], index: 2, kind: output, shape index: {}]
  %s3 = sld [smem:[#allocation0]]
  $region41: #{gae_forward.9} parent=0
    _
  %s5 = ssub.s32 1, %s3
  %s6 = scalar_select 0, %s5, %s3
  $region1: #{gae_forward.9} parent=0
    #allocation2 [shape = 'u8[1048576]{0}', space=vmem, size = 0x100000, scoped, tag = 'output window, operand 0']
    #allocation3 [shape = 's32[2]{0}', space=sflag, size = 0x8, scoped, tag = 'scoped memory for gae_forward.9']
    %7 = vsyncpa [#allocation3], 0
    %s8 = scalar_lea.sflag [#allocation3], 1
    %9 = vsyncpa %s8, 0
    loop: start=0, step=1, limit=4
    $region2: #{gae_forward.9} parent=1 // loop_pre_header
      _
    $region3: #{gae_forward.9} parent=1 // loop_header
      %s11 = sphi 0, %s15
      %p12 = scmp.ge.s32.totalorder %s11, 4
      %s21 = sphi 0, %s23
      %s24 = sphi 0, %s21
      %s25 = sphi 0, %s24
      %s41 = sphi 0, %s25
      %s45 = sphi 0, %s45
      %s47 = sphi 0, %s45
      %s48 = sphi 0, %s47
      %s62 = sphi 0, %s48
      %s68 = sphi 0, %s70
      %s71 = sphi 0, %s68
      %s72 = sphi 0, %s71
      %s88 = sphi 0, %s72
    $region4: #{gae_forward.9} parent=1 // loop_header_branch
      %14 = sbr.rel (%p12) target = $region8
    $region5: #{gae_forward.9} parent=1 // loop_body
      %s16 = ssub.s32 %s11, 1
      %s17 = ssub.s32 %s11, 2
      %s18 = sadd.s32 %s11, 1
      %s19 = ssub.s32 %s11, %s18
      %p20 = scmp.eq.s32.totalorder %s19, 0
      %s22 = sadd.s32 %s21, 1
      %s23 = scalar_select %p20, %s21, %s22
      %p26 = pneg %p20
      %p27 = scmp.eq.s32.totalorder %s11, 1
      %p28 = por %p26, %p27
      %p29 = scmp.ne.s32.totalorder %s21, %s24
      %p30 = scmp.eq.s32.totalorder %s11, 0
      %p31 = por %p29, %p30
      %p32 = scmp.ne.s32.totalorder %s21, %s24
      %p33 = scmp.eq.s32.totalorder %s16, 1
      %p34 = por %p32, %p33
      %p35 = scmp.ne.s32.totalorder %s24, %s25
      %p36 = scmp.eq.s32.totalorder %s16, 0
      %p37 = por %p35, %p36
      %p38 = scmp.ne.s32.totalorder %s24, %s25
      %p39 = scmp.eq.s32.totalorder %s17, 1
      %p40 = por %p38, %p39
      %p42 = scmp.ne.s32.totalorder %s25, %s41
      %p43 = scmp.eq.s32.totalorder %s17, 0
      %p44 = por %p42, %p43
      %s46 = sadd.s32 %s45, 1
      %p49 = scmp.eq.s32.totalorder %s11, 1
      %p50 = scmp.ne.s32.totalorder %s45, %s47
      %p51 = scmp.eq.s32.totalorder %s11, 0
      %p52 = por %p50, %p51
      %p53 = scmp.ne.s32.totalorder %s45, %s47
      %p54 = scmp.eq.s32.totalorder %s16, 1
      %p55 = por %p53, %p54
      %p56 = scmp.ne.s32.totalorder %s47, %s48
      %p57 = scmp.eq.s32.totalorder %s16, 0
      %p58 = por %p56, %p57
      %p59 = scmp.ne.s32.totalorder %s47, %s48
      %p60 = scmp.eq.s32.totalorder %s17, 1
      %p61 = por %p59, %p60
      %p63 = scmp.ne.s32.totalorder %s48, %s62
      %p64 = scmp.eq.s32.totalorder %s17, 0
      %p65 = por %p63, %p64
      %s66 = ssub.s32 %s11, %s18
      %p67 = scmp.eq.s32.totalorder %s66, 0
      %s69 = sadd.s32 %s68, 1
      %s70 = scalar_select %p67, %s68, %s69
      %p73 = pneg %p67
      %p74 = scmp.eq.s32.totalorder %s11, 1
      %p75 = por %p73, %p74
      %p76 = scmp.ne.s32.totalorder %s68, %s71
      %p77 = scmp.eq.s32.totalorder %s11, 0
      %p78 = por %p76, %p77
      %p79 = scmp.ne.s32.totalorder %s68, %s71
      %p80 = scmp.eq.s32.totalorder %s16, 1
      %p81 = por %p79, %p80
      %p82 = scmp.ne.s32.totalorder %s71, %s72
      %p83 = scmp.eq.s32.totalorder %s16, 0
      %p84 = por %p82, %p83
      %p85 = scmp.ne.s32.totalorder %s71, %s72
      %p86 = scmp.eq.s32.totalorder %s17, 1
      %p87 = por %p85, %p86
      %p89 = scmp.ne.s32.totalorder %s72, %s88
      %p90 = scmp.eq.s32.totalorder %s17, 0
      %p91 = por %p89, %p90
      %p92 = scmp.le.s32.totalorder 1, %s11
      %p93 = scmp.lt.s32.totalorder %s11, 3
      %p94 = pnand %p92, %p93
      %p95 = pneg %p94
      // Predicated region
      $region9: #{gae_forward.9} parent=5 // pred_check
        _
      $region10: #{gae_forward.9} parent=5 // pred_check_branch
        %97 = sbr.rel (%p94) target = $region12
      $region11: #{gae_forward.9} parent=5 // pred_region
        %s98 = ssub.s32 %s11, 1
        // Predicated region
        $region13: #{gae_forward.9} parent=11 // pred_check
          %p99 = pneg %p58
        $region14: #{gae_forward.9} parent=11 // pred_check_branch
          %101 = sbr.rel (%p99) target = $region16
        $region15: #{gae_forward.9} parent=11 // pred_region
          _
        $region16: #{gae_forward.9} parent=11 // pred_fallthru
          _
      $region12: #{gae_forward.9} parent=5 // pred_fallthru
        _
      %p102 = scmp.lt.s32.totalorder %s11, 2
      // Predicated region
      $region17: #{gae_forward.9} parent=5 // pred_check
        %p103 = pneg %p102
      $region18: #{gae_forward.9} parent=5 // pred_check_branch
        %105 = sbr.rel (%p103) target = $region20
      $region19: #{gae_forward.9} parent=5 // pred_region
        // Predicated region
        $region21: #{gae_forward.9} parent=19 // pred_check
          %p106 = pneg %p31
        $region22: #{gae_forward.9} parent=19 // pred_check_branch
          %108 = sbr.rel (%p106) target = $region24
        $region23: #{gae_forward.9} parent=19 // pred_region
          %s109 = smul.u32 32, %s11
          %p110 = scmp.lt.s32.totalorder %s109, 63
          %s111 = scalar_select %p110, %s109, 63
          %s112 = smul.addr %s111, 8
          %s113 = scalar_lea.vmem %s0, %s112
          %s114 = smul.u32 32, %s11
        $region24: #{gae_forward.9} parent=19 // pred_fallthru
          _
      $region20: #{gae_forward.9} parent=5 // pred_fallthru
        _
      %p115 = scmp.le.s32.totalorder 1, %s11
      %p116 = scmp.lt.s32.totalorder %s11, 3
      %p117 = pnand %p115, %p116
      %p118 = pneg %p117
      // Predicated region
      $region25: #{gae_forward.9} parent=5 // pred_check
        _
      $region26: #{gae_forward.9} parent=5 // pred_check_branch
        %120 = sbr.rel (%p117) target = $region28
      $region27: #{gae_forward.9} parent=5 // pred_region
        %s121 = ssub.s32 %s11, 1
        %s122 = smul.u32 32, %s16
        %p123 = scmp.lt.s32.totalorder %s122, 63
        %s124 = scalar_select %p123, %s122, 63
        %s125 = smul.addr %s124, 8
        %s126 = scalar_lea.vmem %s0, %s125
        %p127 = pneg %p37
        %p128 = pneg %p34
        %p129 = pneg %p58
        %p130 = pneg %p55
        %p131 = pneg %p84
        %p132 = pneg %p81
        %s133 = sand.u32 %s71, 1
        %s134 = scalar_lea.sflag [#allocation3], %s133
        %s135 = sand.u32 %s71, 1
        %s136 = smul.addr %s135, 1024
        %s137 = scalar_lea.vmem [#allocation2], %s136
        %s138 = smul.u32 32, %s16
        %p139 = scmp.lt.s32.totalorder %s138, 63
        %s140 = scalar_select %p139, %s138, 63
        %s141 = smul.addr %s140, 8
        %s142 = scalar_lea.vmem %s0, %s141
        %s143 = smul.u32 32, %s16
        %s144 = smul.u32 32, %s16
        %v146 = vld [vmem:[%s142] sm:$0xff]
        %v147 = vld [vmem:[%s142 + $0x8] sm:$0xff]
        %v148 = vld [vmem:[%s142 + $0x10] sm:$0xff]
        %v149 = vld [vmem:[%s142 + $0x18] sm:$0xff]
        %v150 = vld [vmem:[%s142 + $0x20] sm:$0xff]
        %v151 = vld [vmem:[%s142 + $0x28] sm:$0xff]
        %v152 = vld [vmem:[%s142 + $0x30] sm:$0xff]
        %v153 = vld [vmem:[%s142 + $0x38] sm:$0xff]
        %v154 = vld [vmem:[%s142 + $0x40] sm:$0xff]
        %v155 = vld [vmem:[%s142 + $0x48] sm:$0xff]
        %v156 = vld [vmem:[%s142 + $0x50] sm:$0xff]
        %v157 = vld [vmem:[%s142 + $0x58] sm:$0xff]
        %v158 = vld [vmem:[%s142 + $0x60] sm:$0xff]
        %v159 = vld [vmem:[%s142 + $0x68] sm:$0xff]
        %v160 = vld [vmem:[%s142 + $0x70] sm:$0xff]
        %v161 = vld [vmem:[%s142 + $0x78] sm:$0xff]
        %v162 = vld [vmem:[%s142 + $0x80] sm:$0xff]
        %v163 = vld [vmem:[%s142 + $0x88] sm:$0xff]
        %v164 = vld [vmem:[%s142 + $0x90] sm:$0xff]
        %v165 = vld [vmem:[%s142 + $0x98] sm:$0xff]
        %v166 = vld [vmem:[%s142 + $0xa0] sm:$0xff]
        %v167 = vld [vmem:[%s142 + $0xa8] sm:$0xff]
        %v168 = vld [vmem:[%s142 + $0xb0] sm:$0xff]
        %v169 = vld [vmem:[%s142 + $0xb8] sm:$0xff]
        %v170 = vld [vmem:[%s142 + $0xc0] sm:$0xff]
        %v171 = vld [vmem:[%s142 + $0xc8] sm:$0xff]
        %v172 = vld [vmem:[%s142 + $0xd0] sm:$0xff]
        %v173 = vld [vmem:[%s142 + $0xd8] sm:$0xff]
        %v174 = vld [vmem:[%s142 + $0xe0] sm:$0xff]
        %v175 = vld [vmem:[%s142 + $0xe8] sm:$0xff]
        %v176 = vld [vmem:[%s142 + $0xf0] sm:$0xff]
        %v177 = vld [vmem:[%s142 + $0xf8] sm:$0xff]
        %v178 = vld [vmem:[%s1] sm:$0xff]
        %v179 = vld [vmem:[%s1 + $0x8] sm:$0xff]
        %v180 = vld [vmem:[%s1 + $0x10] sm:$0xff]
        %v181 = vld [vmem:[%s1 + $0x18] sm:$0xff]
        %v182 = vld [vmem:[%s1 + $0x20] sm:$0xff]
        %v183 = vld [vmem:[%s1 + $0x28] sm:$0xff]
        %v184 = vld [vmem:[%s1 + $0x30] sm:$0xff]
        %v185 = vld [vmem:[%s1 + $0x38] sm:$0xff]
        %v186 = vld [vmem:[%s1 + $0x40] sm:$0xff]
        %v187 = vld [vmem:[%s1 + $0x48] sm:$0xff]
        %v188 = vld [vmem:[%s1 + $0x50] sm:$0xff]
        %v189 = vld [vmem:[%s1 + $0x58] sm:$0xff]
        %v190 = vld [vmem:[%s1 + $0x60] sm:$0xff]
        %v191 = vld [vmem:[%s1 + $0x68] sm:$0xff]
        %v192 = vld [vmem:[%s1 + $0x70] sm:$0xff]
        %v193 = vld [vmem:[%s1 + $0x78] sm:$0xff]
        %v194 = vld [vmem:[%s1 + $0x80] sm:$0xff]
        %v195 = vld [vmem:[%s1 + $0x88] sm:$0xff]
        %v196 = vld [vmem:[%s1 + $0x90] sm:$0xff]
        %v197 = vld [vmem:[%s1 + $0x98] sm:$0xff]
        %v198 = vld [vmem:[%s1 + $0xa0] sm:$0xff]
        %v199 = vld [vmem:[%s1 + $0xa8] sm:$0xff]
        %v200 = vld [vmem:[%s1 + $0xb0] sm:$0xff]
        %v201 = vld [vmem:[%s1 + $0xb8] sm:$0xff]
        %v202 = vld [vmem:[%s1 + $0xc0] sm:$0xff]
        %v203 = vld [vmem:[%s1 + $0xc8] sm:$0xff]
        %v204 = vld [vmem:[%s1 + $0xd0] sm:$0xff]
        %v205 = vld [vmem:[%s1 + $0xd8] sm:$0xff]
        %v206 = vld [vmem:[%s1 + $0xe0] sm:$0xff]
        %v207 = vld [vmem:[%s1 + $0xe8] sm:$0xff]
        %v208 = vld [vmem:[%s1 + $0xf0] sm:$0xff]
        %v209 = vld [vmem:[%s1 + $0xf8] sm:$0xff]
        %v210 = vld [vmem:[%s1 + $0x100] sm:$0xff]
        %v211 = vld [vmem:[%s1 + $0x108] sm:$0xff]
        %v212 = vld [vmem:[%s1 + $0x110] sm:$0xff]
        %v213 = vld [vmem:[%s1 + $0x118] sm:$0xff]
        %v214 = vld [vmem:[%s1 + $0x120] sm:$0xff]
        %v215 = vld [vmem:[%s1 + $0x128] sm:$0xff]
        %v216 = vld [vmem:[%s1 + $0x130] sm:$0xff]
        %v217 = vld [vmem:[%s1 + $0x138] sm:$0xff]
        %v218 = vld [vmem:[%s1 + $0x140] sm:$0xff]
        %v219 = vld [vmem:[%s1 + $0x148] sm:$0xff]
        %v220 = vld [vmem:[%s1 + $0x150] sm:$0xff]
        %v221 = vld [vmem:[%s1 + $0x158] sm:$0xff]
        %v222 = vld [vmem:[%s1 + $0x160] sm:$0xff]
        %v223 = vld [vmem:[%s1 + $0x168] sm:$0xff]
        %v224 = vld [vmem:[%s1 + $0x170] sm:$0xff]
        %v225 = vld [vmem:[%s1 + $0x178] sm:$0xff]
        %v226 = vld [vmem:[%s1 + $0x180] sm:$0xff]
        %v227 = vld [vmem:[%s1 + $0x188] sm:$0xff]
        %v228 = vld [vmem:[%s1 + $0x190] sm:$0xff]
        %v229 = vld [vmem:[%s1 + $0x198] sm:$0xff]
        %v230 = vld [vmem:[%s1 + $0x1a0] sm:$0xff]
        %v231 = vld [vmem:[%s1 + $0x1a8] sm:$0xff]
        %v232 = vld [vmem:[%s1 + $0x1b0] sm:$0xff]
        %v233 = vld [vmem:[%s1 + $0x1b8] sm:$0xff]
        %v234 = vld [vmem:[%s1 + $0x1c0] sm:$0xff]
        %v235 = vld [vmem:[%s1 + $0x1c8] sm:$0xff]
        %v236 = vld [vmem:[%s1 + $0x1d0] sm:$0xff]
        %v237 = vld [vmem:[%s1 + $0x1d8] sm:$0xff]
        %v238 = vld [vmem:[%s1 + $0x1e0] sm:$0xff]
        %v239 = vld [vmem:[%s1 + $0x1e8] sm:$0xff]
        %v240 = vld [vmem:[%s1 + $0x1f0] sm:$0xff]
        %v241 = vld [vmem:[%s1 + $0x1f8] sm:$0xff]
        %v242 = vpack.c.bf16 %v147, %v146
        %v243 = vpack.c.bf16 %v149, %v148
        %v244 = vpack.c.bf16 %v151, %v150
        %v245 = vpack.c.bf16 %v153, %v152
        %v246 = vpack.c.bf16 %v155, %v154
        %v247 = vpack.c.bf16 %v157, %v156
        %v248 = vpack.c.bf16 %v159, %v158
        %v249 = vpack.c.bf16 %v161, %v160
        %v250 = vpack.c.bf16 %v163, %v162
        %v251 = vpack.c.bf16 %v165, %v164
        %v252 = vpack.c.bf16 %v167, %v166
        %v253 = vpack.c.bf16 %v169, %v168
        %v254 = vpack.c.bf16 %v171, %v170
        %v255 = vpack.c.bf16 %v173, %v172
        %v256 = vpack.c.bf16 %v175, %v174
        %v257 = vpack.c.bf16 %v177, %v176
        %v258 = vpack.c.bf16 %v179, %v178
        %v259 = vpack.c.bf16 %v181, %v180
        %v260 = vpack.c.bf16 %v183, %v182
        %v261 = vpack.c.bf16 %v185, %v184
        %v262 = vpack.c.bf16 %v187, %v186
        %v263 = vpack.c.bf16 %v189, %v188
        %v264 = vpack.c.bf16 %v191, %v190
        %v265 = vpack.c.bf16 %v193, %v192
        %v266 = vpack.c.bf16 %v195, %v194
        %v267 = vpack.c.bf16 %v197, %v196
        %v268 = vpack.c.bf16 %v199, %v198
        %v269 = vpack.c.bf16 %v201, %v200
        %v270 = vpack.c.bf16 %v203, %v202
        %v271 = vpack.c.bf16 %v205, %v204
        %v272 = vpack.c.bf16 %v207, %v206
        %v273 = vpack.c.bf16 %v209, %v208
        %v274 = vpack.c.bf16 %v211, %v210
        %v275 = vpack.c.bf16 %v213, %v212
        %v276 = vpack.c.bf16 %v215, %v214
        %v277 = vpack.c.bf16 %v217, %v216
        %v278 = vpack.c.bf16 %v219, %v218
        %v279 = vpack.c.bf16 %v221, %v220
        %v280 = vpack.c.bf16 %v223, %v222
        %v281 = vpack.c.bf16 %v225, %v224
        %v282 = vpack.c.bf16 %v227, %v226
        %v283 = vpack.c.bf16 %v229, %v228
        %v284 = vpack.c.bf16 %v231, %v230
        %v285 = vpack.c.bf16 %v233, %v232
        %v286 = vpack.c.bf16 %v235, %v234
        %v287 = vpack.c.bf16 %v237, %v236
        %v288 = vpack.c.bf16 %v239, %v238
        %v289 = vpack.c.bf16 %v241, %v240
        %vm290 = vcmask 523264
        %v292 = vsel %vm290, %v242, 0
        %v295 = vsel %vm290, %v243, 0
        %v298 = vsel %vm290, %v244, 0
        %v301 = vsel %vm290, %v245, 0
        %v304 = vsel %vm290, %v246, 0
        %v307 = vsel %vm290, %v247, 0
        %v310 = vsel %vm290, %v248, 0
        %v313 = vsel %vm290, %v249, 0
        %v316 = vsel %vm290, %v250, 0
        %v319 = vsel %vm290, %v251, 0
        %v322 = vsel %vm290, %v252, 0
        %v325 = vsel %vm290, %v253, 0
        %v328 = vsel %vm290, %v254, 0
        %v331 = vsel %vm290, %v255, 0
        %v334 = vsel %vm290, %v256, 0
        %v337 = vsel %vm290, %v257, 0
        %v340 = vsel %vm290, %v258, 0
        %v343 = vsel %vm290, %v259, 0
        %v346 = vsel %vm290, %v260, 0
        %v349 = vsel %vm290, %v261, 0
        %v352 = vsel %vm290, %v262, 0
        %v355 = vsel %vm290, %v263, 0
        %v358 = vsel %vm290, %v264, 0
        %v361 = vsel %vm290, %v265, 0
        %v364 = vsel %vm290, %v266, 0
        %v367 = vsel %vm290, %v267, 0
        %v370 = vsel %vm290, %v268, 0
        %v373 = vsel %vm290, %v269, 0
        %v376 = vsel %vm290, %v270, 0
        %v379 = vsel %vm290, %v271, 0
        %v382 = vsel %vm290, %v272, 0
        %v385 = vsel %vm290, %v273, 0
        %v388 = vsel %vm290, %v274, 0
        %v391 = vsel %vm290, %v275, 0
        %v394 = vsel %vm290, %v276, 0
        %v397 = vsel %vm290, %v277, 0
        %v400 = vsel %vm290, %v278, 0
        %v403 = vsel %vm290, %v279, 0
        %v406 = vsel %vm290, %v280, 0
        %v409 = vsel %vm290, %v281, 0
        %v412 = vsel %vm290, %v282, 0
        %v415 = vsel %vm290, %v283, 0
        %v418 = vsel %vm290, %v284, 0
        %v421 = vsel %vm290, %v285, 0
        %v424 = vsel %vm290, %v286, 0
        %v427 = vsel %vm290, %v287, 0
        %v430 = vsel %vm290, %v288, 0
        %v433 = vsel %vm290, %v289, 0
        %435 = vmatprep.subr.bf16.mxu0 0
        %436 = vmatpush1.bf16.xpose.msra.mxu0 %v361
        %437 = vmatprep.subr.bf16.mxu0 0
        %438 = vmatpush1.bf16.xpose.msra.mxu0 %v358
        %439 = vmatprep.subr.bf16.mxu0 0
        %440 = vmatpush1.bf16.xpose.msra.mxu0 %v355
        %441 = vmatprep.subr.bf16.mxu0 0
        %442 = vmatpush1.bf16.xpose.msra.mxu0 %v352
        %443 = vmatprep.subr.bf16.mxu0 0
        %444 = vmatpush1.bf16.xpose.msra.mxu0 %v349
        %445 = vmatprep.subr.bf16.mxu0 0
        %446 = vmatpush1.bf16.xpose.msra.mxu0 %v346
        %447 = vmatprep.subr.bf16.mxu0 0
        %448 = vmatpush1.bf16.xpose.msra.mxu0 %v343
        %449 = vmatprep.subr.bf16.mxu0 0
        %450 = vmatpush1.bf16.xpose.msra.mxu0 %v340
        %451 = vmatprep.subr.bf16.mxu0 0
        %452 = vmatpush2.bf16.xpose.msra.mxu0 %v385
        %453 = vmatprep.subr.bf16.mxu0 0
        %454 = vmatpush2.bf16.xpose.msra.mxu0 %v382
        %455 = vmatprep.subr.bf16.mxu0 0
        %456 = vmatpush2.bf16.xpose.msra.mxu0 %v379
        %457 = vmatprep.subr.bf16.mxu0 0
        %458 = vmatpush2.bf16.xpose.msra.mxu0 %v376
        %459 = vmatprep.subr.bf16.mxu0 0
        %460 = vmatpush2.bf16.xpose.msra.mxu0 %v373
        %461 = vmatprep.subr.bf16.mxu0 0
        %462 = vmatpush2.bf16.xpose.msra.mxu0 %v370
        %463 = vmatprep.subr.bf16.mxu0 0
        %464 = vmatpush2.bf16.xpose.msra.mxu0 %v367
        %465 = vmatprep.subr.bf16.mxu0 0
        %466 = vmatpush2.bf16.xpose.msra.mxu0 %v364
        %467 = vmatprep.mubr.bf16.mxu0 0
        %468 = vmatmul.mubr.bf16.gmra.mxu0 %v292
        %v469 = vpop.f32.mrf.mxu0
        %v470 = vadd.f32 0.0, %v469
        %v471 = vpop.f32.mrf.mxu0
        %v472 = vadd.f32 0.0, %v471
        %v473 = vpop.f32.mrf.mxu0
        %v474 = vadd.f32 0.0, %v473
        %v475 = vpop.f32.mrf.mxu0
        %v476 = vadd.f32 0.0, %v475
        %477 = vmatprep.mubr.bf16.mxu0 0
        %478 = vmatmul.mubr.bf16.gmra.mxu0 %v295
        %v479 = vpop.f32.mrf.mxu0
        %v480 = vadd.f32 0.0, %v479
        %v481 = vpop.f32.mrf.mxu0
        %v482 = vadd.f32 0.0, %v481
        %v483 = vpop.f32.mrf.mxu0
        %v484 = vadd.f32 0.0, %v483
        %v485 = vpop.f32.mrf.mxu0
        %v486 = vadd.f32 0.0, %v485
        %487 = vmatprep.mubr.bf16.mxu0 0
        %488 = vmatmul.mubr.bf16.gmra.mxu0 %v298
        %v489 = vpop.f32.mrf.mxu0
        %v490 = vadd.f32 0.0, %v489
        %v491 = vpop.f32.mrf.mxu0
        %v492 = vadd.f32 0.0, %v491
        %v493 = vpop.f32.mrf.mxu0
        %v494 = vadd.f32 0.0, %v493
        %v495 = vpop.f32.mrf.mxu0
        %v496 = vadd.f32 0.0, %v495
        %497 = vmatprep.mubr.bf16.mxu0 0
        %498 = vmatmul.mubr.bf16.gmra.mxu0 %v301
        %v499 = vpop.f32.mrf.mxu0
        %v500 = vadd.f32 0.0, %v499
        %v501 = vpop.f32.mrf.mxu0
        %v502 = vadd.f32 0.0, %v501
        %v503 = vpop.f32.mrf.mxu0
        %v504 = vadd.f32 0.0, %v503
        %v505 = vpop.f32.mrf.mxu0
        %v506 = vadd.f32 0.0, %v505
        %507 = vmatprep.mubr.bf16.mxu0 0
        %508 = vmatmul.mubr.bf16.gmra.mxu0 %v304
        %v509 = vpop.f32.mrf.mxu0
        %v510 = vadd.f32 0.0, %v509
        %v511 = vpop.f32.mrf.mxu0
        %v512 = vadd.f32 0.0, %v511
        %v513 = vpop.f32.mrf.mxu0
        %v514 = vadd.f32 0.0, %v513
        %v515 = vpop.f32.mrf.mxu0
        %v516 = vadd.f32 0.0, %v515
        %517 = vmatprep.mubr.bf16.mxu0 0
        %518 = vmatmul.mubr.bf16.gmra.mxu0 %v307
        %v519 = vpop.f32.mrf.mxu0
        %v520 = vadd.f32 0.0, %v519
        %v521 = vpop.f32.mrf.mxu0
        %v522 = vadd.f32 0.0, %v521
        %v523 = vpop.f32.mrf.mxu0
        %v524 = vadd.f32 0.0, %v523
        %v525 = vpop.f32.mrf.mxu0
        %v526 = vadd.f32 0.0, %v525
        %527 = vmatprep.mubr.bf16.mxu0 0
        %528 = vmatmul.mubr.bf16.gmra.mxu0 %v310
        %v529 = vpop.f32.mrf.mxu0
        %v530 = vadd.f32 0.0, %v529
        %v531 = vpop.f32.mrf.mxu0
        %v532 = vadd.f32 0.0, %v531
        %v533 = vpop.f32.mrf.mxu0
        %v534 = vadd.f32 0.0, %v533
        %v535 = vpop.f32.mrf.mxu0
        %v536 = vadd.f32 0.0, %v535
        %537 = vmatprep.mubr.bf16.mxu0 0
        %538 = vmatmul.mubr.bf16.gmra.mxu0 %v313
        %v539 = vpop.f32.mrf.mxu0
        %v540 = vadd.f32 0.0, %v539
        %v541 = vpop.f32.mrf.mxu0
        %v542 = vadd.f32 0.0, %v541
        %v543 = vpop.f32.mrf.mxu0
        %v544 = vadd.f32 0.0, %v543
        %v545 = vpop.f32.mrf.mxu0
        %v546 = vadd.f32 0.0, %v545
        %547 = vmatprep.mubr.bf16.mxu0 0
        %548 = vmatmul.mubr.bf16.gmra.mxu0 %v316
        %v549 = vpop.f32.mrf.mxu0
        %v550 = vadd.f32 0.0, %v549
        %v551 = vpop.f32.mrf.mxu0
        %v552 = vadd.f32 0.0, %v551
        %v553 = vpop.f32.mrf.mxu0
        %v554 = vadd.f32 0.0, %v553
        %v555 = vpop.f32.mrf.mxu0
        %v556 = vadd.f32 0.0, %v555
        %557 = vmatprep.mubr.bf16.mxu0 0
        %558 = vmatmul.mubr.bf16.gmra.mxu0 %v319
        %v559 = vpop.f32.mrf.mxu0
        %v560 = vadd.f32 0.0, %v559
        %v561 = vpop.f32.mrf.mxu0
        %v562 = vadd.f32 0.0, %v561
        %v563 = vpop.f32.mrf.mxu0
        %v564 = vadd.f32 0.0, %v563
        %v565 = vpop.f32.mrf.mxu0
        %v566 = vadd.f32 0.0, %v565
        %567 = vmatprep.mubr.bf16.mxu0 0
        %568 = vmatmul.mubr.bf16.gmra.mxu0 %v322
        %v569 = vpop.f32.mrf.mxu0
        %v570 = vadd.f32 0.0, %v569
        %v571 = vpop.f32.mrf.mxu0
        %v572 = vadd.f32 0.0, %v571
        %v573 = vpop.f32.mrf.mxu0
        %v574 = vadd.f32 0.0, %v573
        %v575 = vpop.f32.mrf.mxu0
        %v576 = vadd.f32 0.0, %v575
        %577 = vmatprep.mubr.bf16.mxu0 0
        %578 = vmatmul.mubr.bf16.gmra.mxu0 %v325
        %v579 = vpop.f32.mrf.mxu0
        %v580 = vadd.f32 0.0, %v579
        %v581 = vpop.f32.mrf.mxu0
        %v582 = vadd.f32 0.0, %v581
        %v583 = vpop.f32.mrf.mxu0
        %v584 = vadd.f32 0.0, %v583
        %v585 = vpop.f32.mrf.mxu0
        %v586 = vadd.f32 0.0, %v585
        %587 = vmatprep.mubr.bf16.mxu0 0
        %588 = vmatmul.mubr.bf16.gmra.mxu0 %v328
        %v589 = vpop.f32.mrf.mxu0
        %v590 = vadd.f32 0.0, %v589
        %v591 = vpop.f32.mrf.mxu0
        %v592 = vadd.f32 0.0, %v591
        %v593 = vpop.f32.mrf.mxu0
        %v594 = vadd.f32 0.0, %v593
        %v595 = vpop.f32.mrf.mxu0
        %v596 = vadd.f32 0.0, %v595
        %597 = vmatprep.mubr.bf16.mxu0 0
        %598 = vmatmul.mubr.bf16.gmra.mxu0 %v331
        %v599 = vpop.f32.mrf.mxu0
        %v600 = vadd.f32 0.0, %v599
        %v601 = vpop.f32.mrf.mxu0
        %v602 = vadd.f32 0.0, %v601
        %v603 = vpop.f32.mrf.mxu0
        %v604 = vadd.f32 0.0, %v603
        %v605 = vpop.f32.mrf.mxu0
        %v606 = vadd.f32 0.0, %v605
        %607 = vmatprep.mubr.bf16.mxu0 0
        %608 = vmatmul.mubr.bf16.gmra.mxu0 %v334
        %v609 = vpop.f32.mrf.mxu0
        %v610 = vadd.f32 0.0, %v609
        %v611 = vpop.f32.mrf.mxu0
        %v612 = vadd.f32 0.0, %v611
        %v613 = vpop.f32.mrf.mxu0
        %v614 = vadd.f32 0.0, %v613
        %v615 = vpop.f32.mrf.mxu0
        %v616 = vadd.f32 0.0, %v615
        %617 = vmatprep.mubr.bf16.mxu0 0
        %618 = vmatmul.mubr.bf16.gmra.mxu0 %v337
        %v619 = vpop.f32.mrf.mxu0
        %v620 = vadd.f32 0.0, %v619
        %v621 = vpop.f32.mrf.mxu0
        %v622 = vadd.f32 0.0, %v621
        %v623 = vpop.f32.mrf.mxu0
        %v624 = vadd.f32 0.0, %v623
        %v625 = vpop.f32.mrf.mxu0
        %v626 = vadd.f32 0.0, %v625
        %627 = vdwg.mxu0
        %628 = vmatprep.subr.bf16.mxu0 0
        %629 = vmatpush1.bf16.xpose.msra.mxu0 %v409
        %630 = vmatprep.subr.bf16.mxu0 0
        %631 = vmatpush1.bf16.xpose.msra.mxu0 %v406
        %632 = vmatprep.subr.bf16.mxu0 0
        %633 = vmatpush1.bf16.xpose.msra.mxu0 %v403
        %634 = vmatprep.subr.bf16.mxu0 0
        %635 = vmatpush1.bf16.xpose.msra.mxu0 %v400
        %636 = vmatprep.subr.bf16.mxu0 0
        %637 = vmatpush1.bf16.xpose.msra.mxu0 %v397
        %638 = vmatprep.subr.bf16.mxu0 0
        %639 = vmatpush1.bf16.xpose.msra.mxu0 %v394
        %640 = vmatprep.subr.bf16.mxu0 0
        %641 = vmatpush1.bf16.xpose.msra.mxu0 %v391
        %642 = vmatprep.subr.bf16.mxu0 0
        %643 = vmatpush1.bf16.xpose.msra.mxu0 %v388
        %644 = vmatprep.subr.bf16.mxu0 0
        %645 = vmatpush2.bf16.xpose.msra.mxu0 %v433
        %646 = vmatprep.subr.bf16.mxu0 0
        %647 = vmatpush2.bf16.xpose.msra.mxu0 %v430
        %648 = vmatprep.subr.bf16.mxu0 0
        %649 = vmatpush2.bf16.xpose.msra.mxu0 %v427
        %650 = vmatprep.subr.bf16.mxu0 0
        %651 = vmatpush2.bf16.xpose.msra.mxu0 %v424
        %652 = vmatprep.subr.bf16.mxu0 0
        %653 = vmatpush2.bf16.xpose.msra.mxu0 %v421
        %654 = vmatprep.subr.bf16.mxu0 0
        %655 = vmatpush2.bf16.xpose.msra.mxu0 %v418
        %656 = vmatprep.subr.bf16.mxu0 0
        %657 = vmatpush2.bf16.xpose.msra.mxu0 %v415
        %658 = vmatprep.subr.bf16.mxu0 0
        %659 = vmatpush2.bf16.xpose.msra.mxu0 %v412
        %660 = vmatprep.mubr.bf16.mxu0 0
        %661 = vmatmul.mubr.bf16.gmra.mxu0 %v292
        %v662 = vpop.f32.mrf.mxu0
        %v663 = vadd.f32 0.0, %v662
        %v664 = vpop.f32.mrf.mxu0
        %v665 = vadd.f32 0.0, %v664
        %v666 = vpop.f32.mrf.mxu0
        %v667 = vadd.f32 0.0, %v666
        %v668 = vpop.f32.mrf.mxu0
        %v669 = vadd.f32 0.0, %v668
        %670 = vmatprep.mubr.bf16.mxu0 0
        %671 = vmatmul.mubr.bf16.gmra.mxu0 %v295
        %v672 = vpop.f32.mrf.mxu0
        %v673 = vadd.f32 0.0, %v672
        %v674 = vpop.f32.mrf.mxu0
        %v675 = vadd.f32 0.0, %v674
        %v676 = vpop.f32.mrf.mxu0
        %v677 = vadd.f32 0.0, %v676
        %v678 = vpop.f32.mrf.mxu0
        %v679 = vadd.f32 0.0, %v678
        %680 = vmatprep.mubr.bf16.mxu0 0
        %681 = vmatmul.mubr.bf16.gmra.mxu0 %v298
        %v682 = vpop.f32.mrf.mxu0
        %v683 = vadd.f32 0.0, %v682
        %v684 = vpop.f32.mrf.mxu0
        %v685 = vadd.f32 0.0, %v684
        %v686 = vpop.f32.mrf.mxu0
        %v687 = vadd.f32 0.0, %v686
        %v688 = vpop.f32.mrf.mxu0
        %v689 = vadd.f32 0.0, %v688
        %690 = vmatprep.mubr.bf16.mxu0 0
        %691 = vmatmul.mubr.bf16.gmra.mxu0 %v301
        %v692 = vpop.f32.mrf.mxu0
        %v693 = vadd.f32 0.0, %v692
        %v694 = vpop.f32.mrf.mxu0
        %v695 = vadd.f32 0.0, %v694
        %v696 = vpop.f32.mrf.mxu0
        %v697 = vadd.f32 0.0, %v696
        %v698 = vpop.f32.mrf.mxu0
        %v699 = vadd.f32 0.0, %v698
        %700 = vmatprep.mubr.bf16.mxu0 0
        %701 = vmatmul.mubr.bf16.gmra.mxu0 %v304
        %v702 = vpop.f32.mrf.mxu0
        %v703 = vadd.f32 0.0, %v702
        %v704 = vpop.f32.mrf.mxu0
        %v705 = vadd.f32 0.0, %v704
        %v706 = vpop.f32.mrf.mxu0
        %v707 = vadd.f32 0.0, %v706
        %v708 = vpop.f32.mrf.mxu0
        %v709 = vadd.f32 0.0, %v708
        %710 = vmatprep.mubr.bf16.mxu0 0
        %711 = vmatmul.mubr.bf16.gmra.mxu0 %v307
        %v712 = vpop.f32.mrf.mxu0
        %v713 = vadd.f32 0.0, %v712
        %v714 = vpop.f32.mrf.mxu0
        %v715 = vadd.f32 0.0, %v714
        %v716 = vpop.f32.mrf.mxu0
        %v717 = vadd.f32 0.0, %v716
        %v718 = vpop.f32.mrf.mxu0
        %v719 = vadd.f32 0.0, %v718
        %720 = vmatprep.mubr.bf16.mxu0 0
        %721 = vmatmul.mubr.bf16.gmra.mxu0 %v310
        %v722 = vpop.f32.mrf.mxu0
        %v723 = vadd.f32 0.0, %v722
        %v724 = vpop.f32.mrf.mxu0
        %v725 = vadd.f32 0.0, %v724
        %v726 = vpop.f32.mrf.mxu0
        %v727 = vadd.f32 0.0, %v726
        %v728 = vpop.f32.mrf.mxu0
        %v729 = vadd.f32 0.0, %v728
        %730 = vmatprep.mubr.bf16.mxu0 0
        %731 = vmatmul.mubr.bf16.gmra.mxu0 %v313
        %v732 = vpop.f32.mrf.mxu0
        %v733 = vadd.f32 0.0, %v732
        %v734 = vpop.f32.mrf.mxu0
        %v735 = vadd.f32 0.0, %v734
        %v736 = vpop.f32.mrf.mxu0
        %v737 = vadd.f32 0.0, %v736
        %v738 = vpop.f32.mrf.mxu0
        %v739 = vadd.f32 0.0, %v738
        %740 = vmatprep.mubr.bf16.mxu0 0
        %741 = vmatmul.mubr.bf16.gmra.mxu0 %v316
        %v742 = vpop.f32.mrf.mxu0
        %v743 = vadd.f32 0.0, %v742
        %v744 = vpop.f32.mrf.mxu0
        %v745 = vadd.f32 0.0, %v744
        %v746 = vpop.f32.mrf.mxu0
        %v747 = vadd.f32 0.0, %v746
        %v748 = vpop.f32.mrf.mxu0
        %v749 = vadd.f32 0.0, %v748
        %750 = vmatprep.mubr.bf16.mxu0 0
        %751 = vmatmul.mubr.bf16.gmra.mxu0 %v319
        %v752 = vpop.f32.mrf.mxu0
        %v753 = vadd.f32 0.0, %v752
        %v754 = vpop.f32.mrf.mxu0
        %v755 = vadd.f32 0.0, %v754
        %v756 = vpop.f32.mrf.mxu0
        %v757 = vadd.f32 0.0, %v756
        %v758 = vpop.f32.mrf.mxu0
        %v759 = vadd.f32 0.0, %v758
        %760 = vmatprep.mubr.bf16.mxu0 0
        %761 = vmatmul.mubr.bf16.gmra.mxu0 %v322
        %v762 = vpop.f32.mrf.mxu0
        %v763 = vadd.f32 0.0, %v762
        %v764 = vpop.f32.mrf.mxu0
        %v765 = vadd.f32 0.0, %v764
        %v766 = vpop.f32.mrf.mxu0
        %v767 = vadd.f32 0.0, %v766
        %v768 = vpop.f32.mrf.mxu0
        %v769 = vadd.f32 0.0, %v768
        %770 = vmatprep.mubr.bf16.mxu0 0
        %771 = vmatmul.mubr.bf16.gmra.mxu0 %v325
        %v772 = vpop.f32.mrf.mxu0
        %v773 = vadd.f32 0.0, %v772
        %v774 = vpop.f32.mrf.mxu0
        %v775 = vadd.f32 0.0, %v774
        %v776 = vpop.f32.mrf.mxu0
        %v777 = vadd.f32 0.0, %v776
        %v778 = vpop.f32.mrf.mxu0
        %v779 = vadd.f32 0.0, %v778
        %780 = vmatprep.mubr.bf16.mxu0 0
        %781 = vmatmul.mubr.bf16.gmra.mxu0 %v328
        %v782 = vpop.f32.mrf.mxu0
        %v783 = vadd.f32 0.0, %v782
        %v784 = vpop.f32.mrf.mxu0
        %v785 = vadd.f32 0.0, %v784
        %v786 = vpop.f32.mrf.mxu0
        %v787 = vadd.f32 0.0, %v786
        %v788 = vpop.f32.mrf.mxu0
        %v789 = vadd.f32 0.0, %v788
        %790 = vmatprep.mubr.bf16.mxu0 0
        %791 = vmatmul.mubr.bf16.gmra.mxu0 %v331
        %v792 = vpop.f32.mrf.mxu0
        %v793 = vadd.f32 0.0, %v792
        %v794 = vpop.f32.mrf.mxu0
        %v795 = vadd.f32 0.0, %v794
        %v796 = vpop.f32.mrf.mxu0
        %v797 = vadd.f32 0.0, %v796
        %v798 = vpop.f32.mrf.mxu0
        %v799 = vadd.f32 0.0, %v798
        %800 = vmatprep.mubr.bf16.mxu0 0
        %801 = vmatmul.mubr.bf16.gmra.mxu0 %v334
        %v802 = vpop.f32.mrf.mxu0
        %v803 = vadd.f32 0.0, %v802
        %v804 = vpop.f32.mrf.mxu0
        %v805 = vadd.f32 0.0, %v804
        %v806 = vpop.f32.mrf.mxu0
        %v807 = vadd.f32 0.0, %v806
        %v808 = vpop.f32.mrf.mxu0
        %v809 = vadd.f32 0.0, %v808
        %810 = vmatprep.mubr.bf16.mxu0 0
        %811 = vmatmul.mubr.bf16.gmra.mxu0 %v337
        %v812 = vpop.f32.mrf.mxu0
        %v813 = vadd.f32 0.0, %v812
        %v814 = vpop.f32.mrf.mxu0
        %v815 = vadd.f32 0.0, %v814
        %v816 = vpop.f32.mrf.mxu0
        %v817 = vadd.f32 0.0, %v816
        %v818 = vpop.f32.mrf.mxu0
        %v819 = vadd.f32 0.0, %v818
        %820 = vdwg.mxu0
        %v821 = vmul.f32 %v146, %v146
        %v822 = vmul.f32 %v147, %v147
        %v823 = vmul.f32 %v148, %v148
        %v824 = vmul.f32 %v149, %v149
        %v825 = vmul.f32 %v150, %v150
        %v826 = vmul.f32 %v151, %v151
        %v827 = vmul.f32 %v152, %v152
        %v828 = vmul.f32 %v153, %v153
        %v829 = vmul.f32 %v154, %v154
        %v830 = vmul.f32 %v155, %v155
        %v831 = vmul.f32 %v156, %v156
        %v832 = vmul.f32 %v157, %v157
        %v833 = vmul.f32 %v158, %v158
        %v834 = vmul.f32 %v159, %v159
        %v835 = vmul.f32 %v160, %v160
        %v836 = vmul.f32 %v161, %v161
        %v837 = vmul.f32 %v162, %v162
        %v838 = vmul.f32 %v163, %v163
        %v839 = vmul.f32 %v164, %v164
        %v840 = vmul.f32 %v165, %v165
        %v841 = vmul.f32 %v166, %v166
        %v842 = vmul.f32 %v167, %v167
        %v843 = vmul.f32 %v168, %v168
        %v844 = vmul.f32 %v169, %v169
        %v845 = vmul.f32 %v170, %v170
        %v846 = vmul.f32 %v171, %v171
        %v847 = vmul.f32 %v172, %v172
        %v848 = vmul.f32 %v173, %v173
        %v849 = vmul.f32 %v174, %v174
        %v850 = vmul.f32 %v175, %v175
        %v851 = vmul.f32 %v176, %v176
        %v852 = vmul.f32 %v177, %v177
        %v853 = vsel %vm290, %v821, 0.0
        %854 = vadd.xlane.f32.xlu0 %v853
        %v855 = vpop.xlane.xlu0 %854
        %v856 = vsel %vm290, %v822, 0.0
        %857 = vadd.xlane.f32.xlu0 %v856
        %v858 = vpop.xlane.xlu0 %857
        %v859 = vsel %vm290, %v823, 0.0
        %860 = vadd.xlane.f32.xlu0 %v859
        %v861 = vpop.xlane.xlu0 %860
        %v862 = vsel %vm290, %v824, 0.0
        %863 = vadd.xlane.f32.xlu0 %v862
        %v864 = vpop.xlane.xlu0 %863
        %v865 = vsel %vm290, %v825, 0.0
        %866 = vadd.xlane.f32.xlu0 %v865
        %v867 = vpop.xlane.xlu0 %866
        %v868 = vsel %vm290, %v826, 0.0
        %869 = vadd.xlane.f32.xlu0 %v868
        %v870 = vpop.xlane.xlu0 %869
        %v871 = vsel %vm290, %v827, 0.0
        %872 = vadd.xlane.f32.xlu0 %v871
        %v873 = vpop.xlane.xlu0 %872
        %v874 = vsel %vm290, %v828, 0.0
        %875 = vadd.xlane.f32.xlu0 %v874
        %v876 = vpop.xlane.xlu0 %875
        %v877 = vsel %vm290, %v829, 0.0
        %878 = vadd.xlane.f32.xlu0 %v877
        %v879 = vpop.xlane.xlu0 %878
        %v880 = vsel %vm290, %v830, 0.0
        %881 = vadd.xlane.f32.xlu0 %v880
        %v882 = vpop.xlane.xlu0 %881
        %v883 = vsel %vm290, %v831, 0.0
        %884 = vadd.xlane.f32.xlu0 %v883
        %v885 = vpop.xlane.xlu0 %884
        %v886 = vsel %vm290, %v832, 0.0
        %887 = vadd.xlane.f32.xlu0 %v886
        %v888 = vpop.xlane.xlu0 %887
        %v889 = vsel %vm290, %v833, 0.0
        %890 = vadd.xlane.f32.xlu0 %v889
        %v891 = vpop.xlane.xlu0 %890
        %v892 = vsel %vm290, %v834, 0.0
        %893 = vadd.xlane.f32.xlu0 %v892
        %v894 = vpop.xlane.xlu0 %893
        %v895 = vsel %vm290, %v835, 0.0
        %896 = vadd.xlane.f32.xlu0 %v895
        %v897 = vpop.xlane.xlu0 %896
        %v898 = vsel %vm290, %v836, 0.0
        %899 = vadd.xlane.f32.xlu0 %v898
        %v900 = vpop.xlane.xlu0 %899
        %v901 = vsel %vm290, %v837, 0.0
        %902 = vadd.xlane.f32.xlu0 %v901
        %v903 = vpop.xlane.xlu0 %902
        %v904 = vsel %vm290, %v838, 0.0
        %905 = vadd.xlane.f32.xlu0 %v904
        %v906 = vpop.xlane.xlu0 %905
        %v907 = vsel %vm290, %v839, 0.0
        %908 = vadd.xlane.f32.xlu0 %v907
        %v909 = vpop.xlane.xlu0 %908
        %v910 = vsel %vm290, %v840, 0.0
        %911 = vadd.xlane.f32.xlu0 %v910
        %v912 = vpop.xlane.xlu0 %911
        %v913 = vsel %vm290, %v841, 0.0
        %914 = vadd.xlane.f32.xlu0 %v913
        %v915 = vpop.xlane.xlu0 %914
        %v916 = vsel %vm290, %v842, 0.0
        %917 = vadd.xlane.f32.xlu0 %v916
        %v918 = vpop.xlane.xlu0 %917
        %v919 = vsel %vm290, %v843, 0.0
        %920 = vadd.xlane.f32.xlu0 %v919
        %v921 = vpop.xlane.xlu0 %920
        %v922 = vsel %vm290, %v844, 0.0
        %923 = vadd.xlane.f32.xlu0 %v922
        %v924 = vpop.xlane.xlu0 %923
        %v925 = vsel %vm290, %v845, 0.0
        %926 = vadd.xlane.f32.xlu0 %v925
        %v927 = vpop.xlane.xlu0 %926
        %v928 = vsel %vm290, %v846, 0.0
        %929 = vadd.xlane.f32.xlu0 %v928
        %v930 = vpop.xlane.xlu0 %929
        %v931 = vsel %vm290, %v847, 0.0
        %932 = vadd.xlane.f32.xlu0 %v931
        %v933 = vpop.xlane.xlu0 %932
        %v934 = vsel %vm290, %v848, 0.0
        %935 = vadd.xlane.f32.xlu0 %v934
        %v936 = vpop.xlane.xlu0 %935
        %v937 = vsel %vm290, %v849, 0.0
        %938 = vadd.xlane.f32.xlu0 %v937
        %v939 = vpop.xlane.xlu0 %938
        %v940 = vsel %vm290, %v850, 0.0
        %941 = vadd.xlane.f32.xlu0 %v940
        %v942 = vpop.xlane.xlu0 %941
        %v943 = vsel %vm290, %v851, 0.0
        %944 = vadd.xlane.f32.xlu0 %v943
        %v945 = vpop.xlane.xlu0 %944
        %v946 = vsel %vm290, %v852, 0.0
        %947 = vadd.xlane.f32.xlu0 %v946
        %v948 = vpop.xlane.xlu0 %947
        %v949 = vmul.f32 %v178, %v178
        %v950 = vmul.f32 %v179, %v179
        %v951 = vmul.f32 %v180, %v180
        %v952 = vmul.f32 %v181, %v181
        %v953 = vmul.f32 %v182, %v182
        %v954 = vmul.f32 %v183, %v183
        %v955 = vmul.f32 %v184, %v184
        %v956 = vmul.f32 %v185, %v185
        %v957 = vmul.f32 %v186, %v186
        %v958 = vmul.f32 %v187, %v187
        %v959 = vmul.f32 %v188, %v188
        %v960 = vmul.f32 %v189, %v189
        %v961 = vmul.f32 %v190, %v190
        %v962 = vmul.f32 %v191, %v191
        %v963 = vmul.f32 %v192, %v192
        %v964 = vmul.f32 %v193, %v193
        %v965 = vmul.f32 %v194, %v194
        %v966 = vmul.f32 %v195, %v195
        %v967 = vmul.f32 %v196, %v196
        %v968 = vmul.f32 %v197, %v197
        %v969 = vmul.f32 %v198, %v198
        %v970 = vmul.f32 %v199, %v199
        %v971 = vmul.f32 %v200, %v200
        %v972 = vmul.f32 %v201, %v201
        %v973 = vmul.f32 %v202, %v202
        %v974 = vmul.f32 %v203, %v203
        %v975 = vmul.f32 %v204, %v204
        %v976 = vmul.f32 %v205, %v205
        %v977 = vmul.f32 %v206, %v206
        %v978 = vmul.f32 %v207, %v207
        %v979 = vmul.f32 %v208, %v208
        %v980 = vmul.f32 %v209, %v209
        %v981 = vmul.f32 %v210, %v210
        %v982 = vmul.f32 %v211, %v211
        %v983 = vmul.f32 %v212, %v212
        %v984 = vmul.f32 %v213, %v213
        %v985 = vmul.f32 %v214, %v214
        %v986 = vmul.f32 %v215, %v215
        %v987 = vmul.f32 %v216, %v216
        %v988 = vmul.f32 %v217, %v217
        %v989 = vmul.f32 %v218, %v218
        %v990 = vmul.f32 %v219, %v219
        %v991 = vmul.f32 %v220, %v220
        %v992 = vmul.f32 %v221, %v221
        %v993 = vmul.f32 %v222, %v222
        %v994 = vmul.f32 %v223, %v223
        %v995 = vmul.f32 %v224, %v224
        %v996 = vmul.f32 %v225, %v225
        %v997 = vmul.f32 %v226, %v226
        %v998 = vmul.f32 %v227, %v227
        %v999 = vmul.f32 %v228, %v228
        %v1000 = vmul.f32 %v229, %v229
        %v1001 = vmul.f32 %v230, %v230
        %v1002 = vmul.f32 %v231, %v231
        %v1003 = vmul.f32 %v232, %v232
        %v1004 = vmul.f32 %v233, %v233
        %v1005 = vmul.f32 %v234, %v234
        %v1006 = vmul.f32 %v235, %v235
        %v1007 = vmul.f32 %v236, %v236
        %v1008 = vmul.f32 %v237, %v237
        %v1009 = vmul.f32 %v238, %v238
        %v1010 = vmul.f32 %v239, %v239
        %v1011 = vmul.f32 %v240, %v240
        %v1012 = vmul.f32 %v241, %v241
        %v1014 = vsel %vm290, 1.0, 0
        %v1017 = vsel %vm290, %v949, 0
        %v1020 = vsel %vm290, %v950, 0
        %v1023 = vsel %vm290, %v951, 0
        %v1026 = vsel %vm290, %v952, 0
        %v1029 = vsel %vm290, %v953, 0
        %v1032 = vsel %vm290, %v954, 0
        %v1035 = vsel %vm290, %v955, 0
        %v1038 = vsel %vm290, %v956, 0
        %v1041 = vsel %vm290, %v957, 0
        %v1044 = vsel %vm290, %v958, 0
        %v1047 = vsel %vm290, %v959, 0
        %v1050 = vsel %vm290, %v960, 0
        %v1053 = vsel %vm290, %v961, 0
        %v1056 = vsel %vm290, %v962, 0
        %v1059 = vsel %vm290, %v963, 0
        %v1062 = vsel %vm290, %v964, 0
        %v1065 = vsel %vm290, %v965, 0
        %v1068 = vsel %vm290, %v966, 0
        %v1071 = vsel %vm290, %v967, 0
        %v1074 = vsel %vm290, %v968, 0
        %v1077 = vsel %vm290, %v969, 0
        %v1080 = vsel %vm290, %v970, 0
        %v1083 = vsel %vm290, %v971, 0
        %v1086 = vsel %vm290, %v972, 0
        %v1089 = vsel %vm290, %v973, 0
        %v1092 = vsel %vm290, %v974, 0
        %v1095 = vsel %vm290, %v975, 0
        %v1098 = vsel %vm290, %v976, 0
        %v1101 = vsel %vm290, %v977, 0
        %v1104 = vsel %vm290, %v978, 0
        %v1107 = vsel %vm290, %v979, 0
        %v1110 = vsel %vm290, %v980, 0
        %v1113 = vsel %vm290, %v981, 0
        %v1116 = vsel %vm290, %v982, 0
        %v1119 = vsel %vm290, %v983, 0
        %v1122 = vsel %vm290, %v984, 0
        %v1125 = vsel %vm290, %v985, 0
        %v1128 = vsel %vm290, %v986, 0
        %v1131 = vsel %vm290, %v987, 0
        %v1134 = vsel %vm290, %v988, 0
        %v1137 = vsel %vm290, %v989, 0
        %v1140 = vsel %vm290, %v990, 0
        %v1143 = vsel %vm290, %v991, 0
        %v1146 = vsel %vm290, %v992, 0
        %v1149 = vsel %vm290, %v993, 0
        %v1152 = vsel %vm290, %v994, 0
        %v1155 = vsel %vm290, %v995, 0
        %v1158 = vsel %vm290, %v996, 0
        %v1161 = vsel %vm290, %v997, 0
        %v1164 = vsel %vm290, %v998, 0
        %v1167 = vsel %vm290, %v999, 0
        %v1170 = vsel %vm290, %v1000, 0
        %v1173 = vsel %vm290, %v1001, 0
        %v1176 = vsel %vm290, %v1002, 0
        %v1179 = vsel %vm290, %v1003, 0
        %v1182 = vsel %vm290, %v1004, 0
        %v1185 = vsel %vm290, %v1005, 0
        %v1188 = vsel %vm290, %v1006, 0
        %v1191 = vsel %vm290, %v1007, 0
        %v1194 = vsel %vm290, %v1008, 0
        %v1197 = vsel %vm290, %v1009, 0
        %v1200 = vsel %vm290, %v1010, 0
        %v1203 = vsel %vm290, %v1011, 0
        %v1206 = vsel %vm290, %v1012, 0
        %1208 = vmatprep.subr.mxu0 0.0
        %1209 = vmatpush1.xpose.msra.mxu0 %v1062
        %1210 = vmatprep.subr.mxu0 0.0
        %1211 = vmatpush1.xpose.msra.mxu0 %v1059
        %1212 = vmatprep.subr.mxu0 0.0
        %1213 = vmatpush1.xpose.msra.mxu0 %v1056
        %1214 = vmatprep.subr.mxu0 0.0
        %1215 = vmatpush1.xpose.msra.mxu0 %v1053
        %1216 = vmatprep.subr.mxu0 0.0
        %1217 = vmatpush1.xpose.msra.mxu0 %v1050
        %1218 = vmatprep.subr.mxu0 0.0
        %1219 = vmatpush1.xpose.msra.mxu0 %v1047
        %1220 = vmatprep.subr.mxu0 0.0
        %1221 = vmatpush1.xpose.msra.mxu0 %v1044
        %1222 = vmatprep.subr.mxu0 0.0
        %1223 = vmatpush1.xpose.msra.mxu0 %v1041
        %1224 = vmatprep.subr.mxu0 0.0
        %1225 = vmatpush1.xpose.msra.mxu0 %v1038
        %1226 = vmatprep.subr.mxu0 0.0
        %1227 = vmatpush1.xpose.msra.mxu0 %v1035
        %1228 = vmatprep.subr.mxu0 0.0
        %1229 = vmatpush1.xpose.msra.mxu0 %v1032
        %1230 = vmatprep.subr.mxu0 0.0
        %1231 = vmatpush1.xpose.msra.mxu0 %v1029
        %1232 = vmatprep.subr.mxu0 0.0
        %1233 = vmatpush1.xpose.msra.mxu0 %v1026
        %1234 = vmatprep.subr.mxu0 0.0
        %1235 = vmatpush1.xpose.msra.mxu0 %v1023
        %1236 = vmatprep.subr.mxu0 0.0
        %1237 = vmatpush1.xpose.msra.mxu0 %v1020
        %1238 = vmatprep.subr.mxu0 0.0
        %1239 = vmatpush1.xpose.msra.mxu0 %v1017
        %1240 = vmatprep.subr.mxu0 0.0
        %1241 = vmatpush2.xpose.msra.mxu0 %v1110
        %1242 = vmatprep.subr.mxu0 0.0
        %1243 = vmatpush2.xpose.msra.mxu0 %v1107
        %1244 = vmatprep.subr.mxu0 0.0
        %1245 = vmatpush2.xpose.msra.mxu0 %v1104
        %1246 = vmatprep.subr.mxu0 0.0
        %1247 = vmatpush2.xpose.msra.mxu0 %v1101
        %1248 = vmatprep.subr.mxu0 0.0
        %1249 = vmatpush2.xpose.msra.mxu0 %v1098
        %1250 = vmatprep.subr.mxu0 0.0
        %1251 = vmatpush2.xpose.msra.mxu0 %v1095
        %1252 = vmatprep.subr.mxu0 0.0
        %1253 = vmatpush2.xpose.msra.mxu0 %v1092
        %1254 = vmatprep.subr.mxu0 0.0
        %1255 = vmatpush2.xpose.msra.mxu0 %v1089
        %1256 = vmatprep.subr.mxu0 0.0
        %1257 = vmatpush2.xpose.msra.mxu0 %v1086
        %1258 = vmatprep.subr.mxu0 0.0
        %1259 = vmatpush2.xpose.msra.mxu0 %v1083
        %1260 = vmatprep.subr.mxu0 0.0
        %1261 = vmatpush2.xpose.msra.mxu0 %v1080
        %1262 = vmatprep.subr.mxu0 0.0
        %1263 = vmatpush2.xpose.msra.mxu0 %v1077
        %1264 = vmatprep.subr.mxu0 0.0
        %1265 = vmatpush2.xpose.msra.mxu0 %v1074
        %1266 = vmatprep.subr.mxu0 0.0
        %1267 = vmatpush2.xpose.msra.mxu0 %v1071
        %1268 = vmatprep.subr.mxu0 0.0
        %1269 = vmatpush2.xpose.msra.mxu0 %v1068
        %1270 = vmatprep.subr.mxu0 0.0
        %1271 = vmatpush2.xpose.msra.mxu0 %v1065
        %1272 = vmatprep.mubr.f32.mxu0 0.0
        %1273 = vmatmul.mubr.f32.gmra.mxu0 %v1014
        %v1274 = vpop.f32.mrf.mxu0
        %v1275 = vadd.f32 0.0, %v1274
        %v1276 = vpop.f32.mrf.mxu0
        %v1277 = vadd.f32 0.0, %v1276
        %1278 = vdwg.mxu0
        %1279 = vmatprep.subr.mxu0 0.0
        %1280 = vmatpush1.xpose.msra.mxu0 %v1158
        %1281 = vmatprep.subr.mxu0 0.0
        %1282 = vmatpush1.xpose.msra.mxu0 %v1155
        %1283 = vmatprep.subr.mxu0 0.0
        %1284 = vmatpush1.xpose.msra.mxu0 %v1152
        %1285 = vmatprep.subr.mxu0 0.0
        %1286 = vmatpush1.xpose.msra.mxu0 %v1149
        %1287 = vmatprep.subr.mxu0 0.0
        %1288 = vmatpush1.xpose.msra.mxu0 %v1146
        %1289 = vmatprep.subr.mxu0 0.0
        %1290 = vmatpush1.xpose.msra.mxu0 %v1143
        %1291 = vmatprep.subr.mxu0 0.0
        %1292 = vmatpush1.xpose.msra.mxu0 %v1140
        %1293 = vmatprep.subr.mxu0 0.0
        %1294 = vmatpush1.xpose.msra.mxu0 %v1137
        %1295 = vmatprep.subr.mxu0 0.0
        %1296 = vmatpush1.xpose.msra.mxu0 %v1134
        %1297 = vmatprep.subr.mxu0 0.0
        %1298 = vmatpush1.xpose.msra.mxu0 %v1131
        %1299 = vmatprep.subr.mxu0 0.0
        %1300 = vmatpush1.xpose.msra.mxu0 %v1128
        %1301 = vmatprep.subr.mxu0 0.0
        %1302 = vmatpush1.xpose.msra.mxu0 %v1125
        %1303 = vmatprep.subr.mxu0 0.0
        %1304 = vmatpush1.xpose.msra.mxu0 %v1122
        %1305 = vmatprep.subr.mxu0 0.0
        %1306 = vmatpush1.xpose.msra.mxu0 %v1119
        %1307 = vmatprep.subr.mxu0 0.0
        %1308 = vmatpush1.xpose.msra.mxu0 %v1116
        %1309 = vmatprep.subr.mxu0 0.0
        %1310 = vmatpush1.xpose.msra.mxu0 %v1113
        %1311 = vmatprep.subr.mxu0 0.0
        %1312 = vmatpush2.xpose.msra.mxu0 %v1206
        %1313 = vmatprep.subr.mxu0 0.0
        %1314 = vmatpush2.xpose.msra.mxu0 %v1203
        %1315 = vmatprep.subr.mxu0 0.0
        %1316 = vmatpush2.xpose.msra.mxu0 %v1200
        %1317 = vmatprep.subr.mxu0 0.0
        %1318 = vmatpush2.xpose.msra.mxu0 %v1197
        %1319 = vmatprep.subr.mxu0 0.0
        %1320 = vmatpush2.xpose.msra.mxu0 %v1194
        %1321 = vmatprep.subr.mxu0 0.0
        %1322 = vmatpush2.xpose.msra.mxu0 %v1191
        %1323 = vmatprep.subr.mxu0 0.0
        %1324 = vmatpush2.xpose.msra.mxu0 %v1188
        %1325 = vmatprep.subr.mxu0 0.0
        %1326 = vmatpush2.xpose.msra.mxu0 %v1185
        %1327 = vmatprep.subr.mxu0 0.0
        %1328 = vmatpush2.xpose.msra.mxu0 %v1182
        %1329 = vmatprep.subr.mxu0 0.0
        %1330 = vmatpush2.xpose.msra.mxu0 %v1179
        %1331 = vmatprep.subr.mxu0 0.0
        %1332 = vmatpush2.xpose.msra.mxu0 %v1176
        %1333 = vmatprep.subr.mxu0 0.0
        %1334 = vmatpush2.xpose.msra.mxu0 %v1173
        %1335 = vmatprep.subr.mxu0 0.0
        %1336 = vmatpush2.xpose.msra.mxu0 %v1170
        %1337 = vmatprep.subr.mxu0 0.0
        %1338 = vmatpush2.xpose.msra.mxu0 %v1167
        %1339 = vmatprep.subr.mxu0 0.0
        %1340 = vmatpush2.xpose.msra.mxu0 %v1164
        %1341 = vmatprep.subr.mxu0 0.0
        %1342 = vmatpush2.xpose.msra.mxu0 %v1161
        %1343 = vmatprep.mubr.f32.mxu0 0.0
        %1344 = vmatmul.mubr.f32.gmra.mxu0 %v1014
        %v1345 = vpop.f32.mrf.mxu0
        %v1346 = vadd.f32 0.0, %v1345
        %v1347 = vpop.f32.mrf.mxu0
        %v1348 = vadd.f32 0.0, %v1347
        %1349 = vdwg.mxu0
        %v1350 = vlaneseq
        %v1351 = vshrl.u32 %v1350, 7
        %v1352 = vsub.s32 0, %v1351
        %v1353 = vrot.slane %v1275, %v1352
        %v1354 = vlaneseq
        %v1355 = vshrl.u32 %v1354, 7
        %v1356 = vsub.s32 0, %v1355
        %v1357 = vrot.slane %v1277, %v1356
        %v1358 = vlaneseq
        %v1359 = vshrl.u32 %v1358, 7
        %v1360 = vsub.s32 0, %v1359
        %v1361 = vrot.slane %v1346, %v1360
        %v1362 = vlaneseq
        %v1363 = vshrl.u32 %v1362, 7
        %v1364 = vsub.s32 0, %v1363
        %v1365 = vrot.slane %v1348, %v1364
        %v1366 = vadd.f32 %v855, %v1353
        %v1367 = vadd.f32 %v855, %v1357
        %v1368 = vadd.f32 %v855, %v1361
        %v1369 = vadd.f32 %v855, %v1365
        %v1370 = vadd.f32 %v858, %v1353
        %v1371 = vadd.f32 %v858, %v1357
        %v1372 = vadd.f32 %v858, %v1361
        %v1373 = vadd.f32 %v858, %v1365
        %v1374 = vadd.f32 %v861, %v1353
        %v1375 = vadd.f32 %v861, %v1357
        %v1376 = vadd.f32 %v861, %v1361
        %v1377 = vadd.f32 %v861, %v1365
        %v1378 = vadd.f32 %v864, %v1353
        %v1379 = vadd.f32 %v864, %v1357
        %v1380 = vadd.f32 %v864, %v1361
        %v1381 = vadd.f32 %v864, %v1365
        %v1382 = vadd.f32 %v867, %v1353
        %v1383 = vadd.f32 %v867, %v1357
        %v1384 = vadd.f32 %v867, %v1361
        %v1385 = vadd.f32 %v867, %v1365
        %v1386 = vadd.f32 %v870, %v1353
        %v1387 = vadd.f32 %v870, %v1357
        %v1388 = vadd.f32 %v870, %v1361
        %v1389 = vadd.f32 %v870, %v1365
        %v1390 = vadd.f32 %v873, %v1353
        %v1391 = vadd.f32 %v873, %v1357
        %v1392 = vadd.f32 %v873, %v1361
        %v1393 = vadd.f32 %v873, %v1365
        %v1394 = vadd.f32 %v876, %v1353
        %v1395 = vadd.f32 %v876, %v1357
        %v1396 = vadd.f32 %v876, %v1361
        %v1397 = vadd.f32 %v876, %v1365
        %v1398 = vadd.f32 %v879, %v1353
        %v1399 = vadd.f32 %v879, %v1357
        %v1400 = vadd.f32 %v879, %v1361
        %v1401 = vadd.f32 %v879, %v1365
        %v1402 = vadd.f32 %v882, %v1353
        %v1403 = vadd.f32 %v882, %v1357
        %v1404 = vadd.f32 %v882, %v1361
        %v1405 = vadd.f32 %v882, %v1365
        %v1406 = vadd.f32 %v885, %v1353
        %v1407 = vadd.f32 %v885, %v1357
        %v1408 = vadd.f32 %v885, %v1361
        %v1409 = vadd.f32 %v885, %v1365
        %v1410 = vadd.f32 %v888, %v1353
        %v1411 = vadd.f32 %v888, %v1357
        %v1412 = vadd.f32 %v888, %v1361
        %v1413 = vadd.f32 %v888, %v1365
        %v1414 = vadd.f32 %v891, %v1353
        %v1415 = vadd.f32 %v891, %v1357
        %v1416 = vadd.f32 %v891, %v1361
        %v1417 = vadd.f32 %v891, %v1365
        %v1418 = vadd.f32 %v894, %v1353
        %v1419 = vadd.f32 %v894, %v1357
        %v1420 = vadd.f32 %v894, %v1361
        %v1421 = vadd.f32 %v894, %v1365
        %v1422 = vadd.f32 %v897, %v1353
        %v1423 = vadd.f32 %v897, %v1357
        %v1424 = vadd.f32 %v897, %v1361
        %v1425 = vadd.f32 %v897, %v1365
        %v1426 = vadd.f32 %v900, %v1353
        %v1427 = vadd.f32 %v900, %v1357
        %v1428 = vadd.f32 %v900, %v1361
        %v1429 = vadd.f32 %v900, %v1365
        %v1430 = vadd.f32 %v903, %v1353
        %v1431 = vadd.f32 %v903, %v1357
        %v1432 = vadd.f32 %v903, %v1361
        %v1433 = vadd.f32 %v903, %v1365
        %v1434 = vadd.f32 %v906, %v1353
        %v1435 = vadd.f32 %v906, %v1357
        %v1436 = vadd.f32 %v906, %v1361
        %v1437 = vadd.f32 %v906, %v1365
        %v1438 = vadd.f32 %v909, %v1353
        %v1439 = vadd.f32 %v909, %v1357
        %v1440 = vadd.f32 %v909, %v1361
        %v1441 = vadd.f32 %v909, %v1365
        %v1442 = vadd.f32 %v912, %v1353
        %v1443 = vadd.f32 %v912, %v1357
        %v1444 = vadd.f32 %v912, %v1361
        %v1445 = vadd.f32 %v912, %v1365
        %v1446 = vadd.f32 %v915, %v1353
        %v1447 = vadd.f32 %v915, %v1357
        %v1448 = vadd.f32 %v915, %v1361
        %v1449 = vadd.f32 %v915, %v1365
        %v1450 = vadd.f32 %v918, %v1353
        %v1451 = vadd.f32 %v918, %v1357
        %v1452 = vadd.f32 %v918, %v1361
        %v1453 = vadd.f32 %v918, %v1365
        %v1454 = vadd.f32 %v921, %v1353
        %v1455 = vadd.f32 %v921, %v1357
        %v1456 = vadd.f32 %v921, %v1361
        %v1457 = vadd.f32 %v921, %v1365
        %v1458 = vadd.f32 %v924, %v1353
        %v1459 = vadd.f32 %v924, %v1357
        %v1460 = vadd.f32 %v924, %v1361
        %v1461 = vadd.f32 %v924, %v1365
        %v1462 = vadd.f32 %v927, %v1353
        %v1463 = vadd.f32 %v927, %v1357
        %v1464 = vadd.f32 %v927, %v1361
        %v1465 = vadd.f32 %v927, %v1365
        %v1466 = vadd.f32 %v930, %v1353
        %v1467 = vadd.f32 %v930, %v1357
        %v1468 = vadd.f32 %v930, %v1361
        %v1469 = vadd.f32 %v930, %v1365
        %v1470 = vadd.f32 %v933, %v1353
        %v1471 = vadd.f32 %v933, %v1357
        %v1472 = vadd.f32 %v933, %v1361
        %v1473 = vadd.f32 %v933, %v1365
        %v1474 = vadd.f32 %v936, %v1353
        %v1475 = vadd.f32 %v936, %v1357
        %v1476 = vadd.f32 %v936, %v1361
        %v1477 = vadd.f32 %v936, %v1365
        %v1478 = vadd.f32 %v939, %v1353
        %v1479 = vadd.f32 %v939, %v1357
        %v1480 = vadd.f32 %v939, %v1361
        %v1481 = vadd.f32 %v939, %v1365
        %v1482 = vadd.f32 %v942, %v1353
        %v1483 = vadd.f32 %v942, %v1357
        %v1484 = vadd.f32 %v942, %v1361
        %v1485 = vadd.f32 %v942, %v1365
        %v1486 = vadd.f32 %v945, %v1353
        %v1487 = vadd.f32 %v945, %v1357
        %v1488 = vadd.f32 %v945, %v1361
        %v1489 = vadd.f32 %v945, %v1365
        %v1490 = vadd.f32 %v948, %v1353
        %v1491 = vadd.f32 %v948, %v1357
        %v1492 = vadd.f32 %v948, %v1361
        %v1493 = vadd.f32 %v948, %v1365
        %v1494 = vmul.f32 %v470, 2.0
        %v1495 = vmul.f32 %v472, 2.0
        %v1496 = vmul.f32 %v663, 2.0
        %v1497 = vmul.f32 %v665, 2.0
        %v1498 = vmul.f32 %v474, 2.0
        %v1499 = vmul.f32 %v476, 2.0
        %v1500 = vmul.f32 %v667, 2.0
        %v1501 = vmul.f32 %v669, 2.0
        %v1502 = vmul.f32 %v480, 2.0
        %v1503 = vmul.f32 %v482, 2.0
        %v1504 = vmul.f32 %v673, 2.0
        %v1505 = vmul.f32 %v675, 2.0
        %v1506 = vmul.f32 %v484, 2.0
        %v1507 = vmul.f32 %v486, 2.0
        %v1508 = vmul.f32 %v677, 2.0
        %v1509 = vmul.f32 %v679, 2.0
        %v1510 = vmul.f32 %v490, 2.0
        %v1511 = vmul.f32 %v492, 2.0
        %v1512 = vmul.f32 %v683, 2.0
        %v1513 = vmul.f32 %v685, 2.0
        %v1514 = vmul.f32 %v494, 2.0
        %v1515 = vmul.f32 %v496, 2.0
        %v1516 = vmul.f32 %v687, 2.0
        %v1517 = vmul.f32 %v689, 2.0
        %v1518 = vmul.f32 %v500, 2.0
        %v1519 = vmul.f32 %v502, 2.0
        %v1520 = vmul.f32 %v693, 2.0
        %v1521 = vmul.f32 %v695, 2.0
        %v1522 = vmul.f32 %v504, 2.0
        %v1523 = vmul.f32 %v506, 2.0
        %v1524 = vmul.f32 %v697, 2.0
        %v1525 = vmul.f32 %v699, 2.0
        %v1526 = vmul.f32 %v510, 2.0
        %v1527 = vmul.f32 %v512, 2.0
        %v1528 = vmul.f32 %v703, 2.0
        %v1529 = vmul.f32 %v705, 2.0
        %v1530 = vmul.f32 %v514, 2.0
        %v1531 = vmul.f32 %v516, 2.0
        %v1532 = vmul.f32 %v707, 2.0
        %v1533 = vmul.f32 %v709, 2.0
        %v1534 = vmul.f32 %v520, 2.0
        %v1535 = vmul.f32 %v522, 2.0
        %v1536 = vmul.f32 %v713, 2.0
        %v1537 = vmul.f32 %v715, 2.0
        %v1538 = vmul.f32 %v524, 2.0
        %v1539 = vmul.f32 %v526, 2.0
        %v1540 = vmul.f32 %v717, 2.0
        %v1541 = vmul.f32 %v719, 2.0
        %v1542 = vmul.f32 %v530, 2.0
        %v1543 = vmul.f32 %v532, 2.0
        %v1544 = vmul.f32 %v723, 2.0
        %v1545 = vmul.f32 %v725, 2.0
        %v1546 = vmul.f32 %v534, 2.0
        %v1547 = vmul.f32 %v536, 2.0
        %v1548 = vmul.f32 %v727, 2.0
        %v1549 = vmul.f32 %v729, 2.0
        %v1550 = vmul.f32 %v540, 2.0
        %v1551 = vmul.f32 %v542, 2.0
        %v1552 = vmul.f32 %v733, 2.0
        %v1553 = vmul.f32 %v735, 2.0
        %v1554 = vmul.f32 %v544, 2.0
        %v1555 = vmul.f32 %v546, 2.0
        %v1556 = vmul.f32 %v737, 2.0
        %v1557 = vmul.f32 %v739, 2.0
        %v1558 = vmul.f32 %v550, 2.0
        %v1559 = vmul.f32 %v552, 2.0
        %v1560 = vmul.f32 %v743, 2.0
        %v1561 = vmul.f32 %v745, 2.0
        %v1562 = vmul.f32 %v554, 2.0
        %v1563 = vmul.f32 %v556, 2.0
        %v1564 = vmul.f32 %v747, 2.0
        %v1565 = vmul.f32 %v749, 2.0
        %v1566 = vmul.f32 %v560, 2.0
        %v1567 = vmul.f32 %v562, 2.0
        %v1568 = vmul.f32 %v753, 2.0
        %v1569 = vmul.f32 %v755, 2.0
        %v1570 = vmul.f32 %v564, 2.0
        %v1571 = vmul.f32 %v566, 2.0
        %v1572 = vmul.f32 %v757, 2.0
        %v1573 = vmul.f32 %v759, 2.0
        %v1574 = vmul.f32 %v570, 2.0
        %v1575 = vmul.f32 %v572, 2.0
        %v1576 = vmul.f32 %v763, 2.0
        %v1577 = vmul.f32 %v765, 2.0
        %v1578 = vmul.f32 %v574, 2.0
        %v1579 = vmul.f32 %v576, 2.0
        %v1580 = vmul.f32 %v767, 2.0
        %v1581 = vmul.f32 %v769, 2.0
        %v1582 = vmul.f32 %v580, 2.0
        %v1583 = vmul.f32 %v582, 2.0
        %v1584 = vmul.f32 %v773, 2.0
        %v1585 = vmul.f32 %v775, 2.0
        %v1586 = vmul.f32 %v584, 2.0
        %v1587 = vmul.f32 %v586, 2.0
        %v1588 = vmul.f32 %v777, 2.0
        %v1589 = vmul.f32 %v779, 2.0
        %v1590 = vmul.f32 %v590, 2.0
        %v1591 = vmul.f32 %v592, 2.0
        %v1592 = vmul.f32 %v783, 2.0
        %v1593 = vmul.f32 %v785, 2.0
        %v1594 = vmul.f32 %v594, 2.0
        %v1595 = vmul.f32 %v596, 2.0
        %v1596 = vmul.f32 %v787, 2.0
        %v1597 = vmul.f32 %v789, 2.0
        %v1598 = vmul.f32 %v600, 2.0
        %v1599 = vmul.f32 %v602, 2.0
        %v1600 = vmul.f32 %v793, 2.0
        %v1601 = vmul.f32 %v795, 2.0
        %v1602 = vmul.f32 %v604, 2.0
        %v1603 = vmul.f32 %v606, 2.0
        %v1604 = vmul.f32 %v797, 2.0
        %v1605 = vmul.f32 %v799, 2.0
        %v1606 = vmul.f32 %v610, 2.0
        %v1607 = vmul.f32 %v612, 2.0
        %v1608 = vmul.f32 %v803, 2.0
        %v1609 = vmul.f32 %v805, 2.0
        %v1610 = vmul.f32 %v614, 2.0
        %v1611 = vmul.f32 %v616, 2.0
        %v1612 = vmul.f32 %v807, 2.0
        %v1613 = vmul.f32 %v809, 2.0
        %v1614 = vmul.f32 %v620, 2.0
        %v1615 = vmul.f32 %v622, 2.0
        %v1616 = vmul.f32 %v813, 2.0
        %v1617 = vmul.f32 %v815, 2.0
        %v1618 = vmul.f32 %v624, 2.0
        %v1619 = vmul.f32 %v626, 2.0
        %v1620 = vmul.f32 %v817, 2.0
        %v1621 = vmul.f32 %v819, 2.0
        %v1622 = vsub.f32 %v1366, %v1494
        %v1623 = vsub.f32 %v1367, %v1495
        %v1624 = vsub.f32 %v1368, %v1496
        %v1625 = vsub.f32 %v1369, %v1497
        %v1626 = vsub.f32 %v1370, %v1498
        %v1627 = vsub.f32 %v1371, %v1499
        %v1628 = vsub.f32 %v1372, %v1500
        %v1629 = vsub.f32 %v1373, %v1501
        %v1630 = vsub.f32 %v1374, %v1502
        %v1631 = vsub.f32 %v1375, %v1503
        %v1632 = vsub.f32 %v1376, %v1504
        %v1633 = vsub.f32 %v1377, %v1505
        %v1634 = vsub.f32 %v1378, %v1506
        %v1635 = vsub.f32 %v1379, %v1507
        %v1636 = vsub.f32 %v1380, %v1508
        %v1637 = vsub.f32 %v1381, %v1509
        %v1638 = vsub.f32 %v1382, %v1510
        %v1639 = vsub.f32 %v1383, %v1511
        %v1640 = vsub.f32 %v1384, %v1512
        %v1641 = vsub.f32 %v1385, %v1513
        %v1642 = vsub.f32 %v1386, %v1514
        %v1643 = vsub.f32 %v1387, %v1515
        %v1644 = vsub.f32 %v1388, %v1516
        %v1645 = vsub.f32 %v1389, %v1517
        %v1646 = vsub.f32 %v1390, %v1518
        %v1647 = vsub.f32 %v1391, %v1519
        %v1648 = vsub.f32 %v1392, %v1520
        %v1649 = vsub.f32 %v1393, %v1521
        %v1650 = vsub.f32 %v1394, %v1522
        %v1651 = vsub.f32 %v1395, %v1523
        %v1652 = vsub.f32 %v1396, %v1524
        %v1653 = vsub.f32 %v1397, %v1525
        %v1654 = vsub.f32 %v1398, %v1526
        %v1655 = vsub.f32 %v1399, %v1527
        %v1656 = vsub.f32 %v1400, %v1528
        %v1657 = vsub.f32 %v1401, %v1529
        %v1658 = vsub.f32 %v1402, %v1530
        %v1659 = vsub.f32 %v1403, %v1531
        %v1660 = vsub.f32 %v1404, %v1532
        %v1661 = vsub.f32 %v1405, %v1533
        %v1662 = vsub.f32 %v1406, %v1534
        %v1663 = vsub.f32 %v1407, %v1535
        %v1664 = vsub.f32 %v1408, %v1536
        %v1665 = vsub.f32 %v1409, %v1537
        %v1666 = vsub.f32 %v1410, %v1538
        %v1667 = vsub.f32 %v1411, %v1539
        %v1668 = vsub.f32 %v1412, %v1540
        %v1669 = vsub.f32 %v1413, %v1541
        %v1670 = vsub.f32 %v1414, %v1542
        %v1671 = vsub.f32 %v1415, %v1543
        %v1672 = vsub.f32 %v1416, %v1544
        %v1673 = vsub.f32 %v1417, %v1545
        %v1674 = vsub.f32 %v1418, %v1546
        %v1675 = vsub.f32 %v1419, %v1547
        %v1676 = vsub.f32 %v1420, %v1548
        %v1677 = vsub.f32 %v1421, %v1549
        %v1678 = vsub.f32 %v1422, %v1550
        %v1679 = vsub.f32 %v1423, %v1551
        %v1680 = vsub.f32 %v1424, %v1552
        %v1681 = vsub.f32 %v1425, %v1553
        %v1682 = vsub.f32 %v1426, %v1554
        %v1683 = vsub.f32 %v1427, %v1555
        %v1684 = vsub.f32 %v1428, %v1556
        %v1685 = vsub.f32 %v1429, %v1557
        %v1686 = vsub.f32 %v1430, %v1558
        %v1687 = vsub.f32 %v1431, %v1559
        %v1688 = vsub.f32 %v1432, %v1560
        %v1689 = vsub.f32 %v1433, %v1561
        %v1690 = vsub.f32 %v1434, %v1562
        %v1691 = vsub.f32 %v1435, %v1563
        %v1692 = vsub.f32 %v1436, %v1564
        %v1693 = vsub.f32 %v1437, %v1565
        %v1694 = vsub.f32 %v1438, %v1566
        %v1695 = vsub.f32 %v1439, %v1567
        %v1696 = vsub.f32 %v1440, %v1568
        %v1697 = vsub.f32 %v1441, %v1569
        %v1698 = vsub.f32 %v1442, %v1570
        %v1699 = vsub.f32 %v1443, %v1571
        %v1700 = vsub.f32 %v1444, %v1572
        %v1701 = vsub.f32 %v1445, %v1573
        %v1702 = vsub.f32 %v1446, %v1574
        %v1703 = vsub.f32 %v1447, %v1575
        %v1704 = vsub.f32 %v1448, %v1576
        %v1705 = vsub.f32 %v1449, %v1577
        %v1706 = vsub.f32 %v1450, %v1578
        %v1707 = vsub.f32 %v1451, %v1579
        %v1708 = vsub.f32 %v1452, %v1580
        %v1709 = vsub.f32 %v1453, %v1581
        %v1710 = vsub.f32 %v1454, %v1582
        %v1711 = vsub.f32 %v1455, %v1583
        %v1712 = vsub.f32 %v1456, %v1584
        %v1713 = vsub.f32 %v1457, %v1585
        %v1714 = vsub.f32 %v1458, %v1586
        %v1715 = vsub.f32 %v1459, %v1587
        %v1716 = vsub.f32 %v1460, %v1588
        %v1717 = vsub.f32 %v1461, %v1589
        %v1718 = vsub.f32 %v1462, %v1590
        %v1719 = vsub.f32 %v1463, %v1591
        %v1720 = vsub.f32 %v1464, %v1592
        %v1721 = vsub.f32 %v1465, %v1593
        %v1722 = vsub.f32 %v1466, %v1594
        %v1723 = vsub.f32 %v1467, %v1595
        %v1724 = vsub.f32 %v1468, %v1596
        %v1725 = vsub.f32 %v1469, %v1597
        %v1726 = vsub.f32 %v1470, %v1598
        %v1727 = vsub.f32 %v1471, %v1599
        %v1728 = vsub.f32 %v1472, %v1600
        %v1729 = vsub.f32 %v1473, %v1601
        %v1730 = vsub.f32 %v1474, %v1602
        %v1731 = vsub.f32 %v1475, %v1603
        %v1732 = vsub.f32 %v1476, %v1604
        %v1733 = vsub.f32 %v1477, %v1605
        %v1734 = vsub.f32 %v1478, %v1606
        %v1735 = vsub.f32 %v1479, %v1607
        %v1736 = vsub.f32 %v1480, %v1608
        %v1737 = vsub.f32 %v1481, %v1609
        %v1738 = vsub.f32 %v1482, %v1610
        %v1739 = vsub.f32 %v1483, %v1611
        %v1740 = vsub.f32 %v1484, %v1612
        %v1741 = vsub.f32 %v1485, %v1613
        %v1742 = vsub.f32 %v1486, %v1614
        %v1743 = vsub.f32 %v1487, %v1615
        %v1744 = vsub.f32 %v1488, %v1616
        %v1745 = vsub.f32 %v1489, %v1617
        %v1746 = vsub.f32 %v1490, %v1618
        %v1747 = vsub.f32 %v1491, %v1619
        %v1748 = vsub.f32 %v1492, %v1620
        %v1749 = vsub.f32 %v1493, %v1621
        %v1750 = vmax.f32 %v1622, 0.0
        %v1751 = vmax.f32 %v1623, 0.0
        %v1752 = vmax.f32 %v1624, 0.0
        %v1753 = vmax.f32 %v1625, 0.0
        %v1754 = vmax.f32 %v1626, 0.0
        %v1755 = vmax.f32 %v1627, 0.0
        %v1756 = vmax.f32 %v1628, 0.0
        %v1757 = vmax.f32 %v1629, 0.0
        %v1758 = vmax.f32 %v1630, 0.0
        %v1759 = vmax.f32 %v1631, 0.0
        %v1760 = vmax.f32 %v1632, 0.0
        %v1761 = vmax.f32 %v1633, 0.0
        %v1762 = vmax.f32 %v1634, 0.0
        %v1763 = vmax.f32 %v1635, 0.0
        %v1764 = vmax.f32 %v1636, 0.0
        %v1765 = vmax.f32 %v1637, 0.0
        %v1766 = vmax.f32 %v1638, 0.0
        %v1767 = vmax.f32 %v1639, 0.0
        %v1768 = vmax.f32 %v1640, 0.0
        %v1769 = vmax.f32 %v1641, 0.0
        %v1770 = vmax.f32 %v1642, 0.0
        %v1771 = vmax.f32 %v1643, 0.0
        %v1772 = vmax.f32 %v1644, 0.0
        %v1773 = vmax.f32 %v1645, 0.0
        %v1774 = vmax.f32 %v1646, 0.0
        %v1775 = vmax.f32 %v1647, 0.0
        %v1776 = vmax.f32 %v1648, 0.0
        %v1777 = vmax.f32 %v1649, 0.0
        %v1778 = vmax.f32 %v1650, 0.0
        %v1779 = vmax.f32 %v1651, 0.0
        %v1780 = vmax.f32 %v1652, 0.0
        %v1781 = vmax.f32 %v1653, 0.0
        %v1782 = vmax.f32 %v1654, 0.0
        %v1783 = vmax.f32 %v1655, 0.0
        %v1784 = vmax.f32 %v1656, 0.0
        %v1785 = vmax.f32 %v1657, 0.0
        %v1786 = vmax.f32 %v1658, 0.0
        %v1787 = vmax.f32 %v1659, 0.0
        %v1788 = vmax.f32 %v1660, 0.0
        %v1789 = vmax.f32 %v1661, 0.0
        %v1790 = vmax.f32 %v1662, 0.0
        %v1791 = vmax.f32 %v1663, 0.0
        %v1792 = vmax.f32 %v1664, 0.0
        %v1793 = vmax.f32 %v1665, 0.0
        %v1794 = vmax.f32 %v1666, 0.0
        %v1795 = vmax.f32 %v1667, 0.0
        %v1796 = vmax.f32 %v1668, 0.0
        %v1797 = vmax.f32 %v1669, 0.0
        %v1798 = vmax.f32 %v1670, 0.0
        %v1799 = vmax.f32 %v1671, 0.0
        %v1800 = vmax.f32 %v1672, 0.0
        %v1801 = vmax.f32 %v1673, 0.0
        %v1802 = vmax.f32 %v1674, 0.0
        %v1803 = vmax.f32 %v1675, 0.0
        %v1804 = vmax.f32 %v1676, 0.0
        %v1805 = vmax.f32 %v1677, 0.0
        %v1806 = vmax.f32 %v1678, 0.0
        %v1807 = vmax.f32 %v1679, 0.0
        %v1808 = vmax.f32 %v1680, 0.0
        %v1809 = vmax.f32 %v1681, 0.0
        %v1810 = vmax.f32 %v1682, 0.0
        %v1811 = vmax.f32 %v1683, 0.0
        %v1812 = vmax.f32 %v1684, 0.0
        %v1813 = vmax.f32 %v1685, 0.0
        %v1814 = vmax.f32 %v1686, 0.0
        %v1815 = vmax.f32 %v1687, 0.0
        %v1816 = vmax.f32 %v1688, 0.0
        %v1817 = vmax.f32 %v1689, 0.0
        %v1818 = vmax.f32 %v1690, 0.0
        %v1819 = vmax.f32 %v1691, 0.0
        %v1820 = vmax.f32 %v1692, 0.0
        %v1821 = vmax.f32 %v1693, 0.0
        %v1822 = vmax.f32 %v1694, 0.0
        %v1823 = vmax.f32 %v1695, 0.0
        %v1824 = vmax.f32 %v1696, 0.0
        %v1825 = vmax.f32 %v1697, 0.0
        %v1826 = vmax.f32 %v1698, 0.0
        %v1827 = vmax.f32 %v1699, 0.0
        %v1828 = vmax.f32 %v1700, 0.0
        %v1829 = vmax.f32 %v1701, 0.0
        %v1830 = vmax.f32 %v1702, 0.0
        %v1831 = vmax.f32 %v1703, 0.0
        %v1832 = vmax.f32 %v1704, 0.0
        %v1833 = vmax.f32 %v1705, 0.0
        %v1834 = vmax.f32 %v1706, 0.0
        %v1835 = vmax.f32 %v1707, 0.0
        %v1836 = vmax.f32 %v1708, 0.0
        %v1837 = vmax.f32 %v1709, 0.0
        %v1838 = vmax.f32 %v1710, 0.0
        %v1839 = vmax.f32 %v1711, 0.0
        %v1840 = vmax.f32 %v1712, 0.0
        %v1841 = vmax.f32 %v1713, 0.0
        %v1842 = vmax.f32 %v1714, 0.0
        %v1843 = vmax.f32 %v1715, 0.0
        %v1844 = vmax.f32 %v1716, 0.0
        %v1845 = vmax.f32 %v1717, 0.0
        %v1846 = vmax.f32 %v1718, 0.0
        %v1847 = vmax.f32 %v1719, 0.0
        %v1848 = vmax.f32 %v1720, 0.0
        %v1849 = vmax.f32 %v1721, 0.0
        %v1850 = vmax.f32 %v1722, 0.0
        %v1851 = vmax.f32 %v1723, 0.0
        %v1852 = vmax.f32 %v1724, 0.0
        %v1853 = vmax.f32 %v1725, 0.0
        %v1854 = vmax.f32 %v1726, 0.0
        %v1855 = vmax.f32 %v1727, 0.0
        %v1856 = vmax.f32 %v1728, 0.0
        %v1857 = vmax.f32 %v1729, 0.0
        %v1858 = vmax.f32 %v1730, 0.0
        %v1859 = vmax.f32 %v1731, 0.0
        %v1860 = vmax.f32 %v1732, 0.0
        %v1861 = vmax.f32 %v1733, 0.0
        %v1862 = vmax.f32 %v1734, 0.0
        %v1863 = vmax.f32 %v1735, 0.0
        %v1864 = vmax.f32 %v1736, 0.0
        %v1865 = vmax.f32 %v1737, 0.0
        %v1866 = vmax.f32 %v1738, 0.0
        %v1867 = vmax.f32 %v1739, 0.0
        %v1868 = vmax.f32 %v1740, 0.0
        %v1869 = vmax.f32 %v1741, 0.0
        %v1870 = vmax.f32 %v1742, 0.0
        %v1871 = vmax.f32 %v1743, 0.0
        %v1872 = vmax.f32 %v1744, 0.0
        %v1873 = vmax.f32 %v1745, 0.0
        %v1874 = vmax.f32 %v1746, 0.0
        %v1875 = vmax.f32 %v1747, 0.0
        %v1876 = vmax.f32 %v1748, 0.0
        %v1877 = vmax.f32 %v1749, 0.0
        %v1878 = vsub.f32 0.0, %v1750
        %v1879 = vsub.f32 0.0, %v1751
        %v1880 = vsub.f32 0.0, %v1752
        %v1881 = vsub.f32 0.0, %v1753
        %v1882 = vsub.f32 0.0, %v1754
        %v1883 = vsub.f32 0.0, %v1755
        %v1884 = vsub.f32 0.0, %v1756
        %v1885 = vsub.f32 0.0, %v1757
        %v1886 = vsub.f32 0.0, %v1758
        %v1887 = vsub.f32 0.0, %v1759
        %v1888 = vsub.f32 0.0, %v1760
        %v1889 = vsub.f32 0.0, %v1761
        %v1890 = vsub.f32 0.0, %v1762
        %v1891 = vsub.f32 0.0, %v1763
        %v1892 = vsub.f32 0.0, %v1764
        %v1893 = vsub.f32 0.0, %v1765
        %v1894 = vsub.f32 0.0, %v1766
        %v1895 = vsub.f32 0.0, %v1767
        %v1896 = vsub.f32 0.0, %v1768
        %v1897 = vsub.f32 0.0, %v1769
        %v1898 = vsub.f32 0.0, %v1770
        %v1899 = vsub.f32 0.0, %v1771
        %v1900 = vsub.f32 0.0, %v1772
        %v1901 = vsub.f32 0.0, %v1773
        %v1902 = vsub.f32 0.0, %v1774
        %v1903 = vsub.f32 0.0, %v1775
        %v1904 = vsub.f32 0.0, %v1776
        %v1905 = vsub.f32 0.0, %v1777
        %v1906 = vsub.f32 0.0, %v1778
        %v1907 = vsub.f32 0.0, %v1779
        %v1908 = vsub.f32 0.0, %v1780
        %v1909 = vsub.f32 0.0, %v1781
        %v1910 = vsub.f32 0.0, %v1782
        %v1911 = vsub.f32 0.0, %v1783
        %v1912 = vsub.f32 0.0, %v1784
        %v1913 = vsub.f32 0.0, %v1785
        %v1914 = vsub.f32 0.0, %v1786
        %v1915 = vsub.f32 0.0, %v1787
        %v1916 = vsub.f32 0.0, %v1788
        %v1917 = vsub.f32 0.0, %v1789
        %v1918 = vsub.f32 0.0, %v1790
        %v1919 = vsub.f32 0.0, %v1791
        %v1920 = vsub.f32 0.0, %v1792
        %v1921 = vsub.f32 0.0, %v1793
        %v1922 = vsub.f32 0.0, %v1794
        %v1923 = vsub.f32 0.0, %v1795
        %v1924 = vsub.f32 0.0, %v1796
        %v1925 = vsub.f32 0.0, %v1797
        %v1926 = vsub.f32 0.0, %v1798
        %v1927 = vsub.f32 0.0, %v1799
        %v1928 = vsub.f32 0.0, %v1800
        %v1929 = vsub.f32 0.0, %v1801
        %v1930 = vsub.f32 0.0, %v1802
        %v1931 = vsub.f32 0.0, %v1803
        %v1932 = vsub.f32 0.0, %v1804
        %v1933 = vsub.f32 0.0, %v1805
        %v1934 = vsub.f32 0.0, %v1806
        %v1935 = vsub.f32 0.0, %v1807
        %v1936 = vsub.f32 0.0, %v1808
        %v1937 = vsub.f32 0.0, %v1809
        %v1938 = vsub.f32 0.0, %v1810
        %v1939 = vsub.f32 0.0, %v1811
        %v1940 = vsub.f32 0.0, %v1812
        %v1941 = vsub.f32 0.0, %v1813
        %v1942 = vsub.f32 0.0, %v1814
        %v1943 = vsub.f32 0.0, %v1815
        %v1944 = vsub.f32 0.0, %v1816
        %v1945 = vsub.f32 0.0, %v1817
        %v1946 = vsub.f32 0.0, %v1818
        %v1947 = vsub.f32 0.0, %v1819
        %v1948 = vsub.f32 0.0, %v1820
        %v1949 = vsub.f32 0.0, %v1821
        %v1950 = vsub.f32 0.0, %v1822
        %v1951 = vsub.f32 0.0, %v1823
        %v1952 = vsub.f32 0.0, %v1824
        %v1953 = vsub.f32 0.0, %v1825
        %v1954 = vsub.f32 0.0, %v1826
        %v1955 = vsub.f32 0.0, %v1827
        %v1956 = vsub.f32 0.0, %v1828
        %v1957 = vsub.f32 0.0, %v1829
        %v1958 = vsub.f32 0.0, %v1830
        %v1959 = vsub.f32 0.0, %v1831
        %v1960 = vsub.f32 0.0, %v1832
        %v1961 = vsub.f32 0.0, %v1833
        %v1962 = vsub.f32 0.0, %v1834
        %v1963 = vsub.f32 0.0, %v1835
        %v1964 = vsub.f32 0.0, %v1836
        %v1965 = vsub.f32 0.0, %v1837
        %v1966 = vsub.f32 0.0, %v1838
        %v1967 = vsub.f32 0.0, %v1839
        %v1968 = vsub.f32 0.0, %v1840
        %v1969 = vsub.f32 0.0, %v1841
        %v1970 = vsub.f32 0.0, %v1842
        %v1971 = vsub.f32 0.0, %v1843
        %v1972 = vsub.f32 0.0, %v1844
        %v1973 = vsub.f32 0.0, %v1845
        %v1974 = vsub.f32 0.0, %v1846
        %v1975 = vsub.f32 0.0, %v1847
        %v1976 = vsub.f32 0.0, %v1848
        %v1977 = vsub.f32 0.0, %v1849
        %v1978 = vsub.f32 0.0, %v1850
        %v1979 = vsub.f32 0.0, %v1851
        %v1980 = vsub.f32 0.0, %v1852
        %v1981 = vsub.f32 0.0, %v1853
        %v1982 = vsub.f32 0.0, %v1854
        %v1983 = vsub.f32 0.0, %v1855
        %v1984 = vsub.f32 0.0, %v1856
        %v1985 = vsub.f32 0.0, %v1857
        %v1986 = vsub.f32 0.0, %v1858
        %v1987 = vsub.f32 0.0, %v1859
        %v1988 = vsub.f32 0.0, %v1860
        %v1989 = vsub.f32 0.0, %v1861
        %v1990 = vsub.f32 0.0, %v1862
        %v1991 = vsub.f32 0.0, %v1863
        %v1992 = vsub.f32 0.0, %v1864
        %v1993 = vsub.f32 0.0, %v1865
        %v1994 = vsub.f32 0.0, %v1866
        %v1995 = vsub.f32 0.0, %v1867
        %v1996 = vsub.f32 0.0, %v1868
        %v1997 = vsub.f32 0.0, %v1869
        %v1998 = vsub.f32 0.0, %v1870
        %v1999 = vsub.f32 0.0, %v1871
        %v2000 = vsub.f32 0.0, %v1872
        %v2001 = vsub.f32 0.0, %v1873
        %v2002 = vsub.f32 0.0, %v1874
        %v2003 = vsub.f32 0.0, %v1875
        %v2004 = vsub.f32 0.0, %v1876
        %v2005 = vsub.f32 0.0, %v1877
        %v2006 = vmax.f32 %v1878, %v1879
        %v2007 = vmax.f32 %v2006, %v1880
        %v2008 = vmax.f32 %v2007, %v1881
        %2009 = vmax.xlane.f32.xlu0 %v2008
        %v2010 = vpop.xlane.xlu0 %2009
        %v2011 = vmax.f32 %v1882, %v1883
        %v2012 = vmax.f32 %v2011, %v1884
        %v2013 = vmax.f32 %v2012, %v1885
        %2014 = vmax.xlane.f32.xlu0 %v2013
        %v2015 = vpop.xlane.xlu0 %2014
        %v2016 = vmax.f32 %v1886, %v1887
        %v2017 = vmax.f32 %v2016, %v1888
        %v2018 = vmax.f32 %v2017, %v1889
        %2019 = vmax.xlane.f32.xlu0 %v2018
        %v2020 = vpop.xlane.xlu0 %2019
        %v2021 = vmax.f32 %v1890, %v1891
        %v2022 = vmax.f32 %v2021, %v1892
        %v2023 = vmax.f32 %v2022, %v1893
        %2024 = vmax.xlane.f32.xlu0 %v2023
        %v2025 = vpop.xlane.xlu0 %2024
        %v2026 = vmax.f32 %v1894, %v1895
        %v2027 = vmax.f32 %v2026, %v1896
        %v2028 = vmax.f32 %v2027, %v1897
        %2029 = vmax.xlane.f32.xlu0 %v2028
        %v2030 = vpop.xlane.xlu0 %2029
        %v2031 = vmax.f32 %v1898, %v1899
        %v2032 = vmax.f32 %v2031, %v1900
        %v2033 = vmax.f32 %v2032, %v1901
        %2034 = vmax.xlane.f32.xlu0 %v2033
        %v2035 = vpop.xlane.xlu0 %2034
        %v2036 = vmax.f32 %v1902, %v1903
        %v2037 = vmax.f32 %v2036, %v1904
        %v2038 = vmax.f32 %v2037, %v1905
        %2039 = vmax.xlane.f32.xlu0 %v2038
        %v2040 = vpop.xlane.xlu0 %2039
        %v2041 = vmax.f32 %v1906, %v1907
        %v2042 = vmax.f32 %v2041, %v1908
        %v2043 = vmax.f32 %v2042, %v1909
        %2044 = vmax.xlane.f32.xlu0 %v2043
        %v2045 = vpop.xlane.xlu0 %2044
        %v2046 = vmax.f32 %v1910, %v1911
        %v2047 = vmax.f32 %v2046, %v1912
        %v2048 = vmax.f32 %v2047, %v1913
        %2049 = vmax.xlane.f32.xlu0 %v2048
        %v2050 = vpop.xlane.xlu0 %2049
        %v2051 = vmax.f32 %v1914, %v1915
        %v2052 = vmax.f32 %v2051, %v1916
        %v2053 = vmax.f32 %v2052, %v1917
        %2054 = vmax.xlane.f32.xlu0 %v2053
        %v2055 = vpop.xlane.xlu0 %2054
        %v2056 = vmax.f32 %v1918, %v1919
        %v2057 = vmax.f32 %v2056, %v1920
        %v2058 = vmax.f32 %v2057, %v1921
        %2059 = vmax.xlane.f32.xlu0 %v2058
        %v2060 = vpop.xlane.xlu0 %2059
        %v2061 = vmax.f32 %v1922, %v1923
        %v2062 = vmax.f32 %v2061, %v1924
        %v2063 = vmax.f32 %v2062, %v1925
        %2064 = vmax.xlane.f32.xlu0 %v2063
        %v2065 = vpop.xlane.xlu0 %2064
        %v2066 = vmax.f32 %v1926, %v1927
        %v2067 = vmax.f32 %v2066, %v1928
        %v2068 = vmax.f32 %v2067, %v1929
        %2069 = vmax.xlane.f32.xlu0 %v2068
        %v2070 = vpop.xlane.xlu0 %2069
        %v2071 = vmax.f32 %v1930, %v1931
        %v2072 = vmax.f32 %v2071, %v1932
        %v2073 = vmax.f32 %v2072, %v1933
        %2074 = vmax.xlane.f32.xlu0 %v2073
        %v2075 = vpop.xlane.xlu0 %2074
        %v2076 = vmax.f32 %v1934, %v1935
        %v2077 = vmax.f32 %v2076, %v1936
        %v2078 = vmax.f32 %v2077, %v1937
        %2079 = vmax.xlane.f32.xlu0 %v2078
        %v2080 = vpop.xlane.xlu0 %2079
        %v2081 = vmax.f32 %v1938, %v1939
        %v2082 = vmax.f32 %v2081, %v1940
        %v2083 = vmax.f32 %v2082, %v1941
        %2084 = vmax.xlane.f32.xlu0 %v2083
        %v2085 = vpop.xlane.xlu0 %2084
        %v2086 = vmax.f32 %v1942, %v1943
        %v2087 = vmax.f32 %v2086, %v1944
        %v2088 = vmax.f32 %v2087, %v1945
        %2089 = vmax.xlane.f32.xlu0 %v2088
        %v2090 = vpop.xlane.xlu0 %2089
        %v2091 = vmax.f32 %v1946, %v1947
        %v2092 = vmax.f32 %v2091, %v1948
        %v2093 = vmax.f32 %v2092, %v1949
        %2094 = vmax.xlane.f32.xlu0 %v2093
        %v2095 = vpop.xlane.xlu0 %2094
        %v2096 = vmax.f32 %v1950, %v1951
        %v2097 = vmax.f32 %v2096, %v1952
        %v2098 = vmax.f32 %v2097, %v1953
        %2099 = vmax.xlane.f32.xlu0 %v2098
        %v2100 = vpop.xlane.xlu0 %2099
        %v2101 = vmax.f32 %v1954, %v1955
        %v2102 = vmax.f32 %v2101, %v1956
        %v2103 = vmax.f32 %v2102, %v1957
        %2104 = vmax.xlane.f32.xlu0 %v2103
        %v2105 = vpop.xlane.xlu0 %2104
        %v2106 = vmax.f32 %v1958, %v1959
        %v2107 = vmax.f32 %v2106, %v1960
        %v2108 = vmax.f32 %v2107, %v1961
        %2109 = vmax.xlane.f32.xlu0 %v2108
        %v2110 = vpop.xlane.xlu0 %2109
        %v2111 = vmax.f32 %v1962, %v1963
        %v2112 = vmax.f32 %v2111, %v1964
        %v2113 = vmax.f32 %v2112, %v1965
        %2114 = vmax.xlane.f32.xlu0 %v2113
        %v2115 = vpop.xlane.xlu0 %2114
        %v2116 = vmax.f32 %v1966, %v1967
        %v2117 = vmax.f32 %v2116, %v1968
        %v2118 = vmax.f32 %v2117, %v1969
        %2119 = vmax.xlane.f32.xlu0 %v2118
        %v2120 = vpop.xlane.xlu0 %2119
        %v2121 = vmax.f32 %v1970, %v1971
        %v2122 = vmax.f32 %v2121, %v1972
        %v2123 = vmax.f32 %v2122, %v1973
        %2124 = vmax.xlane.f32.xlu0 %v2123
        %v2125 = vpop.xlane.xlu0 %2124
        %v2126 = vmax.f32 %v1974, %v1975
        %v2127 = vmax.f32 %v2126, %v1976
        %v2128 = vmax.f32 %v2127, %v1977
        %2129 = vmax.xlane.f32.xlu0 %v2128
        %v2130 = vpop.xlane.xlu0 %2129
        %v2131 = vmax.f32 %v1978, %v1979
        %v2132 = vmax.f32 %v2131, %v1980
        %v2133 = vmax.f32 %v2132, %v1981
        %2134 = vmax.xlane.f32.xlu0 %v2133
        %v2135 = vpop.xlane.xlu0 %2134
        %v2136 = vmax.f32 %v1982, %v1983
        %v2137 = vmax.f32 %v2136, %v1984
        %v2138 = vmax.f32 %v2137, %v1985
        %2139 = vmax.xlane.f32.xlu0 %v2138
        %v2140 = vpop.xlane.xlu0 %2139
        %v2141 = vmax.f32 %v1986, %v1987
        %v2142 = vmax.f32 %v2141, %v1988
        %v2143 = vmax.f32 %v2142, %v1989
        %2144 = vmax.xlane.f32.xlu0 %v2143
        %v2145 = vpop.xlane.xlu0 %2144
        %v2146 = vmax.f32 %v1990, %v1991
        %v2147 = vmax.f32 %v2146, %v1992
        %v2148 = vmax.f32 %v2147, %v1993
        %2149 = vmax.xlane.f32.xlu0 %v2148
        %v2150 = vpop.xlane.xlu0 %2149
        %v2151 = vmax.f32 %v1994, %v1995
        %v2152 = vmax.f32 %v2151, %v1996
        %v2153 = vmax.f32 %v2152, %v1997
        %2154 = vmax.xlane.f32.xlu0 %v2153
        %v2155 = vpop.xlane.xlu0 %2154
        %v2156 = vmax.f32 %v1998, %v1999
        %v2157 = vmax.f32 %v2156, %v2000
        %v2158 = vmax.f32 %v2157, %v2001
        %2159 = vmax.xlane.f32.xlu0 %v2158
        %v2160 = vpop.xlane.xlu0 %2159
        %v2161 = vmax.f32 %v2002, %v2003
        %v2162 = vmax.f32 %v2161, %v2004
        %v2163 = vmax.f32 %v2162, %v2005
        %2164 = vmax.xlane.f32.xlu0 %v2163
        %v2165 = vpop.xlane.xlu0 %2164
        %v2166 = vsub.f32 %v1878, %v2010
        %v2167 = vsub.f32 %v1879, %v2010
        %v2168 = vsub.f32 %v1880, %v2010
        %v2169 = vsub.f32 %v1881, %v2010
        %v2170 = vsub.f32 %v1882, %v2015
        %v2171 = vsub.f32 %v1883, %v2015
        %v2172 = vsub.f32 %v1884, %v2015
        %v2173 = vsub.f32 %v1885, %v2015
        %v2174 = vsub.f32 %v1886, %v2020
        %v2175 = vsub.f32 %v1887, %v2020
        %v2176 = vsub.f32 %v1888, %v2020
        %v2177 = vsub.f32 %v1889, %v2020
        %v2178 = vsub.f32 %v1890, %v2025
        %v2179 = vsub.f32 %v1891, %v2025
        %v2180 = vsub.f32 %v1892, %v2025
        %v2181 = vsub.f32 %v1893, %v2025
        %v2182 = vsub.f32 %v1894, %v2030
        %v2183 = vsub.f32 %v1895, %v2030
        %v2184 = vsub.f32 %v1896, %v2030
        %v2185 = vsub.f32 %v1897, %v2030
        %v2186 = vsub.f32 %v1898, %v2035
        %v2187 = vsub.f32 %v1899, %v2035
        %v2188 = vsub.f32 %v1900, %v2035
        %v2189 = vsub.f32 %v1901, %v2035
        %v2190 = vsub.f32 %v1902, %v2040
        %v2191 = vsub.f32 %v1903, %v2040
        %v2192 = vsub.f32 %v1904, %v2040
        %v2193 = vsub.f32 %v1905, %v2040
        %v2194 = vsub.f32 %v1906, %v2045
        %v2195 = vsub.f32 %v1907, %v2045
        %v2196 = vsub.f32 %v1908, %v2045
        %v2197 = vsub.f32 %v1909, %v2045
        %v2198 = vsub.f32 %v1910, %v2050
        %v2199 = vsub.f32 %v1911, %v2050
        %v2200 = vsub.f32 %v1912, %v2050
        %v2201 = vsub.f32 %v1913, %v2050
        %v2202 = vsub.f32 %v1914, %v2055
        %v2203 = vsub.f32 %v1915, %v2055
        %v2204 = vsub.f32 %v1916, %v2055
        %v2205 = vsub.f32 %v1917, %v2055
        %v2206 = vsub.f32 %v1918, %v2060
        %v2207 = vsub.f32 %v1919, %v2060
        %v2208 = vsub.f32 %v1920, %v2060
        %v2209 = vsub.f32 %v1921, %v2060
        %v2210 = vsub.f32 %v1922, %v2065
        %v2211 = vsub.f32 %v1923, %v2065
        %v2212 = vsub.f32 %v1924, %v2065
        %v2213 = vsub.f32 %v1925, %v2065
        %v2214 = vsub.f32 %v1926, %v2070
        %v2215 = vsub.f32 %v1927, %v2070
        %v2216 = vsub.f32 %v1928, %v2070
        %v2217 = vsub.f32 %v1929, %v2070
        %v2218 = vsub.f32 %v1930, %v2075
        %v2219 = vsub.f32 %v1931, %v2075
        %v2220 = vsub.f32 %v1932, %v2075
        %v2221 = vsub.f32 %v1933, %v2075
        %v2222 = vsub.f32 %v1934, %v2080
        %v2223 = vsub.f32 %v1935, %v2080
        %v2224 = vsub.f32 %v1936, %v2080
        %v2225 = vsub.f32 %v1937, %v2080
        %v2226 = vsub.f32 %v1938, %v2085
        %v2227 = vsub.f32 %v1939, %v2085
        %v2228 = vsub.f32 %v1940, %v2085
        %v2229 = vsub.f32 %v1941, %v2085
        %v2230 = vsub.f32 %v1942, %v2090
        %v2231 = vsub.f32 %v1943, %v2090
        %v2232 = vsub.f32 %v1944, %v2090
        %v2233 = vsub.f32 %v1945, %v2090
        %v2234 = vsub.f32 %v1946, %v2095
        %v2235 = vsub.f32 %v1947, %v2095
        %v2236 = vsub.f32 %v1948, %v2095
        %v2237 = vsub.f32 %v1949, %v2095
        %v2238 = vsub.f32 %v1950, %v2100
        %v2239 = vsub.f32 %v1951, %v2100
        %v2240 = vsub.f32 %v1952, %v2100
        %v2241 = vsub.f32 %v1953, %v2100
        %v2242 = vsub.f32 %v1954, %v2105
        %v2243 = vsub.f32 %v1955, %v2105
        %v2244 = vsub.f32 %v1956, %v2105
        %v2245 = vsub.f32 %v1957, %v2105
        %v2246 = vsub.f32 %v1958, %v2110
        %v2247 = vsub.f32 %v1959, %v2110
        %v2248 = vsub.f32 %v1960, %v2110
        %v2249 = vsub.f32 %v1961, %v2110
        %v2250 = vsub.f32 %v1962, %v2115
        %v2251 = vsub.f32 %v1963, %v2115
        %v2252 = vsub.f32 %v1964, %v2115
        %v2253 = vsub.f32 %v1965, %v2115
        %v2254 = vsub.f32 %v1966, %v2120
        %v2255 = vsub.f32 %v1967, %v2120
        %v2256 = vsub.f32 %v1968, %v2120
        %v2257 = vsub.f32 %v1969, %v2120
        %v2258 = vsub.f32 %v1970, %v2125
        %v2259 = vsub.f32 %v1971, %v2125
        %v2260 = vsub.f32 %v1972, %v2125
        %v2261 = vsub.f32 %v1973, %v2125
        %v2262 = vsub.f32 %v1974, %v2130
        %v2263 = vsub.f32 %v1975, %v2130
        %v2264 = vsub.f32 %v1976, %v2130
        %v2265 = vsub.f32 %v1977, %v2130
        %v2266 = vsub.f32 %v1978, %v2135
        %v2267 = vsub.f32 %v1979, %v2135
        %v2268 = vsub.f32 %v1980, %v2135
        %v2269 = vsub.f32 %v1981, %v2135
        %v2270 = vsub.f32 %v1982, %v2140
        %v2271 = vsub.f32 %v1983, %v2140
        %v2272 = vsub.f32 %v1984, %v2140
        %v2273 = vsub.f32 %v1985, %v2140
        %v2274 = vsub.f32 %v1986, %v2145
        %v2275 = vsub.f32 %v1987, %v2145
        %v2276 = vsub.f32 %v1988, %v2145
        %v2277 = vsub.f32 %v1989, %v2145
        %v2278 = vsub.f32 %v1990, %v2150
        %v2279 = vsub.f32 %v1991, %v2150
        %v2280 = vsub.f32 %v1992, %v2150
        %v2281 = vsub.f32 %v1993, %v2150
        %v2282 = vsub.f32 %v1994, %v2155
        %v2283 = vsub.f32 %v1995, %v2155
        %v2284 = vsub.f32 %v1996, %v2155
        %v2285 = vsub.f32 %v1997, %v2155
        %v2286 = vsub.f32 %v1998, %v2160
        %v2287 = vsub.f32 %v1999, %v2160
        %v2288 = vsub.f32 %v2000, %v2160
        %v2289 = vsub.f32 %v2001, %v2160
        %v2290 = vsub.f32 %v2002, %v2165
        %v2291 = vsub.f32 %v2003, %v2165
        %v2292 = vsub.f32 %v2004, %v2165
        %v2293 = vsub.f32 %v2005, %v2165
        %v2294 = vmul.f32 %v2166, 1.442695
        %v2295 = vpow.pop %v2294
        %v2296 = vmul.f32 %v2167, 1.442695
        %v2297 = vpow.pop %v2296
        %v2298 = vmul.f32 %v2168, 1.442695
        %v2299 = vpow.pop %v2298
        %v2300 = vmul.f32 %v2169, 1.442695
        %v2301 = vpow.pop %v2300
        %v2302 = vmul.f32 %v2170, 1.442695
        %v2303 = vpow.pop %v2302
        %v2304 = vmul.f32 %v2171, 1.442695
        %v2305 = vpow.pop %v2304
        %v2306 = vmul.f32 %v2172, 1.442695
        %v2307 = vpow.pop %v2306
        %v2308 = vmul.f32 %v2173, 1.442695
        %v2309 = vpow.pop %v2308
        %v2310 = vmul.f32 %v2174, 1.442695
        %v2311 = vpow.pop %v2310
        %v2312 = vmul.f32 %v2175, 1.442695
        %v2313 = vpow.pop %v2312
        %v2314 = vmul.f32 %v2176, 1.442695
        %v2315 = vpow.pop %v2314
        %v2316 = vmul.f32 %v2177, 1.442695
        %v2317 = vpow.pop %v2316
        %v2318 = vmul.f32 %v2178, 1.442695
        %v2319 = vpow.pop %v2318
        %v2320 = vmul.f32 %v2179, 1.442695
        %v2321 = vpow.pop %v2320
        %v2322 = vmul.f32 %v2180, 1.442695
        %v2323 = vpow.pop %v2322
        %v2324 = vmul.f32 %v2181, 1.442695
        %v2325 = vpow.pop %v2324
        %v2326 = vmul.f32 %v2182, 1.442695
        %v2327 = vpow.pop %v2326
        %v2328 = vmul.f32 %v2183, 1.442695
        %v2329 = vpow.pop %v2328
        %v2330 = vmul.f32 %v2184, 1.442695
        %v2331 = vpow.pop %v2330
        %v2332 = vmul.f32 %v2185, 1.442695
        %v2333 = vpow.pop %v2332
        %v2334 = vmul.f32 %v2186, 1.442695
        %v2335 = vpow.pop %v2334
        %v2336 = vmul.f32 %v2187, 1.442695
        %v2337 = vpow.pop %v2336
        %v2338 = vmul.f32 %v2188, 1.442695
        %v2339 = vpow.pop %v2338
        %v2340 = vmul.f32 %v2189, 1.442695
        %v2341 = vpow.pop %v2340
        %v2342 = vmul.f32 %v2190, 1.442695
        %v2343 = vpow.pop %v2342
        %v2344 = vmul.f32 %v2191, 1.442695
        %v2345 = vpow.pop %v2344
        %v2346 = vmul.f32 %v2192, 1.442695
        %v2347 = vpow.pop %v2346
        %v2348 = vmul.f32 %v2193, 1.442695
        %v2349 = vpow.pop %v2348
        %v2350 = vmul.f32 %v2194, 1.442695
        %v2351 = vpow.pop %v2350
        %v2352 = vmul.f32 %v2195, 1.442695
        %v2353 = vpow.pop %v2352
        %v2354 = vmul.f32 %v2196, 1.442695
        %v2355 = vpow.pop %v2354
        %v2356 = vmul.f32 %v2197, 1.442695
        %v2357 = vpow.pop %v2356
        %v2358 = vmul.f32 %v2198, 1.442695
        %v2359 = vpow.pop %v2358
        %v2360 = vmul.f32 %v2199, 1.442695
        %v2361 = vpow.pop %v2360
        %v2362 = vmul.f32 %v2200, 1.442695
        %v2363 = vpow.pop %v2362
        %v2364 = vmul.f32 %v2201, 1.442695
        %v2365 = vpow.pop %v2364
        %v2366 = vmul.f32 %v2202, 1.442695
        %v2367 = vpow.pop %v2366
        %v2368 = vmul.f32 %v2203, 1.442695
        %v2369 = vpow.pop %v2368
        %v2370 = vmul.f32 %v2204, 1.442695
        %v2371 = vpow.pop %v2370
        %v2372 = vmul.f32 %v2205, 1.442695
        %v2373 = vpow.pop %v2372
        %v2374 = vmul.f32 %v2206, 1.442695
        %v2375 = vpow.pop %v2374
        %v2376 = vmul.f32 %v2207, 1.442695
        %v2377 = vpow.pop %v2376
        %v2378 = vmul.f32 %v2208, 1.442695
        %v2379 = vpow.pop %v2378
        %v2380 = vmul.f32 %v2209, 1.442695
        %v2381 = vpow.pop %v2380
        %v2382 = vmul.f32 %v2210, 1.442695
        %v2383 = vpow.pop %v2382
        %v2384 = vmul.f32 %v2211, 1.442695
        %v2385 = vpow.pop %v2384
        %v2386 = vmul.f32 %v2212, 1.442695
        %v2387 = vpow.pop %v2386
        %v2388 = vmul.f32 %v2213, 1.442695
        %v2389 = vpow.pop %v2388
        %v2390 = vmul.f32 %v2214, 1.442695
        %v2391 = vpow.pop %v2390
        %v2392 = vmul.f32 %v2215, 1.442695
        %v2393 = vpow.pop %v2392
        %v2394 = vmul.f32 %v2216, 1.442695
        %v2395 = vpow.pop %v2394
        %v2396 = vmul.f32 %v2217, 1.442695
        %v2397 = vpow.pop %v2396
        %v2398 = vmul.f32 %v2218, 1.442695
        %v2399 = vpow.pop %v2398
        %v2400 = vmul.f32 %v2219, 1.442695
        %v2401 = vpow.pop %v2400
        %v2402 = vmul.f32 %v2220, 1.442695
        %v2403 = vpow.pop %v2402
        %v2404 = vmul.f32 %v2221, 1.442695
        %v2405 = vpow.pop %v2404
        %v2406 = vmul.f32 %v2222, 1.442695
        %v2407 = vpow.pop %v2406
        %v2408 = vmul.f32 %v2223, 1.442695
        %v2409 = vpow.pop %v2408
        %v2410 = vmul.f32 %v2224, 1.442695
        %v2411 = vpow.pop %v2410
        %v2412 = vmul.f32 %v2225, 1.442695
        %v2413 = vpow.pop %v2412
        %v2414 = vmul.f32 %v2226, 1.442695
        %v2415 = vpow.pop %v2414
        %v2416 = vmul.f32 %v2227, 1.442695
        %v2417 = vpow.pop %v2416
        %v2418 = vmul.f32 %v2228, 1.442695
        %v2419 = vpow.pop %v2418
        %v2420 = vmul.f32 %v2229, 1.442695
        %v2421 = vpow.pop %v2420
        %v2422 = vmul.f32 %v2230, 1.442695
        %v2423 = vpow.pop %v2422
        %v2424 = vmul.f32 %v2231, 1.442695
        %v2425 = vpow.pop %v2424
        %v2426 = vmul.f32 %v2232, 1.442695
        %v2427 = vpow.pop %v2426
        %v2428 = vmul.f32 %v2233, 1.442695
        %v2429 = vpow.pop %v2428
        %v2430 = vmul.f32 %v2234, 1.442695
        %v2431 = vpow.pop %v2430
        %v2432 = vmul.f32 %v2235, 1.442695
        %v2433 = vpow.pop %v2432
        %v2434 = vmul.f32 %v2236, 1.442695
        %v2435 = vpow.pop %v2434
        %v2436 = vmul.f32 %v2237, 1.442695
        %v2437 = vpow.pop %v2436
        %v2438 = vmul.f32 %v2238, 1.442695
        %v2439 = vpow.pop %v2438
        %v2440 = vmul.f32 %v2239, 1.442695
        %v2441 = vpow.pop %v2440
        %v2442 = vmul.f32 %v2240, 1.442695
        %v2443 = vpow.pop %v2442
        %v2444 = vmul.f32 %v2241, 1.442695
        %v2445 = vpow.pop %v2444
        %v2446 = vmul.f32 %v2242, 1.442695
        %v2447 = vpow.pop %v2446
        %v2448 = vmul.f32 %v2243, 1.442695
        %v2449 = vpow.pop %v2448
        %v2450 = vmul.f32 %v2244, 1.442695
        %v2451 = vpow.pop %v2450
        %v2452 = vmul.f32 %v2245, 1.442695
        %v2453 = vpow.pop %v2452
        %v2454 = vmul.f32 %v2246, 1.442695
        %v2455 = vpow.pop %v2454
        %v2456 = vmul.f32 %v2247, 1.442695
        %v2457 = vpow.pop %v2456
        %v2458 = vmul.f32 %v2248, 1.442695
        %v2459 = vpow.pop %v2458
        %v2460 = vmul.f32 %v2249, 1.442695
        %v2461 = vpow.pop %v2460
        %v2462 = vmul.f32 %v2250, 1.442695
        %v2463 = vpow.pop %v2462
        %v2464 = vmul.f32 %v2251, 1.442695
        %v2465 = vpow.pop %v2464
        %v2466 = vmul.f32 %v2252, 1.442695
        %v2467 = vpow.pop %v2466
        %v2468 = vmul.f32 %v2253, 1.442695
        %v2469 = vpow.pop %v2468
        %v2470 = vmul.f32 %v2254, 1.442695
        %v2471 = vpow.pop %v2470
        %v2472 = vmul.f32 %v2255, 1.442695
        %v2473 = vpow.pop %v2472
        %v2474 = vmul.f32 %v2256, 1.442695
        %v2475 = vpow.pop %v2474
        %v2476 = vmul.f32 %v2257, 1.442695
        %v2477 = vpow.pop %v2476
        %v2478 = vmul.f32 %v2258, 1.442695
        %v2479 = vpow.pop %v2478
        %v2480 = vmul.f32 %v2259, 1.442695
        %v2481 = vpow.pop %v2480
        %v2482 = vmul.f32 %v2260, 1.442695
        %v2483 = vpow.pop %v2482
        %v2484 = vmul.f32 %v2261, 1.442695
        %v2485 = vpow.pop %v2484
        %v2486 = vmul.f32 %v2262, 1.442695
        %v2487 = vpow.pop %v2486
        %v2488 = vmul.f32 %v2263, 1.442695
        %v2489 = vpow.pop %v2488
        %v2490 = vmul.f32 %v2264, 1.442695
        %v2491 = vpow.pop %v2490
        %v2492 = vmul.f32 %v2265, 1.442695
        %v2493 = vpow.pop %v2492
        %v2494 = vmul.f32 %v2266, 1.442695
        %v2495 = vpow.pop %v2494
        %v2496 = vmul.f32 %v2267, 1.442695
        %v2497 = vpow.pop %v2496
        %v2498 = vmul.f32 %v2268, 1.442695
        %v2499 = vpow.pop %v2498
        %v2500 = vmul.f32 %v2269, 1.442695
        %v2501 = vpow.pop %v2500
        %v2502 = vmul.f32 %v2270, 1.442695
        %v2503 = vpow.pop %v2502
        %v2504 = vmul.f32 %v2271, 1.442695
        %v2505 = vpow.pop %v2504
        %v2506 = vmul.f32 %v2272, 1.442695
        %v2507 = vpow.pop %v2506
        %v2508 = vmul.f32 %v2273, 1.442695
        %v2509 = vpow.pop %v2508
        %v2510 = vmul.f32 %v2274, 1.442695
        %v2511 = vpow.pop %v2510
        %v2512 = vmul.f32 %v2275, 1.442695
        %v2513 = vpow.pop %v2512
        %v2514 = vmul.f32 %v2276, 1.442695
        %v2515 = vpow.pop %v2514
        %v2516 = vmul.f32 %v2277, 1.442695
        %v2517 = vpow.pop %v2516
        %v2518 = vmul.f32 %v2278, 1.442695
        %v2519 = vpow.pop %v2518
        %v2520 = vmul.f32 %v2279, 1.442695
        %v2521 = vpow.pop %v2520
        %v2522 = vmul.f32 %v2280, 1.442695
        %v2523 = vpow.pop %v2522
        %v2524 = vmul.f32 %v2281, 1.442695
        %v2525 = vpow.pop %v2524
        %v2526 = vmul.f32 %v2282, 1.442695
        %v2527 = vpow.pop %v2526
        %v2528 = vmul.f32 %v2283, 1.442695
        %v2529 = vpow.pop %v2528
        %v2530 = vmul.f32 %v2284, 1.442695
        %v2531 = vpow.pop %v2530
        %v2532 = vmul.f32 %v2285, 1.442695
        %v2533 = vpow.pop %v2532
        %v2534 = vmul.f32 %v2286, 1.442695
        %v2535 = vpow.pop %v2534
        %v2536 = vmul.f32 %v2287, 1.442695
        %v2537 = vpow.pop %v2536
        %v2538 = vmul.f32 %v2288, 1.442695
        %v2539 = vpow.pop %v2538
        %v2540 = vmul.f32 %v2289, 1.442695
        %v2541 = vpow.pop %v2540
        %v2542 = vmul.f32 %v2290, 1.442695
        %v2543 = vpow.pop %v2542
        %v2544 = vmul.f32 %v2291, 1.442695
        %v2545 = vpow.pop %v2544
        %v2546 = vmul.f32 %v2292, 1.442695
        %v2547 = vpow.pop %v2546
        %v2548 = vmul.f32 %v2293, 1.442695
        %v2549 = vpow.pop %v2548
        %v2550 = vadd.f32 %v2295, %v2297
        %v2551 = vadd.f32 %v2550, %v2299
        %v2552 = vadd.f32 %v2551, %v2301
        %2553 = vadd.xlane.f32.xlu0 %v2552
        %v2554 = vpop.xlane.xlu0 %2553
        %v2555 = vadd.f32 %v2303, %v2305
        %v2556 = vadd.f32 %v2555, %v2307
        %v2557 = vadd.f32 %v2556, %v2309
        %2558 = vadd.xlane.f32.xlu0 %v2557
        %v2559 = vpop.xlane.xlu0 %2558
        %v2560 = vadd.f32 %v2311, %v2313
        %v2561 = vadd.f32 %v2560, %v2315
        %v2562 = vadd.f32 %v2561, %v2317
        %2563 = vadd.xlane.f32.xlu0 %v2562
        %v2564 = vpop.xlane.xlu0 %2563
        %v2565 = vadd.f32 %v2319, %v2321
        %v2566 = vadd.f32 %v2565, %v2323
        %v2567 = vadd.f32 %v2566, %v2325
        %2568 = vadd.xlane.f32.xlu0 %v2567
        %v2569 = vpop.xlane.xlu0 %2568
        %v2570 = vadd.f32 %v2327, %v2329
        %v2571 = vadd.f32 %v2570, %v2331
        %v2572 = vadd.f32 %v2571, %v2333
        %2573 = vadd.xlane.f32.xlu0 %v2572
        %v2574 = vpop.xlane.xlu0 %2573
        %v2575 = vadd.f32 %v2335, %v2337
        %v2576 = vadd.f32 %v2575, %v2339
        %v2577 = vadd.f32 %v2576, %v2341
        %2578 = vadd.xlane.f32.xlu0 %v2577
        %v2579 = vpop.xlane.xlu0 %2578
        %v2580 = vadd.f32 %v2343, %v2345
        %v2581 = vadd.f32 %v2580, %v2347
        %v2582 = vadd.f32 %v2581, %v2349
        %2583 = vadd.xlane.f32.xlu0 %v2582
        %v2584 = vpop.xlane.xlu0 %2583
        %v2585 = vadd.f32 %v2351, %v2353
        %v2586 = vadd.f32 %v2585, %v2355
        %v2587 = vadd.f32 %v2586, %v2357
        %2588 = vadd.xlane.f32.xlu0 %v2587
        %v2589 = vpop.xlane.xlu0 %2588
        %v2590 = vadd.f32 %v2359, %v2361
        %v2591 = vadd.f32 %v2590, %v2363
        %v2592 = vadd.f32 %v2591, %v2365
        %2593 = vadd.xlane.f32.xlu0 %v2592
        %v2594 = vpop.xlane.xlu0 %2593
        %v2595 = vadd.f32 %v2367, %v2369
        %v2596 = vadd.f32 %v2595, %v2371
        %v2597 = vadd.f32 %v2596, %v2373
        %2598 = vadd.xlane.f32.xlu0 %v2597
        %v2599 = vpop.xlane.xlu0 %2598
        %v2600 = vadd.f32 %v2375, %v2377
        %v2601 = vadd.f32 %v2600, %v2379
        %v2602 = vadd.f32 %v2601, %v2381
        %2603 = vadd.xlane.f32.xlu0 %v2602
        %v2604 = vpop.xlane.xlu0 %2603
        %v2605 = vadd.f32 %v2383, %v2385
        %v2606 = vadd.f32 %v2605, %v2387
        %v2607 = vadd.f32 %v2606, %v2389
        %2608 = vadd.xlane.f32.xlu0 %v2607
        %v2609 = vpop.xlane.xlu0 %2608
        %v2610 = vadd.f32 %v2391, %v2393
        %v2611 = vadd.f32 %v2610, %v2395
        %v2612 = vadd.f32 %v2611, %v2397
        %2613 = vadd.xlane.f32.xlu0 %v2612
        %v2614 = vpop.xlane.xlu0 %2613
        %v2615 = vadd.f32 %v2399, %v2401
        %v2616 = vadd.f32 %v2615, %v2403
        %v2617 = vadd.f32 %v2616, %v2405
        %2618 = vadd.xlane.f32.xlu0 %v2617
        %v2619 = vpop.xlane.xlu0 %2618
        %v2620 = vadd.f32 %v2407, %v2409
        %v2621 = vadd.f32 %v2620, %v2411
        %v2622 = vadd.f32 %v2621, %v2413
        %2623 = vadd.xlane.f32.xlu0 %v2622
        %v2624 = vpop.xlane.xlu0 %2623
        %v2625 = vadd.f32 %v2415, %v2417
        %v2626 = vadd.f32 %v2625, %v2419
        %v2627 = vadd.f32 %v2626, %v2421
        %2628 = vadd.xlane.f32.xlu0 %v2627
        %v2629 = vpop.xlane.xlu0 %2628
        %v2630 = vadd.f32 %v2423, %v2425
        %v2631 = vadd.f32 %v2630, %v2427
        %v2632 = vadd.f32 %v2631, %v2429
        %2633 = vadd.xlane.f32.xlu0 %v2632
        %v2634 = vpop.xlane.xlu0 %2633
        %v2635 = vadd.f32 %v2431, %v2433
        %v2636 = vadd.f32 %v2635, %v2435
        %v2637 = vadd.f32 %v2636, %v2437
        %2638 = vadd.xlane.f32.xlu0 %v2637
        %v2639 = vpop.xlane.xlu0 %2638
        %v2640 = vadd.f32 %v2439, %v2441
        %v2641 = vadd.f32 %v2640, %v2443
        %v2642 = vadd.f32 %v2641, %v2445
        %2643 = vadd.xlane.f32.xlu0 %v2642
        %v2644 = vpop.xlane.xlu0 %2643
        %v2645 = vadd.f32 %v2447, %v2449
        %v2646 = vadd.f32 %v2645, %v2451
        %v2647 = vadd.f32 %v2646, %v2453
        %2648 = vadd.xlane.f32.xlu0 %v2647
        %v2649 = vpop.xlane.xlu0 %2648
        %v2650 = vadd.f32 %v2455, %v2457
        %v2651 = vadd.f32 %v2650, %v2459
        %v2652 = vadd.f32 %v2651, %v2461
        %2653 = vadd.xlane.f32.xlu0 %v2652
        %v2654 = vpop.xlane.xlu0 %2653
        %v2655 = vadd.f32 %v2463, %v2465
        %v2656 = vadd.f32 %v2655, %v2467
        %v2657 = vadd.f32 %v2656, %v2469
        %2658 = vadd.xlane.f32.xlu0 %v2657
        %v2659 = vpop.xlane.xlu0 %2658
        %v2660 = vadd.f32 %v2471, %v2473
        %v2661 = vadd.f32 %v2660, %v2475
        %v2662 = vadd.f32 %v2661, %v2477
        %2663 = vadd.xlane.f32.xlu0 %v2662
        %v2664 = vpop.xlane.xlu0 %2663
        %v2665 = vadd.f32 %v2479, %v2481
        %v2666 = vadd.f32 %v2665, %v2483
        %v2667 = vadd.f32 %v2666, %v2485
        %2668 = vadd.xlane.f32.xlu0 %v2667
        %v2669 = vpop.xlane.xlu0 %2668
        %v2670 = vadd.f32 %v2487, %v2489
        %v2671 = vadd.f32 %v2670, %v2491
        %v2672 = vadd.f32 %v2671, %v2493
        %2673 = vadd.xlane.f32.xlu0 %v2672
        %v2674 = vpop.xlane.xlu0 %2673
        %v2675 = vadd.f32 %v2495, %v2497
        %v2676 = vadd.f32 %v2675, %v2499
        %v2677 = vadd.f32 %v2676, %v2501
        %2678 = vadd.xlane.f32.xlu0 %v2677
        %v2679 = vpop.xlane.xlu0 %2678
        %v2680 = vadd.f32 %v2503, %v2505
        %v2681 = vadd.f32 %v2680, %v2507
        %v2682 = vadd.f32 %v2681, %v2509
        %2683 = vadd.xlane.f32.xlu0 %v2682
        %v2684 = vpop.xlane.xlu0 %2683
        %v2685 = vadd.f32 %v2511, %v2513
        %v2686 = vadd.f32 %v2685, %v2515
        %v2687 = vadd.f32 %v2686, %v2517
        %2688 = vadd.xlane.f32.xlu0 %v2687
        %v2689 = vpop.xlane.xlu0 %2688
        %v2690 = vadd.f32 %v2519, %v2521
        %v2691 = vadd.f32 %v2690, %v2523
        %v2692 = vadd.f32 %v2691, %v2525
        %2693 = vadd.xlane.f32.xlu0 %v2692
        %v2694 = vpop.xlane.xlu0 %2693
        %v2695 = vadd.f32 %v2527, %v2529
        %v2696 = vadd.f32 %v2695, %v2531
        %v2697 = vadd.f32 %v2696, %v2533
        %2698 = vadd.xlane.f32.xlu0 %v2697
        %v2699 = vpop.xlane.xlu0 %2698
        %v2700 = vadd.f32 %v2535, %v2537
        %v2701 = vadd.f32 %v2700, %v2539
        %v2702 = vadd.f32 %v2701, %v2541
        %2703 = vadd.xlane.f32.xlu0 %v2702
        %v2704 = vpop.xlane.xlu0 %2703
        %v2705 = vadd.f32 %v2543, %v2545
        %v2706 = vadd.f32 %v2705, %v2547
        %v2707 = vadd.f32 %v2706, %v2549
        %2708 = vadd.xlane.f32.xlu0 %v2707
        %v2709 = vpop.xlane.xlu0 %2708
        %v2710 = vrcp.pop %v2554
        %v2711 = vrcp.pop %v2559
        %v2712 = vrcp.pop %v2564
        %v2713 = vrcp.pop %v2569
        %v2714 = vrcp.pop %v2574
        %v2715 = vrcp.pop %v2579
        %v2716 = vrcp.pop %v2584
        %v2717 = vrcp.pop %v2589
        %v2718 = vrcp.pop %v2594
        %v2719 = vrcp.pop %v2599
        %v2720 = vrcp.pop %v2604
        %v2721 = vrcp.pop %v2609
        %v2722 = vrcp.pop %v2614
        %v2723 = vrcp.pop %v2619
        %v2724 = vrcp.pop %v2624
        %v2725 = vrcp.pop %v2629
        %v2726 = vrcp.pop %v2634
        %v2727 = vrcp.pop %v2639
        %v2728 = vrcp.pop %v2644
        %v2729 = vrcp.pop %v2649
        %v2730 = vrcp.pop %v2654
        %v2731 = vrcp.pop %v2659
        %v2732 = vrcp.pop %v2664
        %v2733 = vrcp.pop %v2669
        %v2734 = vrcp.pop %v2674
        %v2735 = vrcp.pop %v2679
        %v2736 = vrcp.pop %v2684
        %v2737 = vrcp.pop %v2689
        %v2738 = vrcp.pop %v2694
        %v2739 = vrcp.pop %v2699
        %v2740 = vrcp.pop %v2704
        %v2741 = vrcp.pop %v2709
        %v2742 = vmul.f32 %v2295, %v2710
        %v2743 = vmul.f32 %v2297, %v2710
        %v2744 = vmul.f32 %v2299, %v2710
        %v2745 = vmul.f32 %v2301, %v2710
        %v2746 = vmul.f32 %v2303, %v2711
        %v2747 = vmul.f32 %v2305, %v2711
        %v2748 = vmul.f32 %v2307, %v2711
        %v2749 = vmul.f32 %v2309, %v2711
        %v2750 = vmul.f32 %v2311, %v2712
        %v2751 = vmul.f32 %v2313, %v2712
        %v2752 = vmul.f32 %v2315, %v2712
        %v2753 = vmul.f32 %v2317, %v2712
        %v2754 = vmul.f32 %v2319, %v2713
        %v2755 = vmul.f32 %v2321, %v2713
        %v2756 = vmul.f32 %v2323, %v2713
        %v2757 = vmul.f32 %v2325, %v2713
        %v2758 = vmul.f32 %v2327, %v2714
        %v2759 = vmul.f32 %v2329, %v2714
        %v2760 = vmul.f32 %v2331, %v2714
        %v2761 = vmul.f32 %v2333, %v2714
        %v2762 = vmul.f32 %v2335, %v2715
        %v2763 = vmul.f32 %v2337, %v2715
        %v2764 = vmul.f32 %v2339, %v2715
        %v2765 = vmul.f32 %v2341, %v2715
        %v2766 = vmul.f32 %v2343, %v2716
        %v2767 = vmul.f32 %v2345, %v2716
        %v2768 = vmul.f32 %v2347, %v2716
        %v2769 = vmul.f32 %v2349, %v2716
        %v2770 = vmul.f32 %v2351, %v2717
        %v2771 = vmul.f32 %v2353, %v2717
        %v2772 = vmul.f32 %v2355, %v2717
        %v2773 = vmul.f32 %v2357, %v2717
        %v2774 = vmul.f32 %v2359, %v2718
        %v2775 = vmul.f32 %v2361, %v2718
        %v2776 = vmul.f32 %v2363, %v2718
        %v2777 = vmul.f32 %v2365, %v2718
        %v2778 = vmul.f32 %v2367, %v2719
        %v2779 = vmul.f32 %v2369, %v2719
        %v2780 = vmul.f32 %v2371, %v2719
        %v2781 = vmul.f32 %v2373, %v2719
        %v2782 = vmul.f32 %v2375, %v2720
        %v2783 = vmul.f32 %v2377, %v2720
        %v2784 = vmul.f32 %v2379, %v2720
        %v2785 = vmul.f32 %v2381, %v2720
        %v2786 = vmul.f32 %v2383, %v2721
        %v2787 = vmul.f32 %v2385, %v2721
        %v2788 = vmul.f32 %v2387, %v2721
        %v2789 = vmul.f32 %v2389, %v2721
        %v2790 = vmul.f32 %v2391, %v2722
        %v2791 = vmul.f32 %v2393, %v2722
        %v2792 = vmul.f32 %v2395, %v2722
        %v2793 = vmul.f32 %v2397, %v2722
        %v2794 = vmul.f32 %v2399, %v2723
        %v2795 = vmul.f32 %v2401, %v2723
        %v2796 = vmul.f32 %v2403, %v2723
        %v2797 = vmul.f32 %v2405, %v2723
        %v2798 = vmul.f32 %v2407, %v2724
        %v2799 = vmul.f32 %v2409, %v2724
        %v2800 = vmul.f32 %v2411, %v2724
        %v2801 = vmul.f32 %v2413, %v2724
        %v2802 = vmul.f32 %v2415, %v2725
        %v2803 = vmul.f32 %v2417, %v2725
        %v2804 = vmul.f32 %v2419, %v2725
        %v2805 = vmul.f32 %v2421, %v2725
        %v2806 = vmul.f32 %v2423, %v2726
        %v2807 = vmul.f32 %v2425, %v2726
        %v2808 = vmul.f32 %v2427, %v2726
        %v2809 = vmul.f32 %v2429, %v2726
        %v2810 = vmul.f32 %v2431, %v2727
        %v2811 = vmul.f32 %v2433, %v2727
        %v2812 = vmul.f32 %v2435, %v2727
        %v2813 = vmul.f32 %v2437, %v2727
        %v2814 = vmul.f32 %v2439, %v2728
        %v2815 = vmul.f32 %v2441, %v2728
        %v2816 = vmul.f32 %v2443, %v2728
        %v2817 = vmul.f32 %v2445, %v2728
        %v2818 = vmul.f32 %v2447, %v2729
        %v2819 = vmul.f32 %v2449, %v2729
        %v2820 = vmul.f32 %v2451, %v2729
        %v2821 = vmul.f32 %v2453, %v2729
        %v2822 = vmul.f32 %v2455, %v2730
        %v2823 = vmul.f32 %v2457, %v2730
        %v2824 = vmul.f32 %v2459, %v2730
        %v2825 = vmul.f32 %v2461, %v2730
        %v2826 = vmul.f32 %v2463, %v2731
        %v2827 = vmul.f32 %v2465, %v2731
        %v2828 = vmul.f32 %v2467, %v2731
        %v2829 = vmul.f32 %v2469, %v2731
        %v2830 = vmul.f32 %v2471, %v2732
        %v2831 = vmul.f32 %v2473, %v2732
        %v2832 = vmul.f32 %v2475, %v2732
        %v2833 = vmul.f32 %v2477, %v2732
        %v2834 = vmul.f32 %v2479, %v2733
        %v2835 = vmul.f32 %v2481, %v2733
        %v2836 = vmul.f32 %v2483, %v2733
        %v2837 = vmul.f32 %v2485, %v2733
        %v2838 = vmul.f32 %v2487, %v2734
        %v2839 = vmul.f32 %v2489, %v2734
        %v2840 = vmul.f32 %v2491, %v2734
        %v2841 = vmul.f32 %v2493, %v2734
        %v2842 = vmul.f32 %v2495, %v2735
        %v2843 = vmul.f32 %v2497, %v2735
        %v2844 = vmul.f32 %v2499, %v2735
        %v2845 = vmul.f32 %v2501, %v2735
        %v2846 = vmul.f32 %v2503, %v2736
        %v2847 = vmul.f32 %v2505, %v2736
        %v2848 = vmul.f32 %v2507, %v2736
        %v2849 = vmul.f32 %v2509, %v2736
        %v2850 = vmul.f32 %v2511, %v2737
        %v2851 = vmul.f32 %v2513, %v2737
        %v2852 = vmul.f32 %v2515, %v2737
        %v2853 = vmul.f32 %v2517, %v2737
        %v2854 = vmul.f32 %v2519, %v2738
        %v2855 = vmul.f32 %v2521, %v2738
        %v2856 = vmul.f32 %v2523, %v2738
        %v2857 = vmul.f32 %v2525, %v2738
        %v2858 = vmul.f32 %v2527, %v2739
        %v2859 = vmul.f32 %v2529, %v2739
        %v2860 = vmul.f32 %v2531, %v2739
        %v2861 = vmul.f32 %v2533, %v2739
        %v2862 = vmul.f32 %v2535, %v2740
        %v2863 = vmul.f32 %v2537, %v2740
        %v2864 = vmul.f32 %v2539, %v2740
        %v2865 = vmul.f32 %v2541, %v2740
        %v2866 = vmul.f32 %v2543, %v2741
        %v2867 = vmul.f32 %v2545, %v2741
        %v2868 = vmul.f32 %v2547, %v2741
        %v2869 = vmul.f32 %v2549, %v2741
        %v2870 = vadd.f32 %v2742, 1e-10
        %v2871 = vadd.f32 %v2743, 1e-10
        %v2872 = vadd.f32 %v2744, 1e-10
        %v2873 = vadd.f32 %v2745, 1e-10
        %v2874 = vadd.f32 %v2746, 1e-10
        %v2875 = vadd.f32 %v2747, 1e-10
        %v2876 = vadd.f32 %v2748, 1e-10
        %v2877 = vadd.f32 %v2749, 1e-10
        %v2878 = vadd.f32 %v2750, 1e-10
        %v2879 = vadd.f32 %v2751, 1e-10
        %v2880 = vadd.f32 %v2752, 1e-10
        %v2881 = vadd.f32 %v2753, 1e-10
        %v2882 = vadd.f32 %v2754, 1e-10
        %v2883 = vadd.f32 %v2755, 1e-10
        %v2884 = vadd.f32 %v2756, 1e-10
        %v2885 = vadd.f32 %v2757, 1e-10
        %v2886 = vadd.f32 %v2758, 1e-10
        %v2887 = vadd.f32 %v2759, 1e-10
        %v2888 = vadd.f32 %v2760, 1e-10
        %v2889 = vadd.f32 %v2761, 1e-10
        %v2890 = vadd.f32 %v2762, 1e-10
        %v2891 = vadd.f32 %v2763, 1e-10
        %v2892 = vadd.f32 %v2764, 1e-10
        %v2893 = vadd.f32 %v2765, 1e-10
        %v2894 = vadd.f32 %v2766, 1e-10
        %v2895 = vadd.f32 %v2767, 1e-10
        %v2896 = vadd.f32 %v2768, 1e-10
        %v2897 = vadd.f32 %v2769, 1e-10
        %v2898 = vadd.f32 %v2770, 1e-10
        %v2899 = vadd.f32 %v2771, 1e-10
        %v2900 = vadd.f32 %v2772, 1e-10
        %v2901 = vadd.f32 %v2773, 1e-10
        %v2902 = vadd.f32 %v2774, 1e-10
        %v2903 = vadd.f32 %v2775, 1e-10
        %v2904 = vadd.f32 %v2776, 1e-10
        %v2905 = vadd.f32 %v2777, 1e-10
        %v2906 = vadd.f32 %v2778, 1e-10
        %v2907 = vadd.f32 %v2779, 1e-10
        %v2908 = vadd.f32 %v2780, 1e-10
        %v2909 = vadd.f32 %v2781, 1e-10
        %v2910 = vadd.f32 %v2782, 1e-10
        %v2911 = vadd.f32 %v2783, 1e-10
        %v2912 = vadd.f32 %v2784, 1e-10
        %v2913 = vadd.f32 %v2785, 1e-10
        %v2914 = vadd.f32 %v2786, 1e-10
        %v2915 = vadd.f32 %v2787, 1e-10
        %v2916 = vadd.f32 %v2788, 1e-10
        %v2917 = vadd.f32 %v2789, 1e-10
        %v2918 = vadd.f32 %v2790, 1e-10
        %v2919 = vadd.f32 %v2791, 1e-10
        %v2920 = vadd.f32 %v2792, 1e-10
        %v2921 = vadd.f32 %v2793, 1e-10
        %v2922 = vadd.f32 %v2794, 1e-10
        %v2923 = vadd.f32 %v2795, 1e-10
        %v2924 = vadd.f32 %v2796, 1e-10
        %v2925 = vadd.f32 %v2797, 1e-10
        %v2926 = vadd.f32 %v2798, 1e-10
        %v2927 = vadd.f32 %v2799, 1e-10
        %v2928 = vadd.f32 %v2800, 1e-10
        %v2929 = vadd.f32 %v2801, 1e-10
        %v2930 = vadd.f32 %v2802, 1e-10
        %v2931 = vadd.f32 %v2803, 1e-10
        %v2932 = vadd.f32 %v2804, 1e-10
        %v2933 = vadd.f32 %v2805, 1e-10
        %v2934 = vadd.f32 %v2806, 1e-10
        %v2935 = vadd.f32 %v2807, 1e-10
        %v2936 = vadd.f32 %v2808, 1e-10
        %v2937 = vadd.f32 %v2809, 1e-10
        %v2938 = vadd.f32 %v2810, 1e-10
        %v2939 = vadd.f32 %v2811, 1e-10
        %v2940 = vadd.f32 %v2812, 1e-10
        %v2941 = vadd.f32 %v2813, 1e-10
        %v2942 = vadd.f32 %v2814, 1e-10
        %v2943 = vadd.f32 %v2815, 1e-10
        %v2944 = vadd.f32 %v2816, 1e-10
        %v2945 = vadd.f32 %v2817, 1e-10
        %v2946 = vadd.f32 %v2818, 1e-10
        %v2947 = vadd.f32 %v2819, 1e-10
        %v2948 = vadd.f32 %v2820, 1e-10
        %v2949 = vadd.f32 %v2821, 1e-10
        %v2950 = vadd.f32 %v2822, 1e-10
        %v2951 = vadd.f32 %v2823, 1e-10
        %v2952 = vadd.f32 %v2824, 1e-10
        %v2953 = vadd.f32 %v2825, 1e-10
        %v2954 = vadd.f32 %v2826, 1e-10
        %v2955 = vadd.f32 %v2827, 1e-10
        %v2956 = vadd.f32 %v2828, 1e-10
        %v2957 = vadd.f32 %v2829, 1e-10
        %v2958 = vadd.f32 %v2830, 1e-10
        %v2959 = vadd.f32 %v2831, 1e-10
        %v2960 = vadd.f32 %v2832, 1e-10
        %v2961 = vadd.f32 %v2833, 1e-10
        %v2962 = vadd.f32 %v2834, 1e-10
        %v2963 = vadd.f32 %v2835, 1e-10
        %v2964 = vadd.f32 %v2836, 1e-10
        %v2965 = vadd.f32 %v2837, 1e-10
        %v2966 = vadd.f32 %v2838, 1e-10
        %v2967 = vadd.f32 %v2839, 1e-10
        %v2968 = vadd.f32 %v2840, 1e-10
        %v2969 = vadd.f32 %v2841, 1e-10
        %v2970 = vadd.f32 %v2842, 1e-10
        %v2971 = vadd.f32 %v2843, 1e-10
        %v2972 = vadd.f32 %v2844, 1e-10
        %v2973 = vadd.f32 %v2845, 1e-10
        %v2974 = vadd.f32 %v2846, 1e-10
        %v2975 = vadd.f32 %v2847, 1e-10
        %v2976 = vadd.f32 %v2848, 1e-10
        %v2977 = vadd.f32 %v2849, 1e-10
        %v2978 = vadd.f32 %v2850, 1e-10
        %v2979 = vadd.f32 %v2851, 1e-10
        %v2980 = vadd.f32 %v2852, 1e-10
        %v2981 = vadd.f32 %v2853, 1e-10
        %v2982 = vadd.f32 %v2854, 1e-10
        %v2983 = vadd.f32 %v2855, 1e-10
        %v2984 = vadd.f32 %v2856, 1e-10
        %v2985 = vadd.f32 %v2857, 1e-10
        %v2986 = vadd.f32 %v2858, 1e-10
        %v2987 = vadd.f32 %v2859, 1e-10
        %v2988 = vadd.f32 %v2860, 1e-10
        %v2989 = vadd.f32 %v2861, 1e-10
        %v2990 = vadd.f32 %v2862, 1e-10
        %v2991 = vadd.f32 %v2863, 1e-10
        %v2992 = vadd.f32 %v2864, 1e-10
        %v2993 = vadd.f32 %v2865, 1e-10
        %v2994 = vadd.f32 %v2866, 1e-10
        %v2995 = vadd.f32 %v2867, 1e-10
        %v2996 = vadd.f32 %v2868, 1e-10
        %v2997 = vadd.f32 %v2869, 1e-10
        %2998 = vst [vmem:[%s137] sm:$0xff] %v2870
        %2999 = vst [vmem:[%s137 + $0x8] sm:$0xff] %v2871
        %3000 = vst [vmem:[%s137 + $0x10] sm:$0xff] %v2872
        %3001 = vst [vmem:[%s137 + $0x18] sm:$0xff] %v2873
        %3002 = vst [vmem:[%s137 + $0x20] sm:$0xff] %v2874
        %3003 = vst [vmem:[%s137 + $0x28] sm:$0xff] %v2875
        %3004 = vst [vmem:[%s137 + $0x30] sm:$0xff] %v2876
        %3005 = vst [vmem:[%s137 + $0x38] sm:$0xff] %v2877
        %3006 = vst [vmem:[%s137 + $0x40] sm:$0xff] %v2878
        %3007 = vst [vmem:[%s137 + $0x48] sm:$0xff] %v2879
        %3008 = vst [vmem:[%s137 + $0x50] sm:$0xff] %v2880
        %3009 = vst [vmem:[%s137 + $0x58] sm:$0xff] %v2881
        %3010 = vst [vmem:[%s137 + $0x60] sm:$0xff] %v2882
        %3011 = vst [vmem:[%s137 + $0x68] sm:$0xff] %v2883
        %3012 = vst [vmem:[%s137 + $0x70] sm:$0xff] %v2884
        %3013 = vst [vmem:[%s137 + $0x78] sm:$0xff] %v2885
        %3014 = vst [vmem:[%s137 + $0x80] sm:$0xff] %v2886
        %3015 = vst [vmem:[%s137 + $0x88] sm:$0xff] %v2887
        %3016 = vst [vmem:[%s137 + $0x90] sm:$0xff] %v2888
        %3017 = vst [vmem:[%s137 + $0x98] sm:$0xff] %v2889
        %3018 = vst [vmem:[%s137 + $0xa0] sm:$0xff] %v2890
        %3019 = vst [vmem:[%s137 + $0xa8] sm:$0xff] %v2891
        %3020 = vst [vmem:[%s137 + $0xb0] sm:$0xff] %v2892
        %3021 = vst [vmem:[%s137 + $0xb8] sm:$0xff] %v2893
        %3022 = vst [vmem:[%s137 + $0xc0] sm:$0xff] %v2894
        %3023 = vst [vmem:[%s137 + $0xc8] sm:$0xff] %v2895
        %3024 = vst [vmem:[%s137 + $0xd0] sm:$0xff] %v2896
        %3025 = vst [vmem:[%s137 + $0xd8] sm:$0xff] %v2897
        %3026 = vst [vmem:[%s137 + $0xe0] sm:$0xff] %v2898
        %3027 = vst [vmem:[%s137 + $0xe8] sm:$0xff] %v2899
        %3028 = vst [vmem:[%s137 + $0xf0] sm:$0xff] %v2900
        %3029 = vst [vmem:[%s137 + $0xf8] sm:$0xff] %v2901
        %3030 = vst [vmem:[%s137 + $0x100] sm:$0xff] %v2902
        %3031 = vst [vmem:[%s137 + $0x108] sm:$0xff] %v2903
        %3032 = vst [vmem:[%s137 + $0x110] sm:$0xff] %v2904
        %3033 = vst [vmem:[%s137 + $0x118] sm:$0xff] %v2905
        %3034 = vst [vmem:[%s137 + $0x120] sm:$0xff] %v2906
        %3035 = vst [vmem:[%s137 + $0x128] sm:$0xff] %v2907
        %3036 = vst [vmem:[%s137 + $0x130] sm:$0xff] %v2908
        %3037 = vst [vmem:[%s137 + $0x138] sm:$0xff] %v2909
        %3038 = vst [vmem:[%s137 + $0x140] sm:$0xff] %v2910
        %3039 = vst [vmem:[%s137 + $0x148] sm:$0xff] %v2911
        %3040 = vst [vmem:[%s137 + $0x150] sm:$0xff] %v2912
        %3041 = vst [vmem:[%s137 + $0x158] sm:$0xff] %v2913
        %3042 = vst [vmem:[%s137 + $0x160] sm:$0xff] %v2914
        %3043 = vst [vmem:[%s137 + $0x168] sm:$0xff] %v2915
        %3044 = vst [vmem:[%s137 + $0x170] sm:$0xff] %v2916
        %3045 = vst [vmem:[%s137 + $0x178] sm:$0xff] %v2917
        %3046 = vst [vmem:[%s137 + $0x180] sm:$0xff] %v2918
        %3047 = vst [vmem:[%s137 + $0x188] sm:$0xff] %v2919
        %3048 = vst [vmem:[%s137 + $0x190] sm:$0xff] %v2920
        %3049 = vst [vmem:[%s137 + $0x198] sm:$0xff] %v2921
        %3050 = vst [vmem:[%s137 + $0x1a0] sm:$0xff] %v2922
        %3051 = vst [vmem:[%s137 + $0x1a8] sm:$0xff] %v2923
        %3052 = vst [vmem:[%s137 + $0x1b0] sm:$0xff] %v2924
        %3053 = vst [vmem:[%s137 + $0x1b8] sm:$0xff] %v2925
        %3054 = vst [vmem:[%s137 + $0x1c0] sm:$0xff] %v2926
        %3055 = vst [vmem:[%s137 + $0x1c8] sm:$0xff] %v2927
        %3056 = vst [vmem:[%s137 + $0x1d0] sm:$0xff] %v2928
        %3057 = vst [vmem:[%s137 + $0x1d8] sm:$0xff] %v2929
        %3058 = vst [vmem:[%s137 + $0x1e0] sm:$0xff] %v2930
        %3059 = vst [vmem:[%s137 + $0x1e8] sm:$0xff] %v2931
        %3060 = vst [vmem:[%s137 + $0x1f0] sm:$0xff] %v2932
        %3061 = vst [vmem:[%s137 + $0x1f8] sm:$0xff] %v2933
        %3062 = vst [vmem:[%s137 + $0x200] sm:$0xff] %v2934
        %3063 = vst [vmem:[%s137 + $0x208] sm:$0xff] %v2935
        %3064 = vst [vmem:[%s137 + $0x210] sm:$0xff] %v2936
        %3065 = vst [vmem:[%s137 + $0x218] sm:$0xff] %v2937
        %3066 = vst [vmem:[%s137 + $0x220] sm:$0xff] %v2938
        %3067 = vst [vmem:[%s137 + $0x228] sm:$0xff] %v2939
        %3068 = vst [vmem:[%s137 + $0x230] sm:$0xff] %v2940
        %3069 = vst [vmem:[%s137 + $0x238] sm:$0xff] %v2941
        %3070 = vst [vmem:[%s137 + $0x240] sm:$0xff] %v2942
        %3071 = vst [vmem:[%s137 + $0x248] sm:$0xff] %v2943
        %3072 = vst [vmem:[%s137 + $0x250] sm:$0xff] %v2944
        %3073 = vst [vmem:[%s137 + $0x258] sm:$0xff] %v2945
        %3074 = vst [vmem:[%s137 + $0x260] sm:$0xff] %v2946
        %3075 = vst [vmem:[%s137 + $0x268] sm:$0xff] %v2947
        %3076 = vst [vmem:[%s137 + $0x270] sm:$0xff] %v2948
        %3077 = vst [vmem:[%s137 + $0x278] sm:$0xff] %v2949
        %3078 = vst [vmem:[%s137 + $0x280] sm:$0xff] %v2950
        %3079 = vst [vmem:[%s137 + $0x288] sm:$0xff] %v2951
        %3080 = vst [vmem:[%s137 + $0x290] sm:$0xff] %v2952
        %3081 = vst [vmem:[%s137 + $0x298] sm:$0xff] %v2953
        %3082 = vst [vmem:[%s137 + $0x2a0] sm:$0xff] %v2954
        %3083 = vst [vmem:[%s137 + $0x2a8] sm:$0xff] %v2955
        %3084 = vst [vmem:[%s137 + $0x2b0] sm:$0xff] %v2956
        %3085 = vst [vmem:[%s137 + $0x2b8] sm:$0xff] %v2957
        %3086 = vst [vmem:[%s137 + $0x2c0] sm:$0xff] %v2958
        %3087 = vst [vmem:[%s137 + $0x2c8] sm:$0xff] %v2959
        %3088 = vst [vmem:[%s137 + $0x2d0] sm:$0xff] %v2960
        %3089 = vst [vmem:[%s137 + $0x2d8] sm:$0xff] %v2961
        %3090 = vst [vmem:[%s137 + $0x2e0] sm:$0xff] %v2962
        %3091 = vst [vmem:[%s137 + $0x2e8] sm:$0xff] %v2963
        %3092 = vst [vmem:[%s137 + $0x2f0] sm:$0xff] %v2964
        %3093 = vst [vmem:[%s137 + $0x2f8] sm:$0xff] %v2965
        %3094 = vst [vmem:[%s137 + $0x300] sm:$0xff] %v2966
        %3095 = vst [vmem:[%s137 + $0x308] sm:$0xff] %v2967
        %3096 = vst [vmem:[%s137 + $0x310] sm:$0xff] %v2968
        %3097 = vst [vmem:[%s137 + $0x318] sm:$0xff] %v2969
        %3098 = vst [vmem:[%s137 + $0x320] sm:$0xff] %v2970
        %3099 = vst [vmem:[%s137 + $0x328] sm:$0xff] %v2971
        %3100 = vst [vmem:[%s137 + $0x330] sm:$0xff] %v2972
        %3101 = vst [vmem:[%s137 + $0x338] sm:$0xff] %v2973
        %3102 = vst [vmem:[%s137 + $0x340] sm:$0xff] %v2974
        %3103 = vst [vmem:[%s137 + $0x348] sm:$0xff] %v2975
        %3104 = vst [vmem:[%s137 + $0x350] sm:$0xff] %v2976
        %3105 = vst [vmem:[%s137 + $0x358] sm:$0xff] %v2977
        %3106 = vst [vmem:[%s137 + $0x360] sm:$0xff] %v2978
        %3107 = vst [vmem:[%s137 + $0x368] sm:$0xff] %v2979
        %3108 = vst [vmem:[%s137 + $0x370] sm:$0xff] %v2980
        %3109 = vst [vmem:[%s137 + $0x378] sm:$0xff] %v2981
        %3110 = vst [vmem:[%s137 + $0x380] sm:$0xff] %v2982
        %3111 = vst [vmem:[%s137 + $0x388] sm:$0xff] %v2983
        %3112 = vst [vmem:[%s137 + $0x390] sm:$0xff] %v2984
        %3113 = vst [vmem:[%s137 + $0x398] sm:$0xff] %v2985
        %3114 = vst [vmem:[%s137 + $0x3a0] sm:$0xff] %v2986
        %3115 = vst [vmem:[%s137 + $0x3a8] sm:$0xff] %v2987
        %3116 = vst [vmem:[%s137 + $0x3b0] sm:$0xff] %v2988
        %3117 = vst [vmem:[%s137 + $0x3b8] sm:$0xff] %v2989
        %3118 = vst [vmem:[%s137 + $0x3c0] sm:$0xff] %v2990
        %3119 = vst [vmem:[%s137 + $0x3c8] sm:$0xff] %v2991
        %3120 = vst [vmem:[%s137 + $0x3d0] sm:$0xff] %v2992
        %3121 = vst [vmem:[%s137 + $0x3d8] sm:$0xff] %v2993
        %3122 = vst [vmem:[%s137 + $0x3e0] sm:$0xff] %v2994
        %3123 = vst [vmem:[%s137 + $0x3e8] sm:$0xff] %v2995
        %3124 = vst [vmem:[%s137 + $0x3f0] sm:$0xff] %v2996
        %3125 = vst [vmem:[%s137 + $0x3f8] sm:$0xff] %v2997
        %s3126 = sand.u32 %s71, 1
        %s3127 = scalar_lea.sflag [#allocation3], %s3126
        %s3128 = sand.u32 %s71, 1
        %s3129 = smul.addr %s3128, 1024
        %s3130 = scalar_lea.vmem [#allocation2], %s3129
        // Predicated region
        $region29: #{gae_forward.9} parent=27 // pred_check
          %p3131 = pneg %p81
        $region30: #{gae_forward.9} parent=27 // pred_check_branch
          %3133 = sbr.rel (%p3131) target = $region32
        $region31: #{gae_forward.9} parent=27 // pred_region
          %s3134 = smul.u32 32, %s16
          %s3136 = ssub.s32 16384, 16384
          %3137 = vsyncadd %s3127, %s3136
          %s3138 = smul.addr %s3134, 4
          %s3139 = smul.addr %s3138, 128
          %s3140 = scalar_lea.hbm %s2, %s3139
          %s3141 = sshll.u32 %s3130, 4
          %s3142 = int_to_ptr.vmem [resolvable:$true] %s3141
          %3147 = dma.vmem_to_hbm [thread:$0]  %s3142, 16384, %s3140, %s3127, 512, 512, 32
        $region32: #{gae_forward.9} parent=27 // pred_fallthru
          _
      $region28: #{gae_forward.9} parent=5 // pred_fallthru
        _
      %p3148 = scmp.le.s32.totalorder 2, %s11
      // Predicated region
      $region33: #{gae_forward.9} parent=5 // pred_check
        %p3149 = pneg %p3148
      $region34: #{gae_forward.9} parent=5 // pred_check_branch
        %3151 = sbr.rel (%p3149) target = $region36
      $region35: #{gae_forward.9} parent=5 // pred_region
        %s3152 = ssub.s32 %s11, 2
        // Predicated region
        $region37: #{gae_forward.9} parent=35 // pred_check
          %p3153 = pneg %p87
        $region38: #{gae_forward.9} parent=35 // pred_check_branch
          %3155 = sbr.rel (%p3153) target = $region40
        $region39: #{gae_forward.9} parent=35 // pred_region
          %s3156 = sand.u32 %s72, 1
          %s3157 = scalar_lea.sflag [#allocation3], %s3156
          %s3158 = sand.u32 %s72, 1
          %s3159 = smul.addr %s3158, 1024
          %s3160 = scalar_lea.vmem [#allocation2], %s3159
          %3161 = dma.done %s3157, 16384
        $region40: #{gae_forward.9} parent=35 // pred_fallthru
          _
      $region36: #{gae_forward.9} parent=5 // pred_fallthru
        _
    $region6: #{gae_forward.9} parent=1 // loop_footer
      %s15 = sadd.s32 1, %s11
    $region7: #{gae_forward.9} parent=1 // loop_footer_branch
      %10 = sbr.rel target = $region3
    $region8: #{gae_forward.9} parent=1 // loop_exit
      _
    %3162 = vsyncpa [#allocation3], 1
    %s3163 = scalar_lea.sflag [#allocation3], 1
    %3164 = vsyncpa %s3163, 1

</llo_original>
